<compile_context>
chip_gen: v7x
topology: tpu7x:2x2x1
jax: 0.10.0
libtpu: 0.0.40
codegen_flags: <defaults>
</compile_context>

<pallas_src>
import functools

import numpy as np
import jax
import jax.numpy as jnp
from jax.experimental import pallas as pl
from jax.experimental.pallas import tpu as pltpu

NEG_SLOPE = 0.01   # F.leaky_relu default
NEG_BIG = -1e30    # bias placed on padded logit lanes


def _lrelu(v):
    return jnp.where(v > 0, v, NEG_SLOPE * v)


# ------------------------------ fused Pallas kernel ------------------------------ #

def fused_net_kernel(x_ref, r1_ref, cb1_ref, r2_ref, cb2_ref, r3_ref, cb3_ref,
                     w1_ref, fb1_ref, w2_ref, fb2_ref, o_ref, a2_ref, a3_ref, *, tb):
    """Whole Net forward for one batch tile of `tb` images (all data in VMEM).

    Activation layout (2D): row = h * tb + img, lane = w * C + c.
      x_ref  : (18*tb,  32)  f32   padded 16x16x1 input (lanes 18..31 are zero)
      r*_ref : (3, K, L)     bf16  banded conv weights, one slab per dh tap
      cb*_ref: (1, L)        f32   conv bias rows (pool-reordered lanes)
      w1_ref : (576, 256)    bf16  fc1, rows in (ph, pw, co) order, cols padded
      w2_ref : (256, 128)    bf16  fc2, rows/cols zero-padded
      fb2_ref: (1, 128)      f32   fc2 bias, -1e30 on the 104 padded lanes
      o_ref  : (tb, 128)     f32   log-probs (24 real classes, lane-dense slab)
      a2_ref : (10*tb, 320)  f32   scratch: padded 10x10x32 input of conv2
      a3_ref : (6*tb, 192)   f32   scratch: padded  6x6x32  input of conv3
    """
    f32, bf16 = jnp.float32, jnp.bfloat16

    def conv(load_lhs, rhs_ref, bias_ref, h_out):
        acc = None
        for dh in range(3):                       # dh tap == tb-aligned row shift
            lhs = load_lhs(dh, h_out)
            p = jnp.dot(lhs.astype(bf16), rhs_ref[dh], preferred_element_type=f32)
            acc = p if acc is None else acc + p
        return acc + bias_ref[...]

    # ---- stage 1: conv1(1->32) + leaky_relu + maxpool 2x2 : 16x16 -> 8x8x32 ----
    y1 = conv(lambda dh, ho: x_ref[dh * tb:(dh + ho) * tb, :], r1_ref, cb1_ref, 16)
    a1 = jnp.maximum(y1[:, :256], y1[:, 256:])        # w-max; lanes -> (pw, co)

    # rebuild conv2's zero halo every step (grid steps stay fully independent)
    a2_ref[0:tb, :] = jnp.zeros((tb, 320), f32)
    a2_ref[9 * tb:10 * tb, :] = jnp.zeros((tb, 320), f32)
    a2_ref[:, 0:32] = jnp.zeros((10 * tb, 32), f32)
    a2_ref[:, 288:320] = jnp.zeros((10 * tb, 32), f32)
    for ph in range(8):                               # h-max + 2x downsample
        blk = jnp.maximum(a1[(2 * ph) * tb:(2 * ph + 1) * tb, :],
                          a1[(2 * ph + 1) * tb:(2 * ph + 2) * tb, :])
        a2_ref[(ph + 1) * tb:(ph + 2) * tb, 32:288] = _lrelu(blk)

    # ---- stage 2: conv2(32->32) + leaky_relu + maxpool 2x2 : 8x8 -> 4x4x32 ----
    y2 = conv(lambda dh, ho: a2_ref[dh * tb:(dh + ho) * tb, :], r2_ref, cb2_ref, 8)
    a2v = jnp.maximum(y2[:, :128], y2[:, 128:])

    a3_ref[0:tb, :] = jnp.zeros((tb, 192), f32)
    a3_ref[5 * tb:6 * tb, :] = jnp.zeros((tb, 192), f32)
    a3_ref[:, 0:32] = jnp.zeros((6 * tb, 32), f32)
    a3_ref[:, 160:192] = jnp.zeros((6 * tb, 32), f32)
    for ph in range(4):
        blk = jnp.maximum(a2v[(2 * ph) * tb:(2 * ph + 1) * tb, :],
                          a2v[(2 * ph + 1) * tb:(2 * ph + 2) * tb, :])
        a3_ref[(ph + 1) * tb:(ph + 2) * tb, 32:160] = _lrelu(blk)

    # ---- stage 3: conv3(32->64) + leaky_relu + adaptive maxpool 4x4 -> 3x3 ----
    # (adaptive windows for 4 -> 3 are size 2 with starts {0,1,2} -> overlapping)
    y3 = conv(lambda dh, ho: a3_ref[dh * tb:(dh + ho) * tb, :], r3_ref, cb3_ref, 4)
    a3v = jnp.maximum(y3[:, :192], y3[:, 64:256])     # w windows {w, w+1}

    # ---- fc1 + leaky_relu + fc2 + log_softmax ---------------------------------
    h = None
    for ph in range(3):                               # h windows {ph, ph+1}
        blk = _lrelu(jnp.maximum(a3v[ph * tb:(ph + 1) * tb, :],
                                 a3v[(ph + 1) * tb:(ph + 2) * tb, :]))
        p = jnp.dot(blk.astype(bf16), w1_ref[ph * 192:(ph + 1) * 192, :],
                    preferred_element_type=f32)
        h = p if h is None else h + p
    h = _lrelu(h + fb1_ref[...])                      # padded hidden lanes stay 0
    z = jnp.dot(h.astype(bf16), w2_ref[...], preferred_element_type=f32) + fb2_ref[...]
    m = jnp.max(z, axis=-1, keepdims=True)
    lse = jnp.log(jnp.sum(jnp.exp(z - m), axis=-1, keepdims=True)) + m
    o_ref[...] = z - lse


# ------------------------------ wrapper / JAX glue ------------------------------ #

def net_forward(x_nchw, prep, *, tb=64):
    """x_nchw: (N, 1, 16, 16) -> log-probs (N, 24)."""
    N = x_nchw.shape[0]
    assert x_nchw.shape[1:] == (1, 16, 16), "kernel is specialised for 1x16x16 inputs"

    # tb must be a multiple of 8; don't tile past the (padded) batch.  On
    # megacore parts prefer a tb that keeps nb = ceil(N / tb) >= 2.
    tb = max(8, (min(tb, N + 7) // 8) * 8)
    nb = -(-N // tb)
    NB = nb * tb

    # pad batch to NB, spatial 16x16 -> 18x18, lane-pad width to 32, and
    # interleave rows as (h, img) so a conv dh tap is a tb-aligned row shift.
    x = x_nchw.reshape(N, 16, 16).astype(jnp.float32)
    x = jnp.pad(x, ((0, NB - N), (1, 1), (1, 15)))
    x = x.reshape(nb, tb, 18, 32).transpose(0, 2, 1, 3).reshape(nb, 18 * tb, 32)

    kernel = functools.partial(fused_net_kernel, tb=tb)
    out = pl.pallas_call(
        kernel,
        out_shape=jax.ShapeDtypeStruct((NB, 128), jnp.float32),
        grid=(nb,),
        in_specs=[
            pl.BlockSpec((None, 18 * tb, 32), lambda i: (i, 0, 0)),   # input tile
            pl.BlockSpec((3, 32, 512), lambda i: (0, 0, 0)),          # conv1 (resident)
            pl.BlockSpec((1, 512), lambda i: (0, 0)),
            pl.BlockSpec((3, 320, 256), lambda i: (0, 0, 0)),         # conv2
            pl.BlockSpec((1, 256), lambda i: (0, 0)),
            pl.BlockSpec((3, 192, 256), lambda i: (0, 0, 0)),         # conv3
            pl.BlockSpec((1, 256), lambda i: (0, 0)),
            pl.BlockSpec((576, 256), lambda i: (0, 0)),               # fc1
            pl.BlockSpec((1, 256), lambda i: (0, 0)),
            pl.BlockSpec((256, 128), lambda i: (0, 0)),               # fc2
            pl.BlockSpec((1, 128), lambda i: (0, 0)),
        ],
        out_specs=pl.BlockSpec((tb, 128), lambda i: (i, 0)),
        scratch_shapes=[
            pltpu.VMEM((10 * tb, 320), jnp.float32),   # padded conv2 input
            pltpu.VMEM((6 * tb, 192), jnp.float32),    # padded conv3 input
        ],
        compiler_params=pltpu.CompilerParams(
            dimension_semantics=("parallel",),         # batch tiles are independent
            vmem_limit_bytes=32 * 1024 * 1024,
        ),
    )(x, prep["r1"], prep["cb1"], prep["r2"], prep["cb2"], prep["r3"], prep["cb3"],
      prep["w1"], prep["fb1"], prep["w2"], prep["fb2"])

    return out[:N, :24]


# -------------------------- parameter preparation (host) ------------------------- #

def prepare_params(params):
    """Build kernel-ready weights: banded conv matrices (pool-reordered output
    lanes), tiled bias rows, permuted/padded fc weights.  Runs once, outside jit."""

    def conv_rhs(w, Wp, out_cols):
        # w: (Cout, Cin, 3, 3) torch layout -> (3, Wp*Cin, len(out_cols)*Cout);
        # rhs[dh][(wp, c), (g, co)] = w[co, c, dh, wp - out_cols[g]] when the tap hits.
        w = np.asarray(w, np.float32)
        Cout, Cin = w.shape[0], w.shape[1]
        G = len(out_cols)
        rhs = np.zeros((3, Wp * Cin, G * Cout), np.float32)
        for dh in range(3):
            for g, w0 in enumerate(out_cols):
                for dw in range(3):
                    wp = w0 + dw
                    rhs[dh, wp * Cin:(wp + 1) * Cin,
                        g * Cout:(g + 1) * Cout] = w[:, :, dh, dw].T
        return rhs

    def bias_row(b, G):
        return np.tile(np.asarray(b, np.float32), G)[None, :]

    # output-column orders: (j, pw) so maxpool's w-max is a lane-half max
    cols1 = [2 * pw + j for j in range(2) for pw in range(8)]    # conv1: 16 cols
    cols2 = [2 * pw + j for j in range(2) for pw in range(4)]    # conv2: 8 cols
    cols3 = [0, 1, 2, 3]                                         # conv3: natural

    r1 = np.pad(conv_rhs(params["conv1_w"], 18, cols1), ((0, 0), (0, 14), (0, 0)))
    r2 = conv_rhs(params["conv2_w"], 10, cols2)
    r3 = conv_rhs(params["conv3_w"], 6, cols3)
    cb1 = bias_row(params["conv1_b"], 16)
    cb2 = bias_row(params["conv2_b"], 8)
    cb3 = bias_row(params["conv3_b"], 4)

    # fc1 consumes the (ph, pw, co)-ordered 576-vector directly; PyTorch's
    # x.view(N, -1) flatten order on (N, 64, 3, 3) is (co, ph, pw).
    perm = np.array([co * 9 + ph * 3 + pw
                     for ph in range(3) for pw in range(3) for co in range(64)],
                    np.int32)
    w1 = np.zeros((576, 256), np.float32)
    w1[:, :240] = np.asarray(params["fc1_w"], np.float32).T[perm, :]
    fb1 = np.zeros((1, 256), np.float32)
    fb1[0, :240] = np.asarray(params["fc1_b"], np.float32)
    w2 = np.zeros((256, 128), np.float32)
    w2[:240, :24] = np.asarray(params["fc2_w"], np.float32).T
    fb2 = np.full((1, 128), NEG_BIG, np.float32)
    fb2[0, :24] = np.asarray(params["fc2_b"], np.float32)

    bf = jnp.bfloat16
    return {
        "r1": jnp.asarray(r1, bf), "cb1": jnp.asarray(cb1),
        "r2": jnp.asarray(r2, bf), "cb2": jnp.asarray(cb2),
        "r3": jnp.asarray(r3, bf), "cb3": jnp.asarray(cb3),
        "w1": jnp.asarray(w1, bf), "fb1": jnp.asarray(fb1),
        "w2": jnp.asarray(w2, bf), "fb2": jnp.asarray(fb2),
    }


# ---------------------------- reference (pure JAX) ------------------------------- #

def pool_window_starts(in_size, out_size):
    """AdaptiveMaxPool2d window starts / size (PyTorch formula)."""
    starts = np.floor(np.arange(out_size) * in_size / out_size).astype(np.int32)
    ends = np.ceil((np.arange(out_size) + 1) * in_size / out_size).astype(np.int32)
    sizes = ends - starts
    # TODO(synk): non-uniform adaptive-pool windows unsupported (never hit for 4->3).
    assert np.all(sizes == sizes[0])
    return starts, int(sizes[0])


def reference_forward(x_nchw, params):
    x = jnp.transpose(x_nchw, (0, 2, 3, 1)).astype(jnp.float32)

    def conv(x, w, b):
        wj = jnp.transpose(w, (2, 3, 1, 0))  # HWIO
        y = jax.lax.conv_general_dilated(
            x, wj, window_strides=(1, 1), padding=((1, 1), (1, 1)),
            dimension_numbers=("NHWC", "HWIO", "NHWC"),
            precision=jax.lax.Precision.HIGHEST)
        return y + b

    lrelu = lambda t: jnp.where(t > 0, t, NEG_SLOPE * t)
    pool2 = lambda t: jax.lax.reduce_window(
        t, -jnp.inf, jax.lax.max, (1, 2, 2, 1), (1, 2, 2, 1), "VALID")

    x = pool2(lrelu(conv(x, params["conv1_w"], params["conv1_b"])))
    x = pool2(lrelu(conv(x, params["conv2_w"], params["conv2_b"])))
    x = lrelu(conv(x, params["conv3_w"], params["conv3_b"]))

    starts, win = pool_window_starts(x.shape[1], 3)
    rows = []
    for i in starts:
        cols = [jnp.max(x[:, i:i + win, j:j + win, :], axis=(1, 2)) for j in starts]
        rows.append(jnp.stack(cols, axis=1))
    x = jnp.stack(rows, axis=1)                               # (N, 3, 3, C)
    xf = jnp.transpose(x, (0, 3, 1, 2)).reshape(x.shape[0], -1)
    h = lrelu(jnp.dot(xf, params["fc1_w"].T, precision=jax.lax.Precision.HIGHEST)
              + params["fc1_b"])
    z = jnp.dot(h, params["fc2_w"].T, precision=jax.lax.Precision.HIGHEST) + params["fc2_b"]
    return jax.nn.log_softmax(z, axis=1)


# ------------------------------------ params ------------------------------------- #

def init_params(key):
    ks = jax.random.split(key, 10)

    def nrm(k, shape, scale):
        return (scale * jax.random.normal(k, shape)).astype(jnp.float32)

    return {
        "conv1_w": nrm(ks[0], (32, 1, 3, 3), 0.2),
        "conv1_b": nrm(ks[1], (32,), 0.1),
        "conv2_w": nrm(ks[2], (32, 32, 3, 3), 0.05),
        "conv2_b": nrm(ks[3], (32,), 0.1),
        "conv3_w": nrm(ks[4], (64, 32, 3, 3), 0.05),
        "conv3_b": nrm(ks[5], (64,), 0.1),
        "fc1_w": nrm(ks[6], (240, 576), 0.03),
        "fc1_b": nrm(ks[7], (240,), 0.1),
        "fc2_w": nrm(ks[8], (24, 240), 0.2),
        "fc2_b": nrm(ks[9], (24,), 0.1),
    }


if __name__ == "__main__":
    key = jax.random.PRNGKey(0)
    k_x, k_p = jax.random.split(key)
    # NCHW input like the PyTorch module; 16x16 spatial is consistent with the
    # forward (two 2x2 max-pools, then adaptive max-pool to 3x3).
    x = jax.random.normal(k_x, (2, 1, 16, 16), dtype=jnp.float32)
    params = init_params(k_p)
    # TODO(synk): nn.Dropout(p=0.2) treated as eval-mode identity (no RNG mask).
    prep = prepare_params(params)

    fwd = jax.jit(net_forward)
    out = jax.block_until_ready(fwd(x, prep))
    ref = jax.block_until_ready(reference_forward(x, params))

    assert out.shape == (2, 24)
    assert bool(jnp.all(jnp.isfinite(out)))
    # Kernel uses bf16 MXU operands with f32 accumulation; reference runs at
    # HIGHEST f32 precision, so allow a small numerical gap on the log-probs.
    np.testing.assert_allclose(np.asarray(out), np.asarray(ref), rtol=2e-2, atol=1e-1)
    print("KERNEL_OK")
</pallas_src>

<mosaic_0001>
module attributes {stable_mosaic.version = 11 : i64} {
  func.func @fused_net_kernel(%arg0: i32, %arg1: memref<1x144x32xf32, #tpu.memory_space<vmem>>, %arg2: memref<3x32x512xbf16, #tpu.memory_space<vmem>>, %arg3: memref<1x512xf32, #tpu.memory_space<vmem>>, %arg4: memref<3x320x256xbf16, #tpu.memory_space<vmem>>, %arg5: memref<1x256xf32, #tpu.memory_space<vmem>>, %arg6: memref<3x192x256xbf16, #tpu.memory_space<vmem>>, %arg7: memref<1x256xf32, #tpu.memory_space<vmem>>, %arg8: memref<576x256xbf16, #tpu.memory_space<vmem>>, %arg9: memref<1x256xf32, #tpu.memory_space<vmem>>, %arg10: memref<256x128xbf16, #tpu.memory_space<vmem>>, %arg11: memref<1x128xf32, #tpu.memory_space<vmem>>, %arg12: memref<8x128xf32, #tpu.memory_space<vmem>>, %arg13: memref<80x320xf32, #tpu.memory_space<vmem>>, %arg14: memref<48x192xf32, #tpu.memory_space<vmem>>) attributes {dimension_semantics = [#tpu.dimension_semantics<parallel>], iteration_bounds = array<i64: 1>, scalar_prefetch = 0 : i64, scratch_operands = 2 : i64, tpu.core_type = #tpu.core_type<tc>, window_params = [{transform_indices = @transform_0, window_bounds = array<i64: 1, 144, 32>}, {pipeline_mode = #tpu.pipeline_mode<synchronous>, transform_indices = @transform_1, window_bounds = array<i64: 3, 32, 512>}, {pipeline_mode = #tpu.pipeline_mode<synchronous>, transform_indices = @transform_2, window_bounds = array<i64: 1, 512>}, {pipeline_mode = #tpu.pipeline_mode<synchronous>, transform_indices = @transform_3, window_bounds = array<i64: 3, 320, 256>}, {pipeline_mode = #tpu.pipeline_mode<synchronous>, transform_indices = @transform_4, window_bounds = array<i64: 1, 256>}, {pipeline_mode = #tpu.pipeline_mode<synchronous>, transform_indices = @transform_5, window_bounds = array<i64: 3, 192, 256>}, {pipeline_mode = #tpu.pipeline_mode<synchronous>, transform_indices = @transform_6, window_bounds = array<i64: 1, 256>}, {pipeline_mode = #tpu.pipeline_mode<synchronous>, transform_indices = @transform_7, window_bounds = array<i64: 576, 256>}, {pipeline_mode = #tpu.pipeline_mode<synchronous>, transform_indices = @transform_8, window_bounds = array<i64: 1, 256>}, {pipeline_mode = #tpu.pipeline_mode<synchronous>, transform_indices = @transform_9, window_bounds = array<i64: 256, 128>}, {pipeline_mode = #tpu.pipeline_mode<synchronous>, transform_indices = @transform_10, window_bounds = array<i64: 1, 128>}, {transform_indices = @transform_11, window_bounds = array<i64: 8, 128>}]} {
    %c0 = arith.constant 0 : index
    %c0_0 = arith.constant 0 : index
    %c0_1 = arith.constant 0 : index
    %0 = vector.load %arg1[%c0, %c0_0, %c0_1] : memref<1x144x32xf32, #tpu.memory_space<vmem>>, vector<1x128x32xf32>
    %1 = vector.shape_cast %0 : vector<1x128x32xf32> to vector<128x32xf32>
    %2 = arith.truncf %1 : vector<128x32xf32> to vector<128x32xbf16>
    %c0_2 = arith.constant 0 : index
    %c0_3 = arith.constant 0 : index
    %c0_4 = arith.constant 0 : index
    %3 = vector.load %arg2[%c0_2, %c0_3, %c0_4] : memref<3x32x512xbf16, #tpu.memory_space<vmem>>, vector<1x32x512xbf16>
    %4 = vector.shape_cast %3 : vector<1x32x512xbf16> to vector<32x512xbf16>
    %cst = arith.constant dense<0.000000e+00> : vector<128x512xf32>
    %5 = tpu.matmul %2, %4, %cst {dimension_numbers = #tpu.dot_dimension_numbers<[1], [0], [0], [1], [0, 0, 1, 1], [], []>} : vector<128x32xbf16>, vector<32x512xbf16>, vector<128x512xf32> -> vector<128x512xf32>
    %c0_5 = arith.constant 0 : index
    %c8 = arith.constant 8 : index
    %c0_6 = arith.constant 0 : index
    %6 = vector.load %arg1[%c0_5, %c8, %c0_6] : memref<1x144x32xf32, #tpu.memory_space<vmem>>, vector<1x128x32xf32>
    %7 = vector.shape_cast %6 : vector<1x128x32xf32> to vector<128x32xf32>
    %8 = arith.truncf %7 : vector<128x32xf32> to vector<128x32xbf16>
    %c1 = arith.constant 1 : index
    %c0_7 = arith.constant 0 : index
    %c0_8 = arith.constant 0 : index
    %9 = vector.load %arg2[%c1, %c0_7, %c0_8] : memref<3x32x512xbf16, #tpu.memory_space<vmem>>, vector<1x32x512xbf16>
    %10 = vector.shape_cast %9 : vector<1x32x512xbf16> to vector<32x512xbf16>
    %cst_9 = arith.constant dense<0.000000e+00> : vector<128x512xf32>
    %11 = tpu.matmul %8, %10, %cst_9 {dimension_numbers = #tpu.dot_dimension_numbers<[1], [0], [0], [1], [0, 0, 1, 1], [], []>} : vector<128x32xbf16>, vector<32x512xbf16>, vector<128x512xf32> -> vector<128x512xf32>
    %12 = arith.addf %5, %11 : vector<128x512xf32>
    %c0_10 = arith.constant 0 : index
    %c16 = arith.constant 16 : index
    %c0_11 = arith.constant 0 : index
    %13 = vector.load %arg1[%c0_10, %c16, %c0_11] : memref<1x144x32xf32, #tpu.memory_space<vmem>>, vector<1x128x32xf32>
    %14 = vector.shape_cast %13 : vector<1x128x32xf32> to vector<128x32xf32>
    %15 = arith.truncf %14 : vector<128x32xf32> to vector<128x32xbf16>
    %c2 = arith.constant 2 : index
    %c0_12 = arith.constant 0 : index
    %c0_13 = arith.constant 0 : index
    %16 = vector.load %arg2[%c2, %c0_12, %c0_13] : memref<3x32x512xbf16, #tpu.memory_space<vmem>>, vector<1x32x512xbf16>
    %17 = vector.shape_cast %16 : vector<1x32x512xbf16> to vector<32x512xbf16>
    %cst_14 = arith.constant dense<0.000000e+00> : vector<128x512xf32>
    %18 = tpu.matmul %15, %17, %cst_14 {dimension_numbers = #tpu.dot_dimension_numbers<[1], [0], [0], [1], [0, 0, 1, 1], [], []>} : vector<128x32xbf16>, vector<32x512xbf16>, vector<128x512xf32> -> vector<128x512xf32>
    %19 = arith.addf %12, %18 : vector<128x512xf32>
    %c0_15 = arith.constant 0 : index
    %c0_16 = arith.constant 0 : index
    %20 = vector.load %arg3[%c0_15, %c0_16] : memref<1x512xf32, #tpu.memory_space<vmem>>, vector<1x512xf32>
    %21 = vector.broadcast %20 : vector<1x512xf32> to vector<128x512xf32>
    %22 = arith.addf %19, %21 : vector<128x512xf32>
    %23 = vector.extract_strided_slice %22 {offsets = [0, 0], sizes = [128, 256], strides = [1, 1]} : vector<128x512xf32> to vector<128x256xf32>
    %24 = vector.extract_strided_slice %22 {offsets = [0, 256], sizes = [128, 256], strides = [1, 1]} : vector<128x512xf32> to vector<128x256xf32>
    %25 = arith.maximumf %23, %24 : vector<128x256xf32>
    %cst_17 = arith.constant 0.000000e+00 : f32
    %26 = vector.broadcast %cst_17 : f32 to vector<8x320xf32>
    %c0_18 = arith.constant 0 : index
    %c0_19 = arith.constant 0 : index
    %27 = vector.load %arg13[%c0_18, %c0_19] : memref<80x320xf32, #tpu.memory_space<vmem>>, vector<8x320xf32>
    tpu.vector_store %arg13[%c0_18, %c0_19], %26 {strides = array<i32>} : memref<80x320xf32, #tpu.memory_space<vmem>>, vector<8x320xf32>,
    %cst_20 = arith.constant 0.000000e+00 : f32
    %28 = vector.broadcast %cst_20 : f32 to vector<8x320xf32>
    %c72 = arith.constant 72 : index
    %c0_21 = arith.constant 0 : index
    %29 = vector.load %arg13[%c72, %c0_21] : memref<80x320xf32, #tpu.memory_space<vmem>>, vector<8x320xf32>
    tpu.vector_store %arg13[%c72, %c0_21], %28 {strides = array<i32>} : memref<80x320xf32, #tpu.memory_space<vmem>>, vector<8x320xf32>,
    %cst_22 = arith.constant 0.000000e+00 : f32
    %30 = vector.broadcast %cst_22 : f32 to vector<80x32xf32>
    %c0_23 = arith.constant 0 : index
    %c0_24 = arith.constant 0 : index
    %31 = vector.load %arg13[%c0_23, %c0_24] : memref<80x320xf32, #tpu.memory_space<vmem>>, vector<80x32xf32>
    tpu.vector_store %arg13[%c0_23, %c0_24], %30 {strides = array<i32>} : memref<80x320xf32, #tpu.memory_space<vmem>>, vector<80x32xf32>,
    %cst_25 = arith.constant 0.000000e+00 : f32
    %32 = vector.broadcast %cst_25 : f32 to vector<80x32xf32>
    %c0_26 = arith.constant 0 : index
    %c288 = arith.constant 288 : index
    %33 = vector.load %arg13[%c0_26, %c288] : memref<80x320xf32, #tpu.memory_space<vmem>>, vector<80x32xf32>
    tpu.vector_store %arg13[%c0_26, %c288], %32 {strides = array<i32>} : memref<80x320xf32, #tpu.memory_space<vmem>>, vector<80x32xf32>,
    %34 = vector.extract_strided_slice %25 {offsets = [0, 0], sizes = [8, 256], strides = [1, 1]} : vector<128x256xf32> to vector<8x256xf32>
    %35 = vector.extract_strided_slice %25 {offsets = [8, 0], sizes = [8, 256], strides = [1, 1]} : vector<128x256xf32> to vector<8x256xf32>
    %36 = arith.maximumf %34, %35 : vector<8x256xf32>
    %cst_27 = arith.constant 0.000000e+00 : f32
    %37 = vector.broadcast %cst_27 : f32 to vector<8x256xf32>
    %38 = arith.cmpf ogt, %36, %37 : vector<8x256xf32>
    %cst_28 = arith.constant 0.00999999977 : f32
    %39 = vector.broadcast %cst_28 : f32 to vector<8x256xf32>
    %40 = arith.mulf %39, %36 : vector<8x256xf32>
    %41 = arith.select %38, %36, %40 : vector<8x256xi1>, vector<8x256xf32>
    %c8_29 = arith.constant 8 : index
    %c32 = arith.constant 32 : index
    %42 = vector.load %arg13[%c8_29, %c32] : memref<80x320xf32, #tpu.memory_space<vmem>>, vector<8x256xf32>
    tpu.vector_store %arg13[%c8_29, %c32], %41 {strides = array<i32>} : memref<80x320xf32, #tpu.memory_space<vmem>>, vector<8x256xf32>,
    %43 = vector.extract_strided_slice %25 {offsets = [16, 0], sizes = [8, 256], strides = [1, 1]} : vector<128x256xf32> to vector<8x256xf32>
    %44 = vector.extract_strided_slice %25 {offsets = [24, 0], sizes = [8, 256], strides = [1, 1]} : vector<128x256xf32> to vector<8x256xf32>
    %45 = arith.maximumf %43, %44 : vector<8x256xf32>
    %cst_30 = arith.constant 0.000000e+00 : f32
    %46 = vector.broadcast %cst_30 : f32 to vector<8x256xf32>
    %47 = arith.cmpf ogt, %45, %46 : vector<8x256xf32>
    %cst_31 = arith.constant 0.00999999977 : f32
    %48 = vector.broadcast %cst_31 : f32 to vector<8x256xf32>
    %49 = arith.mulf %48, %45 : vector<8x256xf32>
    %50 = arith.select %47, %45, %49 : vector<8x256xi1>, vector<8x256xf32>
    %c16_32 = arith.constant 16 : index
    %c32_33 = arith.constant 32 : index
    %51 = vector.load %arg13[%c16_32, %c32_33] : memref<80x320xf32, #tpu.memory_space<vmem>>, vector<8x256xf32>
    tpu.vector_store %arg13[%c16_32, %c32_33], %50 {strides = array<i32>} : memref<80x320xf32, #tpu.memory_space<vmem>>, vector<8x256xf32>,
    %52 = vector.extract_strided_slice %25 {offsets = [32, 0], sizes = [8, 256], strides = [1, 1]} : vector<128x256xf32> to vector<8x256xf32>
    %53 = vector.extract_strided_slice %25 {offsets = [40, 0], sizes = [8, 256], strides = [1, 1]} : vector<128x256xf32> to vector<8x256xf32>
    %54 = arith.maximumf %52, %53 : vector<8x256xf32>
    %cst_34 = arith.constant 0.000000e+00 : f32
    %55 = vector.broadcast %cst_34 : f32 to vector<8x256xf32>
    %56 = arith.cmpf ogt, %54, %55 : vector<8x256xf32>
    %cst_35 = arith.constant 0.00999999977 : f32
    %57 = vector.broadcast %cst_35 : f32 to vector<8x256xf32>
    %58 = arith.mulf %57, %54 : vector<8x256xf32>
    %59 = arith.select %56, %54, %58 : vector<8x256xi1>, vector<8x256xf32>
    %c24 = arith.constant 24 : index
    %c32_36 = arith.constant 32 : index
    %60 = vector.load %arg13[%c24, %c32_36] : memref<80x320xf32, #tpu.memory_space<vmem>>, vector<8x256xf32>
    tpu.vector_store %arg13[%c24, %c32_36], %59 {strides = array<i32>} : memref<80x320xf32, #tpu.memory_space<vmem>>, vector<8x256xf32>,
    %61 = vector.extract_strided_slice %25 {offsets = [48, 0], sizes = [8, 256], strides = [1, 1]} : vector<128x256xf32> to vector<8x256xf32>
    %62 = vector.extract_strided_slice %25 {offsets = [56, 0], sizes = [8, 256], strides = [1, 1]} : vector<128x256xf32> to vector<8x256xf32>
    %63 = arith.maximumf %61, %62 : vector<8x256xf32>
    %cst_37 = arith.constant 0.000000e+00 : f32
    %64 = vector.broadcast %cst_37 : f32 to vector<8x256xf32>
    %65 = arith.cmpf ogt, %63, %64 : vector<8x256xf32>
    %cst_38 = arith.constant 0.00999999977 : f32
    %66 = vector.broadcast %cst_38 : f32 to vector<8x256xf32>
    %67 = arith.mulf %66, %63 : vector<8x256xf32>
    %68 = arith.select %65, %63, %67 : vector<8x256xi1>, vector<8x256xf32>
    %c32_39 = arith.constant 32 : index
    %c32_40 = arith.constant 32 : index
    %69 = vector.load %arg13[%c32_39, %c32_40] : memref<80x320xf32, #tpu.memory_space<vmem>>, vector<8x256xf32>
    tpu.vector_store %arg13[%c32_39, %c32_40], %68 {strides = array<i32>} : memref<80x320xf32, #tpu.memory_space<vmem>>, vector<8x256xf32>,
    %70 = vector.extract_strided_slice %25 {offsets = [64, 0], sizes = [8, 256], strides = [1, 1]} : vector<128x256xf32> to vector<8x256xf32>
    %71 = vector.extract_strided_slice %25 {offsets = [72, 0], sizes = [8, 256], strides = [1, 1]} : vector<128x256xf32> to vector<8x256xf32>
    %72 = arith.maximumf %70, %71 : vector<8x256xf32>
    %cst_41 = arith.constant 0.000000e+00 : f32
    %73 = vector.broadcast %cst_41 : f32 to vector<8x256xf32>
    %74 = arith.cmpf ogt, %72, %73 : vector<8x256xf32>
    %cst_42 = arith.constant 0.00999999977 : f32
    %75 = vector.broadcast %cst_42 : f32 to vector<8x256xf32>
    %76 = arith.mulf %75, %72 : vector<8x256xf32>
    %77 = arith.select %74, %72, %76 : vector<8x256xi1>, vector<8x256xf32>
    %c40 = arith.constant 40 : index
    %c32_43 = arith.constant 32 : index
    %78 = vector.load %arg13[%c40, %c32_43] : memref<80x320xf32, #tpu.memory_space<vmem>>, vector<8x256xf32>
    tpu.vector_store %arg13[%c40, %c32_43], %77 {strides = array<i32>} : memref<80x320xf32, #tpu.memory_space<vmem>>, vector<8x256xf32>,
    %79 = vector.extract_strided_slice %25 {offsets = [80, 0], sizes = [8, 256], strides = [1, 1]} : vector<128x256xf32> to vector<8x256xf32>
    %80 = vector.extract_strided_slice %25 {offsets = [88, 0], sizes = [8, 256], strides = [1, 1]} : vector<128x256xf32> to vector<8x256xf32>
    %81 = arith.maximumf %79, %80 : vector<8x256xf32>
    %cst_44 = arith.constant 0.000000e+00 : f32
    %82 = vector.broadcast %cst_44 : f32 to vector<8x256xf32>
    %83 = arith.cmpf ogt, %81, %82 : vector<8x256xf32>
    %cst_45 = arith.constant 0.00999999977 : f32
    %84 = vector.broadcast %cst_45 : f32 to vector<8x256xf32>
    %85 = arith.mulf %84, %81 : vector<8x256xf32>
    %86 = arith.select %83, %81, %85 : vector<8x256xi1>, vector<8x256xf32>
    %c48 = arith.constant 48 : index
    %c32_46 = arith.constant 32 : index
    %87 = vector.load %arg13[%c48, %c32_46] : memref<80x320xf32, #tpu.memory_space<vmem>>, vector<8x256xf32>
    tpu.vector_store %arg13[%c48, %c32_46], %86 {strides = array<i32>} : memref<80x320xf32, #tpu.memory_space<vmem>>, vector<8x256xf32>,
    %88 = vector.extract_strided_slice %25 {offsets = [96, 0], sizes = [8, 256], strides = [1, 1]} : vector<128x256xf32> to vector<8x256xf32>
    %89 = vector.extract_strided_slice %25 {offsets = [104, 0], sizes = [8, 256], strides = [1, 1]} : vector<128x256xf32> to vector<8x256xf32>
    %90 = arith.maximumf %88, %89 : vector<8x256xf32>
    %cst_47 = arith.constant 0.000000e+00 : f32
    %91 = vector.broadcast %cst_47 : f32 to vector<8x256xf32>
    %92 = arith.cmpf ogt, %90, %91 : vector<8x256xf32>
    %cst_48 = arith.constant 0.00999999977 : f32
    %93 = vector.broadcast %cst_48 : f32 to vector<8x256xf32>
    %94 = arith.mulf %93, %90 : vector<8x256xf32>
    %95 = arith.select %92, %90, %94 : vector<8x256xi1>, vector<8x256xf32>
    %c56 = arith.constant 56 : index
    %c32_49 = arith.constant 32 : index
    %96 = vector.load %arg13[%c56, %c32_49] : memref<80x320xf32, #tpu.memory_space<vmem>>, vector<8x256xf32>
    tpu.vector_store %arg13[%c56, %c32_49], %95 {strides = array<i32>} : memref<80x320xf32, #tpu.memory_space<vmem>>, vector<8x256xf32>,
    %97 = vector.extract_strided_slice %25 {offsets = [112, 0], sizes = [8, 256], strides = [1, 1]} : vector<128x256xf32> to vector<8x256xf32>
    %98 = vector.extract_strided_slice %25 {offsets = [120, 0], sizes = [8, 256], strides = [1, 1]} : vector<128x256xf32> to vector<8x256xf32>
    %99 = arith.maximumf %97, %98 : vector<8x256xf32>
    %cst_50 = arith.constant 0.000000e+00 : f32
    %100 = vector.broadcast %cst_50 : f32 to vector<8x256xf32>
    %101 = arith.cmpf ogt, %99, %100 : vector<8x256xf32>
    %cst_51 = arith.constant 0.00999999977 : f32
    %102 = vector.broadcast %cst_51 : f32 to vector<8x256xf32>
    %103 = arith.mulf %102, %99 : vector<8x256xf32>
    %104 = arith.select %101, %99, %103 : vector<8x256xi1>, vector<8x256xf32>
    %c64 = arith.constant 64 : index
    %c32_52 = arith.constant 32 : index
    %105 = vector.load %arg13[%c64, %c32_52] : memref<80x320xf32, #tpu.memory_space<vmem>>, vector<8x256xf32>
    tpu.vector_store %arg13[%c64, %c32_52], %104 {strides = array<i32>} : memref<80x320xf32, #tpu.memory_space<vmem>>, vector<8x256xf32>,
    %c0_53 = arith.constant 0 : index
    %c0_54 = arith.constant 0 : index
    %106 = vector.load %arg13[%c0_53, %c0_54] : memref<80x320xf32, #tpu.memory_space<vmem>>, vector<64x320xf32>
    %107 = arith.truncf %106 : vector<64x320xf32> to vector<64x320xbf16>
    %c0_55 = arith.constant 0 : index
    %c0_56 = arith.constant 0 : index
    %c0_57 = arith.constant 0 : index
    %108 = vector.load %arg4[%c0_55, %c0_56, %c0_57] : memref<3x320x256xbf16, #tpu.memory_space<vmem>>, vector<1x320x256xbf16>
    %109 = vector.shape_cast %108 : vector<1x320x256xbf16> to vector<320x256xbf16>
    %cst_58 = arith.constant dense<0.000000e+00> : vector<64x256xf32>
    %110 = tpu.matmul %107, %109, %cst_58 {dimension_numbers = #tpu.dot_dimension_numbers<[1], [0], [0], [1], [0, 0, 1, 1], [], []>} : vector<64x320xbf16>, vector<320x256xbf16>, vector<64x256xf32> -> vector<64x256xf32>
    %c8_59 = arith.constant 8 : index
    %c0_60 = arith.constant 0 : index
    %111 = vector.load %arg13[%c8_59, %c0_60] : memref<80x320xf32, #tpu.memory_space<vmem>>, vector<64x320xf32>
    %112 = arith.truncf %111 : vector<64x320xf32> to vector<64x320xbf16>
    %c1_61 = arith.constant 1 : index
    %c0_62 = arith.constant 0 : index
    %c0_63 = arith.constant 0 : index
    %113 = vector.load %arg4[%c1_61, %c0_62, %c0_63] : memref<3x320x256xbf16, #tpu.memory_space<vmem>>, vector<1x320x256xbf16>
    %114 = vector.shape_cast %113 : vector<1x320x256xbf16> to vector<320x256xbf16>
    %cst_64 = arith.constant dense<0.000000e+00> : vector<64x256xf32>
    %115 = tpu.matmul %112, %114, %cst_64 {dimension_numbers = #tpu.dot_dimension_numbers<[1], [0], [0], [1], [0, 0, 1, 1], [], []>} : vector<64x320xbf16>, vector<320x256xbf16>, vector<64x256xf32> -> vector<64x256xf32>
    %116 = arith.addf %110, %115 : vector<64x256xf32>
    %c16_65 = arith.constant 16 : index
    %c0_66 = arith.constant 0 : index
    %117 = vector.load %arg13[%c16_65, %c0_66] : memref<80x320xf32, #tpu.memory_space<vmem>>, vector<64x320xf32>
    %118 = arith.truncf %117 : vector<64x320xf32> to vector<64x320xbf16>
    %c2_67 = arith.constant 2 : index
    %c0_68 = arith.constant 0 : index
    %c0_69 = arith.constant 0 : index
    %119 = vector.load %arg4[%c2_67, %c0_68, %c0_69] : memref<3x320x256xbf16, #tpu.memory_space<vmem>>, vector<1x320x256xbf16>
    %120 = vector.shape_cast %119 : vector<1x320x256xbf16> to vector<320x256xbf16>
    %cst_70 = arith.constant dense<0.000000e+00> : vector<64x256xf32>
    %121 = tpu.matmul %118, %120, %cst_70 {dimension_numbers = #tpu.dot_dimension_numbers<[1], [0], [0], [1], [0, 0, 1, 1], [], []>} : vector<64x320xbf16>, vector<320x256xbf16>, vector<64x256xf32> -> vector<64x256xf32>
    %122 = arith.addf %116, %121 : vector<64x256xf32>
    %c0_71 = arith.constant 0 : index
    %c0_72 = arith.constant 0 : index
    %123 = vector.load %arg5[%c0_71, %c0_72] : memref<1x256xf32, #tpu.memory_space<vmem>>, vector<1x256xf32>
    %124 = vector.broadcast %123 : vector<1x256xf32> to vector<64x256xf32>
    %125 = arith.addf %122, %124 : vector<64x256xf32>
    %126 = vector.extract_strided_slice %125 {offsets = [0, 0], sizes = [64, 128], strides = [1, 1]} : vector<64x256xf32> to vector<64x128xf32>
    %127 = vector.extract_strided_slice %125 {offsets = [0, 128], sizes = [64, 128], strides = [1, 1]} : vector<64x256xf32> to vector<64x128xf32>
    %128 = arith.maximumf %126, %127 : vector<64x128xf32>
    %cst_73 = arith.constant 0.000000e+00 : f32
    %129 = vector.broadcast %cst_73 : f32 to vector<8x192xf32>
    %c0_74 = arith.constant 0 : index
    %c0_75 = arith.constant 0 : index
    %130 = vector.load %arg14[%c0_74, %c0_75] : memref<48x192xf32, #tpu.memory_space<vmem>>, vector<8x192xf32>
    tpu.vector_store %arg14[%c0_74, %c0_75], %129 {strides = array<i32>} : memref<48x192xf32, #tpu.memory_space<vmem>>, vector<8x192xf32>,
    %cst_76 = arith.constant 0.000000e+00 : f32
    %131 = vector.broadcast %cst_76 : f32 to vector<8x192xf32>
    %c40_77 = arith.constant 40 : index
    %c0_78 = arith.constant 0 : index
    %132 = vector.load %arg14[%c40_77, %c0_78] : memref<48x192xf32, #tpu.memory_space<vmem>>, vector<8x192xf32>
    tpu.vector_store %arg14[%c40_77, %c0_78], %131 {strides = array<i32>} : memref<48x192xf32, #tpu.memory_space<vmem>>, vector<8x192xf32>,
    %cst_79 = arith.constant 0.000000e+00 : f32
    %133 = vector.broadcast %cst_79 : f32 to vector<48x32xf32>
    %c0_80 = arith.constant 0 : index
    %c0_81 = arith.constant 0 : index
    %134 = vector.load %arg14[%c0_80, %c0_81] : memref<48x192xf32, #tpu.memory_space<vmem>>, vector<48x32xf32>
    tpu.vector_store %arg14[%c0_80, %c0_81], %133 {strides = array<i32>} : memref<48x192xf32, #tpu.memory_space<vmem>>, vector<48x32xf32>,
    %cst_82 = arith.constant 0.000000e+00 : f32
    %135 = vector.broadcast %cst_82 : f32 to vector<48x32xf32>
    %c0_83 = arith.constant 0 : index
    %c160 = arith.constant 160 : index
    %136 = vector.load %arg14[%c0_83, %c160] : memref<48x192xf32, #tpu.memory_space<vmem>>, vector<48x32xf32>
    tpu.vector_store %arg14[%c0_83, %c160], %135 {strides = array<i32>} : memref<48x192xf32, #tpu.memory_space<vmem>>, vector<48x32xf32>,
    %137 = vector.extract_strided_slice %128 {offsets = [0, 0], sizes = [8, 128], strides = [1, 1]} : vector<64x128xf32> to vector<8x128xf32>
    %138 = vector.extract_strided_slice %128 {offsets = [8, 0], sizes = [8, 128], strides = [1, 1]} : vector<64x128xf32> to vector<8x128xf32>
    %139 = arith.maximumf %137, %138 : vector<8x128xf32>
    %cst_84 = arith.constant 0.000000e+00 : f32
    %140 = vector.broadcast %cst_84 : f32 to vector<8x128xf32>
    %141 = arith.cmpf ogt, %139, %140 : vector<8x128xf32>
    %cst_85 = arith.constant 0.00999999977 : f32
    %142 = vector.broadcast %cst_85 : f32 to vector<8x128xf32>
    %143 = arith.mulf %142, %139 : vector<8x128xf32>
    %144 = arith.select %141, %139, %143 : vector<8x128xi1>, vector<8x128xf32>
    %c8_86 = arith.constant 8 : index
    %c32_87 = arith.constant 32 : index
    %145 = vector.load %arg14[%c8_86, %c32_87] : memref<48x192xf32, #tpu.memory_space<vmem>>, vector<8x128xf32>
    tpu.vector_store %arg14[%c8_86, %c32_87], %144 {strides = array<i32>} : memref<48x192xf32, #tpu.memory_space<vmem>>, vector<8x128xf32>,
    %146 = vector.extract_strided_slice %128 {offsets = [16, 0], sizes = [8, 128], strides = [1, 1]} : vector<64x128xf32> to vector<8x128xf32>
    %147 = vector.extract_strided_slice %128 {offsets = [24, 0], sizes = [8, 128], strides = [1, 1]} : vector<64x128xf32> to vector<8x128xf32>
    %148 = arith.maximumf %146, %147 : vector<8x128xf32>
    %cst_88 = arith.constant 0.000000e+00 : f32
    %149 = vector.broadcast %cst_88 : f32 to vector<8x128xf32>
    %150 = arith.cmpf ogt, %148, %149 : vector<8x128xf32>
    %cst_89 = arith.constant 0.00999999977 : f32
    %151 = vector.broadcast %cst_89 : f32 to vector<8x128xf32>
    %152 = arith.mulf %151, %148 : vector<8x128xf32>
    %153 = arith.select %150, %148, %152 : vector<8x128xi1>, vector<8x128xf32>
    %c16_90 = arith.constant 16 : index
    %c32_91 = arith.constant 32 : index
    %154 = vector.load %arg14[%c16_90, %c32_91] : memref<48x192xf32, #tpu.memory_space<vmem>>, vector<8x128xf32>
    tpu.vector_store %arg14[%c16_90, %c32_91], %153 {strides = array<i32>} : memref<48x192xf32, #tpu.memory_space<vmem>>, vector<8x128xf32>,
    %155 = vector.extract_strided_slice %128 {offsets = [32, 0], sizes = [8, 128], strides = [1, 1]} : vector<64x128xf32> to vector<8x128xf32>
    %156 = vector.extract_strided_slice %128 {offsets = [40, 0], sizes = [8, 128], strides = [1, 1]} : vector<64x128xf32> to vector<8x128xf32>
    %157 = arith.maximumf %155, %156 : vector<8x128xf32>
    %cst_92 = arith.constant 0.000000e+00 : f32
    %158 = vector.broadcast %cst_92 : f32 to vector<8x128xf32>
    %159 = arith.cmpf ogt, %157, %158 : vector<8x128xf32>
    %cst_93 = arith.constant 0.00999999977 : f32
    %160 = vector.broadcast %cst_93 : f32 to vector<8x128xf32>
    %161 = arith.mulf %160, %157 : vector<8x128xf32>
    %162 = arith.select %159, %157, %161 : vector<8x128xi1>, vector<8x128xf32>
    %c24_94 = arith.constant 24 : index
    %c32_95 = arith.constant 32 : index
    %163 = vector.load %arg14[%c24_94, %c32_95] : memref<48x192xf32, #tpu.memory_space<vmem>>, vector<8x128xf32>
    tpu.vector_store %arg14[%c24_94, %c32_95], %162 {strides = array<i32>} : memref<48x192xf32, #tpu.memory_space<vmem>>, vector<8x128xf32>,
    %164 = vector.extract_strided_slice %128 {offsets = [48, 0], sizes = [8, 128], strides = [1, 1]} : vector<64x128xf32> to vector<8x128xf32>
    %165 = vector.extract_strided_slice %128 {offsets = [56, 0], sizes = [8, 128], strides = [1, 1]} : vector<64x128xf32> to vector<8x128xf32>
    %166 = arith.maximumf %164, %165 : vector<8x128xf32>
    %cst_96 = arith.constant 0.000000e+00 : f32
    %167 = vector.broadcast %cst_96 : f32 to vector<8x128xf32>
    %168 = arith.cmpf ogt, %166, %167 : vector<8x128xf32>
    %cst_97 = arith.constant 0.00999999977 : f32
    %169 = vector.broadcast %cst_97 : f32 to vector<8x128xf32>
    %170 = arith.mulf %169, %166 : vector<8x128xf32>
    %171 = arith.select %168, %166, %170 : vector<8x128xi1>, vector<8x128xf32>
    %c32_98 = arith.constant 32 : index
    %c32_99 = arith.constant 32 : index
    %172 = vector.load %arg14[%c32_98, %c32_99] : memref<48x192xf32, #tpu.memory_space<vmem>>, vector<8x128xf32>
    tpu.vector_store %arg14[%c32_98, %c32_99], %171 {strides = array<i32>} : memref<48x192xf32, #tpu.memory_space<vmem>>, vector<8x128xf32>,
    %c0_100 = arith.constant 0 : index
    %c0_101 = arith.constant 0 : index
    %173 = vector.load %arg14[%c0_100, %c0_101] : memref<48x192xf32, #tpu.memory_space<vmem>>, vector<32x192xf32>
    %174 = arith.truncf %173 : vector<32x192xf32> to vector<32x192xbf16>
    %c0_102 = arith.constant 0 : index
    %c0_103 = arith.constant 0 : index
    %c0_104 = arith.constant 0 : index
    %175 = vector.load %arg6[%c0_102, %c0_103, %c0_104] : memref<3x192x256xbf16, #tpu.memory_space<vmem>>, vector<1x192x256xbf16>
    %176 = vector.shape_cast %175 : vector<1x192x256xbf16> to vector<192x256xbf16>
    %cst_105 = arith.constant dense<0.000000e+00> : vector<32x256xf32>
    %177 = tpu.matmul %174, %176, %cst_105 {dimension_numbers = #tpu.dot_dimension_numbers<[1], [0], [0], [1], [0, 0, 1, 1], [], []>} : vector<32x192xbf16>, vector<192x256xbf16>, vector<32x256xf32> -> vector<32x256xf32>
    %c8_106 = arith.constant 8 : index
    %c0_107 = arith.constant 0 : index
    %178 = vector.load %arg14[%c8_106, %c0_107] : memref<48x192xf32, #tpu.memory_space<vmem>>, vector<32x192xf32>
    %179 = arith.truncf %178 : vector<32x192xf32> to vector<32x192xbf16>
    %c1_108 = arith.constant 1 : index
    %c0_109 = arith.constant 0 : index
    %c0_110 = arith.constant 0 : index
    %180 = vector.load %arg6[%c1_108, %c0_109, %c0_110] : memref<3x192x256xbf16, #tpu.memory_space<vmem>>, vector<1x192x256xbf16>
    %181 = vector.shape_cast %180 : vector<1x192x256xbf16> to vector<192x256xbf16>
    %cst_111 = arith.constant dense<0.000000e+00> : vector<32x256xf32>
    %182 = tpu.matmul %179, %181, %cst_111 {dimension_numbers = #tpu.dot_dimension_numbers<[1], [0], [0], [1], [0, 0, 1, 1], [], []>} : vector<32x192xbf16>, vector<192x256xbf16>, vector<32x256xf32> -> vector<32x256xf32>
    %183 = arith.addf %177, %182 : vector<32x256xf32>
    %c16_112 = arith.constant 16 : index
    %c0_113 = arith.constant 0 : index
    %184 = vector.load %arg14[%c16_112, %c0_113] : memref<48x192xf32, #tpu.memory_space<vmem>>, vector<32x192xf32>
    %185 = arith.truncf %184 : vector<32x192xf32> to vector<32x192xbf16>
    %c2_114 = arith.constant 2 : index
    %c0_115 = arith.constant 0 : index
    %c0_116 = arith.constant 0 : index
    %186 = vector.load %arg6[%c2_114, %c0_115, %c0_116] : memref<3x192x256xbf16, #tpu.memory_space<vmem>>, vector<1x192x256xbf16>
    %187 = vector.shape_cast %186 : vector<1x192x256xbf16> to vector<192x256xbf16>
    %cst_117 = arith.constant dense<0.000000e+00> : vector<32x256xf32>
    %188 = tpu.matmul %185, %187, %cst_117 {dimension_numbers = #tpu.dot_dimension_numbers<[1], [0], [0], [1], [0, 0, 1, 1], [], []>} : vector<32x192xbf16>, vector<192x256xbf16>, vector<32x256xf32> -> vector<32x256xf32>
    %189 = arith.addf %183, %188 : vector<32x256xf32>
    %c0_118 = arith.constant 0 : index
    %c0_119 = arith.constant 0 : index
    %190 = vector.load %arg7[%c0_118, %c0_119] : memref<1x256xf32, #tpu.memory_space<vmem>>, vector<1x256xf32>
    %191 = vector.broadcast %190 : vector<1x256xf32> to vector<32x256xf32>
    %192 = arith.addf %189, %191 : vector<32x256xf32>
    %193 = vector.extract_strided_slice %192 {offsets = [0, 0], sizes = [32, 192], strides = [1, 1]} : vector<32x256xf32> to vector<32x192xf32>
    %194 = vector.extract_strided_slice %192 {offsets = [0, 64], sizes = [32, 192], strides = [1, 1]} : vector<32x256xf32> to vector<32x192xf32>
    %195 = arith.maximumf %193, %194 : vector<32x192xf32>
    %196 = vector.extract_strided_slice %195 {offsets = [0, 0], sizes = [8, 192], strides = [1, 1]} : vector<32x192xf32> to vector<8x192xf32>
    %197 = vector.extract_strided_slice %195 {offsets = [8, 0], sizes = [8, 192], strides = [1, 1]} : vector<32x192xf32> to vector<8x192xf32>
    %198 = arith.maximumf %196, %197 : vector<8x192xf32>
    %cst_120 = arith.constant 0.000000e+00 : f32
    %199 = vector.broadcast %cst_120 : f32 to vector<8x192xf32>
    %200 = arith.cmpf ogt, %198, %199 : vector<8x192xf32>
    %cst_121 = arith.constant 0.00999999977 : f32
    %201 = vector.broadcast %cst_121 : f32 to vector<8x192xf32>
    %202 = arith.mulf %201, %198 : vector<8x192xf32>
    %203 = arith.select %200, %198, %202 : vector<8x192xi1>, vector<8x192xf32>
    %204 = arith.truncf %203 : vector<8x192xf32> to vector<8x192xbf16>
    %c0_122 = arith.constant 0 : index
    %c0_123 = arith.constant 0 : index
    %205 = vector.load %arg8[%c0_122, %c0_123] : memref<576x256xbf16, #tpu.memory_space<vmem>>, vector<192x256xbf16>
    %cst_124 = arith.constant dense<0.000000e+00> : vector<8x256xf32>
    %206 = tpu.matmul %204, %205, %cst_124 {dimension_numbers = #tpu.dot_dimension_numbers<[1], [0], [0], [1], [0, 0, 1, 1], [], []>} : vector<8x192xbf16>, vector<192x256xbf16>, vector<8x256xf32> -> vector<8x256xf32>
    %207 = vector.extract_strided_slice %195 {offsets = [8, 0], sizes = [8, 192], strides = [1, 1]} : vector<32x192xf32> to vector<8x192xf32>
    %208 = vector.extract_strided_slice %195 {offsets = [16, 0], sizes = [8, 192], strides = [1, 1]} : vector<32x192xf32> to vector<8x192xf32>
    %209 = arith.maximumf %207, %208 : vector<8x192xf32>
    %cst_125 = arith.constant 0.000000e+00 : f32
    %210 = vector.broadcast %cst_125 : f32 to vector<8x192xf32>
    %211 = arith.cmpf ogt, %209, %210 : vector<8x192xf32>
    %cst_126 = arith.constant 0.00999999977 : f32
    %212 = vector.broadcast %cst_126 : f32 to vector<8x192xf32>
    %213 = arith.mulf %212, %209 : vector<8x192xf32>
    %214 = arith.select %211, %209, %213 : vector<8x192xi1>, vector<8x192xf32>
    %215 = arith.truncf %214 : vector<8x192xf32> to vector<8x192xbf16>
    %c192 = arith.constant 192 : index
    %c0_127 = arith.constant 0 : index
    %216 = vector.load %arg8[%c192, %c0_127] : memref<576x256xbf16, #tpu.memory_space<vmem>>, vector<192x256xbf16>
    %cst_128 = arith.constant dense<0.000000e+00> : vector<8x256xf32>
    %217 = tpu.matmul %215, %216, %cst_128 {dimension_numbers = #tpu.dot_dimension_numbers<[1], [0], [0], [1], [0, 0, 1, 1], [], []>} : vector<8x192xbf16>, vector<192x256xbf16>, vector<8x256xf32> -> vector<8x256xf32>
    %218 = arith.addf %206, %217 : vector<8x256xf32>
    %219 = vector.extract_strided_slice %195 {offsets = [16, 0], sizes = [8, 192], strides = [1, 1]} : vector<32x192xf32> to vector<8x192xf32>
    %220 = vector.extract_strided_slice %195 {offsets = [24, 0], sizes = [8, 192], strides = [1, 1]} : vector<32x192xf32> to vector<8x192xf32>
    %221 = arith.maximumf %219, %220 : vector<8x192xf32>
    %cst_129 = arith.constant 0.000000e+00 : f32
    %222 = vector.broadcast %cst_129 : f32 to vector<8x192xf32>
    %223 = arith.cmpf ogt, %221, %222 : vector<8x192xf32>
    %cst_130 = arith.constant 0.00999999977 : f32
    %224 = vector.broadcast %cst_130 : f32 to vector<8x192xf32>
    %225 = arith.mulf %224, %221 : vector<8x192xf32>
    %226 = arith.select %223, %221, %225 : vector<8x192xi1>, vector<8x192xf32>
    %227 = arith.truncf %226 : vector<8x192xf32> to vector<8x192xbf16>
    %c384 = arith.constant 384 : index
    %c0_131 = arith.constant 0 : index
    %228 = vector.load %arg8[%c384, %c0_131] : memref<576x256xbf16, #tpu.memory_space<vmem>>, vector<192x256xbf16>
    %cst_132 = arith.constant dense<0.000000e+00> : vector<8x256xf32>
    %229 = tpu.matmul %227, %228, %cst_132 {dimension_numbers = #tpu.dot_dimension_numbers<[1], [0], [0], [1], [0, 0, 1, 1], [], []>} : vector<8x192xbf16>, vector<192x256xbf16>, vector<8x256xf32> -> vector<8x256xf32>
    %230 = arith.addf %218, %229 : vector<8x256xf32>
    %c0_133 = arith.constant 0 : index
    %c0_134 = arith.constant 0 : index
    %231 = vector.load %arg9[%c0_133, %c0_134] : memref<1x256xf32, #tpu.memory_space<vmem>>, vector<1x256xf32>
    %232 = vector.broadcast %231 : vector<1x256xf32> to vector<8x256xf32>
    %233 = arith.addf %230, %232 : vector<8x256xf32>
    %cst_135 = arith.constant 0.000000e+00 : f32
    %234 = vector.broadcast %cst_135 : f32 to vector<8x256xf32>
    %235 = arith.cmpf ogt, %233, %234 : vector<8x256xf32>
    %cst_136 = arith.constant 0.00999999977 : f32
    %236 = vector.broadcast %cst_136 : f32 to vector<8x256xf32>
    %237 = arith.mulf %236, %233 : vector<8x256xf32>
    %238 = arith.select %235, %233, %237 : vector<8x256xi1>, vector<8x256xf32>
    %239 = arith.truncf %238 : vector<8x256xf32> to vector<8x256xbf16>
    %c0_137 = arith.constant 0 : index
    %c0_138 = arith.constant 0 : index
    %240 = vector.load %arg10[%c0_137, %c0_138] : memref<256x128xbf16, #tpu.memory_space<vmem>>, vector<256x128xbf16>
    %cst_139 = arith.constant dense<0.000000e+00> : vector<8x128xf32>
    %241 = tpu.matmul %239, %240, %cst_139 {dimension_numbers = #tpu.dot_dimension_numbers<[1], [0], [0], [1], [0, 0, 1, 1], [], []>} : vector<8x256xbf16>, vector<256x128xbf16>, vector<8x128xf32> -> vector<8x128xf32>
    %c0_140 = arith.constant 0 : index
    %c0_141 = arith.constant 0 : index
    %242 = vector.load %arg11[%c0_140, %c0_141] : memref<1x128xf32, #tpu.memory_space<vmem>>, vector<1x128xf32>
    %243 = vector.broadcast %242 : vector<1x128xf32> to vector<8x128xf32>
    %244 = arith.addf %241, %243 : vector<8x128xf32>
    %cst_142 = arith.constant dense<0xFF800000> : vector<8xf32>
    %245 = vector.multi_reduction <maximumf>, %244, %cst_142 [1] : vector<8x128xf32> to vector<8xf32>
    %246 = vector.shape_cast %245 : vector<8xf32> to vector<8x1xf32>
    %247 = vector.broadcast %246 : vector<8x1xf32> to vector<8x128xf32>
    %248 = arith.subf %244, %247 : vector<8x128xf32>
    %249 = math.exp %248 : vector<8x128xf32>
    %cst_143 = arith.constant dense<0.000000e+00> : vector<8xf32>
    %250 = vector.multi_reduction <add>, %249, %cst_143 [1] : vector<8x128xf32> to vector<8xf32>
    %251 = vector.shape_cast %250 : vector<8xf32> to vector<8x1xf32>
    %252 = math.log %251 : vector<8x1xf32>
    %253 = arith.addf %252, %246 : vector<8x1xf32>
    %254 = vector.broadcast %253 : vector<8x1xf32> to vector<8x128xf32>
    %255 = arith.subf %244, %254 : vector<8x128xf32>
    %c0_144 = arith.constant 0 : index
    %c0_145 = arith.constant 0 : index
    %256 = vector.load %arg12[%c0_144, %c0_145] : memref<8x128xf32, #tpu.memory_space<vmem>>, vector<8x128xf32>
    tpu.vector_store %arg12[%c0_144, %c0_145], %255 {strides = array<i32>} : memref<8x128xf32, #tpu.memory_space<vmem>>, vector<8x128xf32>,
    return
  }
  func.func @transform_0(%arg0: i32) -> (i32, i32, i32) {
    %c0_i32 = arith.constant 0 : i32
    %c0_i32_0 = arith.constant 0 : i32
    %c0_i32_1 = arith.constant 0 : i32
    return %arg0, %c0_i32, %c0_i32_0 : i32, i32, i32
  }
  func.func @transform_1(%arg0: i32) -> (i32, i32, i32) {
    %c0_i32 = arith.constant 0 : i32
    %c0_i32_0 = arith.constant 0 : i32
    %c0_i32_1 = arith.constant 0 : i32
    %c0_i32_2 = arith.constant 0 : i32
    return %c0_i32, %c0_i32_0, %c0_i32_1 : i32, i32, i32
  }
  func.func @transform_2(%arg0: i32) -> (i32, i32) {
    %c0_i32 = arith.constant 0 : i32
    %c0_i32_0 = arith.constant 0 : i32
    %c0_i32_1 = arith.constant 0 : i32
    return %c0_i32, %c0_i32_0 : i32, i32
  }
  func.func @transform_3(%arg0: i32) -> (i32, i32, i32) {
    %c0_i32 = arith.constant 0 : i32
    %c0_i32_0 = arith.constant 0 : i32
    %c0_i32_1 = arith.constant 0 : i32
    %c0_i32_2 = arith.constant 0 : i32
    return %c0_i32, %c0_i32_0, %c0_i32_1 : i32, i32, i32
  }
  func.func @transform_4(%arg0: i32) -> (i32, i32) {
    %c0_i32 = arith.constant 0 : i32
    %c0_i32_0 = arith.constant 0 : i32
    %c0_i32_1 = arith.constant 0 : i32
    return %c0_i32, %c0_i32_0 : i32, i32
  }
  func.func @transform_5(%arg0: i32) -> (i32, i32, i32) {
    %c0_i32 = arith.constant 0 : i32
    %c0_i32_0 = arith.constant 0 : i32
    %c0_i32_1 = arith.constant 0 : i32
    %c0_i32_2 = arith.constant 0 : i32
    return %c0_i32, %c0_i32_0, %c0_i32_1 : i32, i32, i32
  }
  func.func @transform_6(%arg0: i32) -> (i32, i32) {
    %c0_i32 = arith.constant 0 : i32
    %c0_i32_0 = arith.constant 0 : i32
    %c0_i32_1 = arith.constant 0 : i32
    return %c0_i32, %c0_i32_0 : i32, i32
  }
  func.func @transform_7(%arg0: i32) -> (i32, i32) {
    %c0_i32 = arith.constant 0 : i32
    %c0_i32_0 = arith.constant 0 : i32
    %c0_i32_1 = arith.constant 0 : i32
    return %c0_i32, %c0_i32_0 : i32, i32
  }
  func.func @transform_8(%arg0: i32) -> (i32, i32) {
    %c0_i32 = arith.constant 0 : i32
    %c0_i32_0 = arith.constant 0 : i32
    %c0_i32_1 = arith.constant 0 : i32
    return %c0_i32, %c0_i32_0 : i32, i32
  }
  func.func @transform_9(%arg0: i32) -> (i32, i32) {
    %c0_i32 = arith.constant 0 : i32
    %c0_i32_0 = arith.constant 0 : i32
    %c0_i32_1 = arith.constant 0 : i32
    return %c0_i32, %c0_i32_0 : i32, i32
  }
  func.func @transform_10(%arg0: i32) -> (i32, i32) {
    %c0_i32 = arith.constant 0 : i32
    %c0_i32_0 = arith.constant 0 : i32
    %c0_i32_1 = arith.constant 0 : i32
    return %c0_i32, %c0_i32_0 : i32, i32
  }
  func.func @transform_11(%arg0: i32) -> (i32, i32) {
    %c0_i32 = arith.constant 0 : i32
    %c0_i32_0 = arith.constant 0 : i32
    return %arg0, %c0_i32 : i32, i32
  }
}

</mosaic_0001>

<llo_original>
// kernel: net_forward.1
$region0: #{net_forward.1}
  #allocation0 [shape = 'u32[]', space=smem, size = 0x4, offset = 0x4, fixed_abs, tag = 'smem constant byte address 0x4 - core index']
  #allocation1 [shape = 'u32[144,128]{1,0:T(1,128)}', space=vmem, size = 0x12000, scoped, tag = 'internal scratch']
  #allocation2 [shape = 'f32[80,320]{1,0:T(8,128)}', space=vmem, size = 0x1e000, scoped, tag = 'scratch operand']
  #allocation3 [shape = 'f32[48,192]{1,0:T(8,128)}', space=vmem, size = 0xc000, scoped, tag = 'scratch operand']
  %s0 = inlined_call_operand.vmem [shape: f32[1,144,32], index: 0, kind: input, shape index: {}]
  %s1 = inlined_call_operand.hbm [shape: bf16[3,32,512], index: 1, kind: input, shape index: {}]
  %s2 = inlined_call_operand.vmem [shape: f32[1,512], index: 2, kind: input, shape index: {}]
  %s3 = inlined_call_operand.hbm [shape: bf16[3,320,256], index: 3, kind: input, shape index: {}]
  %s4 = inlined_call_operand.vmem [shape: f32[1,256], index: 4, kind: input, shape index: {}]
  %s5 = inlined_call_operand.vmem [shape: bf16[3,192,256], index: 5, kind: input, shape index: {}]
  %s6 = inlined_call_operand.vmem [shape: f32[1,256], index: 6, kind: input, shape index: {}]
  %s7 = inlined_call_operand.hbm [shape: bf16[576,256], index: 7, kind: input, shape index: {}]
  %s8 = inlined_call_operand.vmem [shape: f32[1,256], index: 8, kind: input, shape index: {}]
  %s9 = inlined_call_operand.hbm [shape: bf16[256,128], index: 9, kind: input, shape index: {}]
  %s10 = inlined_call_operand.vmem [shape: f32[1,128], index: 10, kind: input, shape index: {}]
  %s11 = inlined_call_operand.vmem [shape: f32[8,128], index: 11, kind: output, shape index: {}]
  %s12 = sld [smem:[#allocation0]]
  $region70: #{net_forward.1} parent=0
    _
  %s14 = ssub.s32 1, %s12
  %s15 = scalar_select 0, %s14, %s12
  $region1: #{net_forward.1} parent=0
    #allocation4 [shape = 'u8[98304]{0}', space=vmem, size = 0x18000, scoped, tag = 'input window, operand 1, single buffered']
    #allocation5 [shape = 's32[1]{0}', space=sflag, size = 0x4, scoped, tag = 'scoped memory for net_forward.1']
    #allocation6 [shape = 'u8[491520]{0}', space=vmem, size = 0x78000, scoped, tag = 'input window, operand 3, single buffered']
    #allocation7 [shape = 's32[1]{0}', space=sflag, size = 0x4, scoped, tag = 'scoped memory for net_forward.1']
    #allocation8 [shape = 'u8[294912]{0}', space=vmem, size = 0x48000, scoped, tag = 'input window, operand 7, single buffered']
    #allocation9 [shape = 'u8[65536]{0}', space=vmem, size = 0x10000, scoped, tag = 'input window, operand 9, single buffered']
    #allocation10 [shape = 's32[1]{0}', space=sflag, size = 0x4, scoped, tag = 'scoped memory for net_forward.1']
    %16 = vsyncpa [#allocation5], 0
    %17 = vsyncpa [#allocation7], 0
    %18 = vsyncpa [#allocation10], 0
    // Predicated region
    $region2: #{net_forward.1} parent=1 // pred_check
      _
    $region3: #{net_forward.1} parent=1 // pred_check_branch
      %20 = sbr.rel (0) target = $region5
    $region4: #{net_forward.1} parent=1 // pred_region
      _
    $region5: #{net_forward.1} parent=1 // pred_fallthru
      _
    // Predicated region
    $region6: #{net_forward.1} parent=1 // pred_check
      _
    $region7: #{net_forward.1} parent=1 // pred_check_branch
      %22 = sbr.rel (0) target = $region9
    $region8: #{net_forward.1} parent=1 // pred_region
      %s24 = ssub.s32 3072, 3072
      %25 = vsyncadd [#allocation5], %s24
      %s26 = sshll.u32 [#allocation4], 4
      %s27 = int_to_ptr.vmem [resolvable:$true] %s26
      %32 = dma.hbm_to_vmem [thread:$0]  %s1, 3072, %s27, [#allocation5], 256, 256, 16
    $region9: #{net_forward.1} parent=1 // pred_fallthru
      _
    // Predicated region
    $region10: #{net_forward.1} parent=1 // pred_check
      _
    $region11: #{net_forward.1} parent=1 // pred_check_branch
      %34 = sbr.rel (0) target = $region13
    $region12: #{net_forward.1} parent=1 // pred_region
      _
    $region13: #{net_forward.1} parent=1 // pred_fallthru
      _
    // Predicated region
    $region14: #{net_forward.1} parent=1 // pred_check
      _
    $region15: #{net_forward.1} parent=1 // pred_check_branch
      %36 = sbr.rel (0) target = $region17
    $region16: #{net_forward.1} parent=1 // pred_region
      %s38 = ssub.s32 15360, 15360
      %39 = vsyncadd [#allocation7], %s38
      %s40 = sshll.u32 [#allocation6], 4
      %s41 = int_to_ptr.vmem [resolvable:$true] %s40
      %46 = dma.hbm_to_vmem [thread:$0]  %s3, 15360, %s41, [#allocation7], 128, 128, 8
    $region17: #{net_forward.1} parent=1 // pred_fallthru
      _
    // Predicated region
    $region18: #{net_forward.1} parent=1 // pred_check
      _
    $region19: #{net_forward.1} parent=1 // pred_check_branch
      %48 = sbr.rel (0) target = $region21
    $region20: #{net_forward.1} parent=1 // pred_region
      _
    $region21: #{net_forward.1} parent=1 // pred_fallthru
      _
    // Predicated region
    $region22: #{net_forward.1} parent=1 // pred_check
      _
    $region23: #{net_forward.1} parent=1 // pred_check_branch
      %50 = sbr.rel (0) target = $region25
    $region24: #{net_forward.1} parent=1 // pred_region
      _
    $region25: #{net_forward.1} parent=1 // pred_fallthru
      _
    // Predicated region
    $region26: #{net_forward.1} parent=1 // pred_check
      _
    $region27: #{net_forward.1} parent=1 // pred_check_branch
      %52 = sbr.rel (0) target = $region29
    $region28: #{net_forward.1} parent=1 // pred_region
      _
    $region29: #{net_forward.1} parent=1 // pred_fallthru
      _
    // Predicated region
    $region30: #{net_forward.1} parent=1 // pred_check
      _
    $region31: #{net_forward.1} parent=1 // pred_check_branch
      %54 = sbr.rel (0) target = $region33
    $region32: #{net_forward.1} parent=1 // pred_region
      %s56 = ssub.s32 9216, 9216
      %57 = vsyncadd [#allocation7], %s56
      %s58 = sshll.u32 [#allocation8], 4
      %s59 = int_to_ptr.vmem [resolvable:$true] %s58
      %64 = dma.hbm_to_vmem [thread:$0]  %s7, 9216, %s59, [#allocation7], 128, 128, 8
    $region33: #{net_forward.1} parent=1 // pred_fallthru
      _
    // Predicated region
    $region34: #{net_forward.1} parent=1 // pred_check
      _
    $region35: #{net_forward.1} parent=1 // pred_check_branch
      %66 = sbr.rel (0) target = $region37
    $region36: #{net_forward.1} parent=1 // pred_region
      _
    $region37: #{net_forward.1} parent=1 // pred_fallthru
      _
    // Predicated region
    $region38: #{net_forward.1} parent=1 // pred_check
      _
    $region39: #{net_forward.1} parent=1 // pred_check_branch
      %68 = sbr.rel (0) target = $region41
    $region40: #{net_forward.1} parent=1 // pred_region
      %s70 = ssub.s32 2048, 2048
      %71 = vsyncadd [#allocation10], %s70
      %s72 = sshll.u32 [#allocation9], 4
      %s73 = int_to_ptr.vmem [resolvable:$true] %s72
      %78 = dma.hbm_to_vmem [thread:$0]  %s9, 2048, %s73, [#allocation10], 64, 64, 4
    $region41: #{net_forward.1} parent=1 // pred_fallthru
      _
    // Predicated region
    $region42: #{net_forward.1} parent=1 // pred_check
      _
    $region43: #{net_forward.1} parent=1 // pred_check_branch
      %80 = sbr.rel (0) target = $region45
    $region44: #{net_forward.1} parent=1 // pred_region
      _
    $region45: #{net_forward.1} parent=1 // pred_fallthru
      _
    // Predicated region
    $region46: #{net_forward.1} parent=1 // pred_check
      _
    $region47: #{net_forward.1} parent=1 // pred_check_branch
      %82 = sbr.rel (0) target = $region49
    $region48: #{net_forward.1} parent=1 // pred_region
      %83 = dma.done [#allocation5], 3072
    $region49: #{net_forward.1} parent=1 // pred_fallthru
      _
    // Predicated region
    $region50: #{net_forward.1} parent=1 // pred_check
      _
    $region51: #{net_forward.1} parent=1 // pred_check_branch
      %85 = sbr.rel (0) target = $region53
    $region52: #{net_forward.1} parent=1 // pred_region
      %86 = dma.done [#allocation7], 15360
    $region53: #{net_forward.1} parent=1 // pred_fallthru
      _
    // Predicated region
    $region54: #{net_forward.1} parent=1 // pred_check
      _
    $region55: #{net_forward.1} parent=1 // pred_check_branch
      %88 = sbr.rel (0) target = $region57
    $region56: #{net_forward.1} parent=1 // pred_region
      %89 = dma.done [#allocation7], 9216
    $region57: #{net_forward.1} parent=1 // pred_fallthru
      _
    // Predicated region
    $region58: #{net_forward.1} parent=1 // pred_check
      _
    $region59: #{net_forward.1} parent=1 // pred_check_branch
      %91 = sbr.rel (0) target = $region61
    $region60: #{net_forward.1} parent=1 // pred_region
      %92 = dma.done [#allocation10], 2048
    $region61: #{net_forward.1} parent=1 // pred_fallthru
      _
    %v94 = vld [vmem:[%s0] sm:$0xff]
    %v95 = vld [vmem:[%s0 + $0x8] sm:$0xff]
    %v96 = vld [vmem:[%s0 + $0x10] sm:$0xff]
    %v97 = vld [vmem:[%s0 + $0x18] sm:$0xff]
    %v98 = vld [vmem:[%s0 + $0x20] sm:$0xff]
    %v99 = vld [vmem:[%s0 + $0x28] sm:$0xff]
    %v100 = vld [vmem:[%s0 + $0x30] sm:$0xff]
    %v101 = vld [vmem:[%s0 + $0x38] sm:$0xff]
    %v102 = vld [vmem:[%s0 + $0x40] sm:$0xff]
    %v103 = vld [vmem:[%s0 + $0x48] sm:$0xff]
    %v104 = vld [vmem:[%s0 + $0x50] sm:$0xff]
    %v105 = vld [vmem:[%s0 + $0x58] sm:$0xff]
    %v106 = vld [vmem:[%s0 + $0x60] sm:$0xff]
    %v107 = vld [vmem:[%s0 + $0x68] sm:$0xff]
    %v108 = vld [vmem:[%s0 + $0x70] sm:$0xff]
    %v109 = vld [vmem:[%s0 + $0x78] sm:$0xff]
    %v110 = vpack.c.bf16 %v95, %v94
    %v111 = vpack.c.bf16 %v97, %v96
    %v112 = vpack.c.bf16 %v99, %v98
    %v113 = vpack.c.bf16 %v101, %v100
    %v114 = vpack.c.bf16 %v103, %v102
    %v115 = vpack.c.bf16 %v105, %v104
    %v116 = vpack.c.bf16 %v107, %v106
    %v117 = vpack.c.bf16 %v109, %v108
    %v118 = vld [vmem:[#allocation4] sm:$0xff]
    %v119 = vld [vmem:[#allocation4 + $0x8] sm:$0xff]
    %v120 = vld [vmem:[#allocation4 + $0x10] sm:$0xff]
    %v121 = vld [vmem:[#allocation4 + $0x18] sm:$0xff]
    %v122 = vld [vmem:[#allocation4 + $0x20] sm:$0xff]
    %v123 = vld [vmem:[#allocation4 + $0x28] sm:$0xff]
    %v124 = vld [vmem:[#allocation4 + $0x30] sm:$0xff]
    %v125 = vld [vmem:[#allocation4 + $0x38] sm:$0xff]
    %v126 = vld [vmem:[%s0 + $0x80] sm:$0xff]
    %v127 = vpack.c.bf16 %v96, %v95
    %v128 = vpack.c.bf16 %v98, %v97
    %v129 = vpack.c.bf16 %v100, %v99
    %v130 = vpack.c.bf16 %v102, %v101
    %v131 = vpack.c.bf16 %v104, %v103
    %v132 = vpack.c.bf16 %v106, %v105
    %v133 = vpack.c.bf16 %v108, %v107
    %v134 = vpack.c.bf16 %v126, %v109
    %s135 = scalar_lea.vmem [#allocation4], 64
    %v136 = vld [vmem:[%s135] sm:$0xff]
    %v137 = vld [vmem:[%s135 + $0x8] sm:$0xff]
    %v138 = vld [vmem:[%s135 + $0x10] sm:$0xff]
    %v139 = vld [vmem:[%s135 + $0x18] sm:$0xff]
    %v140 = vld [vmem:[%s135 + $0x20] sm:$0xff]
    %v141 = vld [vmem:[%s135 + $0x28] sm:$0xff]
    %v142 = vld [vmem:[%s135 + $0x30] sm:$0xff]
    %v143 = vld [vmem:[%s135 + $0x38] sm:$0xff]
    %v152 = vunpack.c.l.b16 %v136
    %v153 = vunpack.c.h.b16 %v136
    %v154 = vunpack.c.l.b16 %v137
    %v155 = vunpack.c.h.b16 %v137
    %v156 = vunpack.c.l.b16 %v138
    %v157 = vunpack.c.h.b16 %v138
    %v158 = vunpack.c.l.b16 %v139
    %v159 = vunpack.c.h.b16 %v139
    %v160 = vunpack.c.l.b16 %v140
    %v161 = vunpack.c.h.b16 %v140
    %v162 = vunpack.c.l.b16 %v141
    %v163 = vunpack.c.h.b16 %v141
    %v164 = vunpack.c.l.b16 %v142
    %v165 = vunpack.c.h.b16 %v142
    %v166 = vunpack.c.l.b16 %v143
    %v167 = vunpack.c.h.b16 %v143
    %v168 = vpack.c.b16 %v156, %v152
    %v169 = vpack.c.b16 %v157, %v153
    %v170 = vpack.c.b16 %v158, %v154
    %v171 = vpack.c.b16 %v159, %v155
    %v172 = vpack.c.b16 %v164, %v160
    %v173 = vpack.c.b16 %v165, %v161
    %v174 = vpack.c.b16 %v166, %v162
    %v175 = vpack.c.b16 %v167, %v163
    %vm184 = vcmask 261120
    %v186 = vsel %vm184, %v127, 0
    %v189 = vsel %vm184, %v128, 0
    %v192 = vsel %vm184, %v129, 0
    %v195 = vsel %vm184, %v130, 0
    %v198 = vsel %vm184, %v131, 0
    %v201 = vsel %vm184, %v132, 0
    %v204 = vsel %vm184, %v133, 0
    %v207 = vsel %vm184, %v134, 0
    %209 = vmatprep.subr.bf16.mxu0 %v169
    %210 = vmatpush1.bf16.msra.mxu0 %v168
    %211 = vmatprep.subr.bf16.mxu0 %v173
    %212 = vmatpush1.bf16.msra.mxu0 %v172
    %213 = vmatprep.subr.bf16.mxu0 0
    %214 = vmatpush1.bf16.msra.mxu0 0
    %215 = vmatprep.subr.bf16.mxu0 0
    %216 = vmatpush1.bf16.msra.mxu0 0
    %217 = vmatprep.subr.bf16.mxu0 0
    %218 = vmatpush1.bf16.msra.mxu0 0
    %219 = vmatprep.subr.bf16.mxu0 0
    %220 = vmatpush1.bf16.msra.mxu0 0
    %221 = vmatprep.subr.bf16.mxu0 0
    %222 = vmatpush1.bf16.msra.mxu0 0
    %223 = vmatprep.subr.bf16.mxu0 0
    %224 = vmatpush1.bf16.msra.mxu0 0
    %225 = vmatprep.subr.bf16.mxu0 0
    %226 = vmatpush1.bf16.msra.mxu0 0
    %227 = vmatprep.subr.bf16.mxu0 0
    %228 = vmatpush1.bf16.msra.mxu0 0
    %229 = vmatprep.subr.bf16.mxu0 0
    %230 = vmatpush1.bf16.msra.mxu0 0
    %231 = vmatprep.subr.bf16.mxu0 0
    %232 = vmatpush1.bf16.msra.mxu0 0
    %233 = vmatprep.subr.bf16.mxu0 0
    %234 = vmatpush1.bf16.msra.mxu0 0
    %235 = vmatprep.subr.bf16.mxu0 0
    %236 = vmatpush1.bf16.msra.mxu0 0
    %237 = vmatprep.subr.bf16.mxu0 0
    %238 = vmatpush1.bf16.msra.mxu0 0
    %239 = vmatprep.subr.bf16.mxu0 0
    %240 = vmatpush1.bf16.msra.mxu0 0
    %241 = vmatprep.mubr.bf16.mxu0 0
    %242 = vmatmul.mubr.bf16.gmra.mrb[0].mxu0 %v186
    %v243 = vpop.f32.mrb[0].mxu0
    %v244 = vadd.f32 0.0, %v243
    %v245 = vpop.f32.mrb[0].mxu0
    %v246 = vadd.f32 0.0, %v245
    %v247 = vpop.f32.mrb[0].mxu0
    %v248 = vadd.f32 0.0, %v247
    %v249 = vpop.f32.mrb[0].mxu0
    %v250 = vadd.f32 0.0, %v249
    %251 = vmatprep.mubr.bf16.mxu0 0
    %252 = vmatmul.mubr.bf16.gmra.mrb[0].mxu0 %v189
    %v253 = vpop.f32.mrb[0].mxu0
    %v254 = vadd.f32 0.0, %v253
    %v255 = vpop.f32.mrb[0].mxu0
    %v256 = vadd.f32 0.0, %v255
    %v257 = vpop.f32.mrb[0].mxu0
    %v258 = vadd.f32 0.0, %v257
    %v259 = vpop.f32.mrb[0].mxu0
    %v260 = vadd.f32 0.0, %v259
    %261 = vmatprep.mubr.bf16.mxu0 0
    %262 = vmatmul.mubr.bf16.gmra.mrb[0].mxu0 %v192
    %v263 = vpop.f32.mrb[0].mxu0
    %v264 = vadd.f32 0.0, %v263
    %v265 = vpop.f32.mrb[0].mxu0
    %v266 = vadd.f32 0.0, %v265
    %v267 = vpop.f32.mrb[0].mxu0
    %v268 = vadd.f32 0.0, %v267
    %v269 = vpop.f32.mrb[0].mxu0
    %v270 = vadd.f32 0.0, %v269
    %271 = vmatprep.mubr.bf16.mxu0 0
    %272 = vmatmul.mubr.bf16.gmra.mrb[0].mxu0 %v195
    %v273 = vpop.f32.mrb[0].mxu0
    %v274 = vadd.f32 0.0, %v273
    %v275 = vpop.f32.mrb[0].mxu0
    %v276 = vadd.f32 0.0, %v275
    %v277 = vpop.f32.mrb[0].mxu0
    %v278 = vadd.f32 0.0, %v277
    %v279 = vpop.f32.mrb[0].mxu0
    %v280 = vadd.f32 0.0, %v279
    %281 = vmatprep.mubr.bf16.mxu0 0
    %282 = vmatmul.mubr.bf16.gmra.mrb[0].mxu0 %v198
    %v283 = vpop.f32.mrb[0].mxu0
    %v284 = vadd.f32 0.0, %v283
    %v285 = vpop.f32.mrb[0].mxu0
    %v286 = vadd.f32 0.0, %v285
    %v287 = vpop.f32.mrb[0].mxu0
    %v288 = vadd.f32 0.0, %v287
    %v289 = vpop.f32.mrb[0].mxu0
    %v290 = vadd.f32 0.0, %v289
    %291 = vmatprep.mubr.bf16.mxu0 0
    %292 = vmatmul.mubr.bf16.gmra.mrb[0].mxu0 %v201
    %v293 = vpop.f32.mrb[0].mxu0
    %v294 = vadd.f32 0.0, %v293
    %v295 = vpop.f32.mrb[0].mxu0
    %v296 = vadd.f32 0.0, %v295
    %v297 = vpop.f32.mrb[0].mxu0
    %v298 = vadd.f32 0.0, %v297
    %v299 = vpop.f32.mrb[0].mxu0
    %v300 = vadd.f32 0.0, %v299
    %301 = vmatprep.mubr.bf16.mxu0 0
    %302 = vmatmul.mubr.bf16.gmra.mrb[0].mxu0 %v204
    %v303 = vpop.f32.mrb[0].mxu0
    %v304 = vadd.f32 0.0, %v303
    %v305 = vpop.f32.mrb[0].mxu0
    %v306 = vadd.f32 0.0, %v305
    %v307 = vpop.f32.mrb[0].mxu0
    %v308 = vadd.f32 0.0, %v307
    %v309 = vpop.f32.mrb[0].mxu0
    %v310 = vadd.f32 0.0, %v309
    %311 = vmatprep.mubr.bf16.mxu0 0
    %312 = vmatmul.mubr.bf16.gmra.mrb[0].mxu0 %v207
    %v313 = vpop.f32.mrb[0].mxu0
    %v314 = vadd.f32 0.0, %v313
    %v315 = vpop.f32.mrb[0].mxu0
    %v316 = vadd.f32 0.0, %v315
    %v317 = vpop.f32.mrb[0].mxu0
    %v318 = vadd.f32 0.0, %v317
    %v319 = vpop.f32.mrb[0].mxu0
    %v320 = vadd.f32 0.0, %v319
    %321 = vdwg.mxu0
    %322 = vmatprep.subr.bf16.mxu0 %v171
    %323 = vmatpush1.bf16.msra.mxu0 %v170
    %324 = vmatprep.subr.bf16.mxu0 %v175
    %325 = vmatpush1.bf16.msra.mxu0 %v174
    %326 = vmatprep.subr.bf16.mxu0 0
    %327 = vmatpush1.bf16.msra.mxu0 0
    %328 = vmatprep.subr.bf16.mxu0 0
    %329 = vmatpush1.bf16.msra.mxu0 0
    %330 = vmatprep.subr.bf16.mxu0 0
    %331 = vmatpush1.bf16.msra.mxu0 0
    %332 = vmatprep.subr.bf16.mxu0 0
    %333 = vmatpush1.bf16.msra.mxu0 0
    %334 = vmatprep.subr.bf16.mxu0 0
    %335 = vmatpush1.bf16.msra.mxu0 0
    %336 = vmatprep.subr.bf16.mxu0 0
    %337 = vmatpush1.bf16.msra.mxu0 0
    %338 = vmatprep.subr.bf16.mxu0 0
    %339 = vmatpush1.bf16.msra.mxu0 0
    %340 = vmatprep.subr.bf16.mxu0 0
    %341 = vmatpush1.bf16.msra.mxu0 0
    %342 = vmatprep.subr.bf16.mxu0 0
    %343 = vmatpush1.bf16.msra.mxu0 0
    %344 = vmatprep.subr.bf16.mxu0 0
    %345 = vmatpush1.bf16.msra.mxu0 0
    %346 = vmatprep.subr.bf16.mxu0 0
    %347 = vmatpush1.bf16.msra.mxu0 0
    %348 = vmatprep.subr.bf16.mxu0 0
    %349 = vmatpush1.bf16.msra.mxu0 0
    %350 = vmatprep.subr.bf16.mxu0 0
    %351 = vmatpush1.bf16.msra.mxu0 0
    %352 = vmatprep.subr.bf16.mxu0 0
    %353 = vmatpush1.bf16.msra.mxu0 0
    %354 = vmatprep.mubr.bf16.mxu0 0
    %355 = vmatmul.mubr.bf16.gmra.mrb[0].mxu0 %v186
    %v356 = vpop.f32.mrb[0].mxu0
    %v357 = vadd.f32 0.0, %v356
    %v358 = vpop.f32.mrb[0].mxu0
    %v359 = vadd.f32 0.0, %v358
    %v360 = vpop.f32.mrb[0].mxu0
    %v361 = vadd.f32 0.0, %v360
    %v362 = vpop.f32.mrb[0].mxu0
    %v363 = vadd.f32 0.0, %v362
    %364 = vmatprep.mubr.bf16.mxu0 0
    %365 = vmatmul.mubr.bf16.gmra.mrb[0].mxu0 %v189
    %v366 = vpop.f32.mrb[0].mxu0
    %v367 = vadd.f32 0.0, %v366
    %v368 = vpop.f32.mrb[0].mxu0
    %v369 = vadd.f32 0.0, %v368
    %v370 = vpop.f32.mrb[0].mxu0
    %v371 = vadd.f32 0.0, %v370
    %v372 = vpop.f32.mrb[0].mxu0
    %v373 = vadd.f32 0.0, %v372
    %374 = vmatprep.mubr.bf16.mxu0 0
    %375 = vmatmul.mubr.bf16.gmra.mrb[0].mxu0 %v192
    %v376 = vpop.f32.mrb[0].mxu0
    %v377 = vadd.f32 0.0, %v376
    %v378 = vpop.f32.mrb[0].mxu0
    %v379 = vadd.f32 0.0, %v378
    %v380 = vpop.f32.mrb[0].mxu0
    %v381 = vadd.f32 0.0, %v380
    %v382 = vpop.f32.mrb[0].mxu0
    %v383 = vadd.f32 0.0, %v382
    %384 = vmatprep.mubr.bf16.mxu0 0
    %385 = vmatmul.mubr.bf16.gmra.mrb[0].mxu0 %v195
    %v386 = vpop.f32.mrb[0].mxu0
    %v387 = vadd.f32 0.0, %v386
    %v388 = vpop.f32.mrb[0].mxu0
    %v389 = vadd.f32 0.0, %v388
    %v390 = vpop.f32.mrb[0].mxu0
    %v391 = vadd.f32 0.0, %v390
    %v392 = vpop.f32.mrb[0].mxu0
    %v393 = vadd.f32 0.0, %v392
    %394 = vmatprep.mubr.bf16.mxu0 0
    %395 = vmatmul.mubr.bf16.gmra.mrb[0].mxu0 %v198
    %v396 = vpop.f32.mrb[0].mxu0
    %v397 = vadd.f32 0.0, %v396
    %v398 = vpop.f32.mrb[0].mxu0
    %v399 = vadd.f32 0.0, %v398
    %v400 = vpop.f32.mrb[0].mxu0
    %v401 = vadd.f32 0.0, %v400
    %v402 = vpop.f32.mrb[0].mxu0
    %v403 = vadd.f32 0.0, %v402
    %404 = vmatprep.mubr.bf16.mxu0 0
    %405 = vmatmul.mubr.bf16.gmra.mrb[0].mxu0 %v201
    %v406 = vpop.f32.mrb[0].mxu0
    %v407 = vadd.f32 0.0, %v406
    %v408 = vpop.f32.mrb[0].mxu0
    %v409 = vadd.f32 0.0, %v408
    %v410 = vpop.f32.mrb[0].mxu0
    %v411 = vadd.f32 0.0, %v410
    %v412 = vpop.f32.mrb[0].mxu0
    %v413 = vadd.f32 0.0, %v412
    %414 = vmatprep.mubr.bf16.mxu0 0
    %415 = vmatmul.mubr.bf16.gmra.mrb[0].mxu0 %v204
    %v416 = vpop.f32.mrb[0].mxu0
    %v417 = vadd.f32 0.0, %v416
    %v418 = vpop.f32.mrb[0].mxu0
    %v419 = vadd.f32 0.0, %v418
    %v420 = vpop.f32.mrb[0].mxu0
    %v421 = vadd.f32 0.0, %v420
    %v422 = vpop.f32.mrb[0].mxu0
    %v423 = vadd.f32 0.0, %v422
    %424 = vmatprep.mubr.bf16.mxu0 0
    %425 = vmatmul.mubr.bf16.gmra.mrb[0].mxu0 %v207
    %v426 = vpop.f32.mrb[0].mxu0
    %v427 = vadd.f32 0.0, %v426
    %v428 = vpop.f32.mrb[0].mxu0
    %v429 = vadd.f32 0.0, %v428
    %v430 = vpop.f32.mrb[0].mxu0
    %v431 = vadd.f32 0.0, %v430
    %v432 = vpop.f32.mrb[0].mxu0
    %v433 = vadd.f32 0.0, %v432
    %434 = vdwg.mxu0
    %v443 = vunpack.c.l.b16 %v118
    %v444 = vunpack.c.h.b16 %v118
    %v445 = vunpack.c.l.b16 %v119
    %v446 = vunpack.c.h.b16 %v119
    %v447 = vunpack.c.l.b16 %v120
    %v448 = vunpack.c.h.b16 %v120
    %v449 = vunpack.c.l.b16 %v121
    %v450 = vunpack.c.h.b16 %v121
    %v451 = vunpack.c.l.b16 %v122
    %v452 = vunpack.c.h.b16 %v122
    %v453 = vunpack.c.l.b16 %v123
    %v454 = vunpack.c.h.b16 %v123
    %v455 = vunpack.c.l.b16 %v124
    %v456 = vunpack.c.h.b16 %v124
    %v457 = vunpack.c.l.b16 %v125
    %v458 = vunpack.c.h.b16 %v125
    %v459 = vpack.c.b16 %v447, %v443
    %v460 = vpack.c.b16 %v448, %v444
    %v461 = vpack.c.b16 %v449, %v445
    %v462 = vpack.c.b16 %v450, %v446
    %v463 = vpack.c.b16 %v455, %v451
    %v464 = vpack.c.b16 %v456, %v452
    %v465 = vpack.c.b16 %v457, %v453
    %v466 = vpack.c.b16 %v458, %v454
    %v476 = vsel %vm184, %v110, 0
    %v479 = vsel %vm184, %v111, 0
    %v482 = vsel %vm184, %v112, 0
    %v485 = vsel %vm184, %v113, 0
    %v488 = vsel %vm184, %v114, 0
    %v491 = vsel %vm184, %v115, 0
    %v494 = vsel %vm184, %v116, 0
    %v497 = vsel %vm184, %v117, 0
    %499 = vmatprep.subr.bf16.mxu0 %v460
    %500 = vmatpush1.bf16.msra.mxu0 %v459
    %501 = vmatprep.subr.bf16.mxu0 %v464
    %502 = vmatpush1.bf16.msra.mxu0 %v463
    %503 = vmatprep.subr.bf16.mxu0 0
    %504 = vmatpush1.bf16.msra.mxu0 0
    %505 = vmatprep.subr.bf16.mxu0 0
    %506 = vmatpush1.bf16.msra.mxu0 0
    %507 = vmatprep.subr.bf16.mxu0 0
    %508 = vmatpush1.bf16.msra.mxu0 0
    %509 = vmatprep.subr.bf16.mxu0 0
    %510 = vmatpush1.bf16.msra.mxu0 0
    %511 = vmatprep.subr.bf16.mxu0 0
    %512 = vmatpush1.bf16.msra.mxu0 0
    %513 = vmatprep.subr.bf16.mxu0 0
    %514 = vmatpush1.bf16.msra.mxu0 0
    %515 = vmatprep.subr.bf16.mxu0 0
    %516 = vmatpush1.bf16.msra.mxu0 0
    %517 = vmatprep.subr.bf16.mxu0 0
    %518 = vmatpush1.bf16.msra.mxu0 0
    %519 = vmatprep.subr.bf16.mxu0 0
    %520 = vmatpush1.bf16.msra.mxu0 0
    %521 = vmatprep.subr.bf16.mxu0 0
    %522 = vmatpush1.bf16.msra.mxu0 0
    %523 = vmatprep.subr.bf16.mxu0 0
    %524 = vmatpush1.bf16.msra.mxu0 0
    %525 = vmatprep.subr.bf16.mxu0 0
    %526 = vmatpush1.bf16.msra.mxu0 0
    %527 = vmatprep.subr.bf16.mxu0 0
    %528 = vmatpush1.bf16.msra.mxu0 0
    %529 = vmatprep.subr.bf16.mxu0 0
    %530 = vmatpush1.bf16.msra.mxu0 0
    %531 = vmatprep.mubr.bf16.mxu0 0
    %532 = vmatmul.mubr.bf16.gmra.mrb[0].mxu0 %v476
    %v533 = vpop.f32.mrb[0].mxu0
    %v534 = vadd.f32 %v244, %v533
    %v535 = vpop.f32.mrb[0].mxu0
    %v536 = vadd.f32 %v246, %v535
    %v537 = vpop.f32.mrb[0].mxu0
    %v538 = vadd.f32 %v248, %v537
    %v539 = vpop.f32.mrb[0].mxu0
    %v540 = vadd.f32 %v250, %v539
    %541 = vmatprep.mubr.bf16.mxu0 0
    %542 = vmatmul.mubr.bf16.gmra.mrb[0].mxu0 %v479
    %v543 = vpop.f32.mrb[0].mxu0
    %v544 = vadd.f32 %v254, %v543
    %v545 = vpop.f32.mrb[0].mxu0
    %v546 = vadd.f32 %v256, %v545
    %v547 = vpop.f32.mrb[0].mxu0
    %v548 = vadd.f32 %v258, %v547
    %v549 = vpop.f32.mrb[0].mxu0
    %v550 = vadd.f32 %v260, %v549
    %551 = vmatprep.mubr.bf16.mxu0 0
    %552 = vmatmul.mubr.bf16.gmra.mrb[0].mxu0 %v482
    %v553 = vpop.f32.mrb[0].mxu0
    %v554 = vadd.f32 %v264, %v553
    %v555 = vpop.f32.mrb[0].mxu0
    %v556 = vadd.f32 %v266, %v555
    %v557 = vpop.f32.mrb[0].mxu0
    %v558 = vadd.f32 %v268, %v557
    %v559 = vpop.f32.mrb[0].mxu0
    %v560 = vadd.f32 %v270, %v559
    %561 = vmatprep.mubr.bf16.mxu0 0
    %562 = vmatmul.mubr.bf16.gmra.mrb[0].mxu0 %v485
    %v563 = vpop.f32.mrb[0].mxu0
    %v564 = vadd.f32 %v274, %v563
    %v565 = vpop.f32.mrb[0].mxu0
    %v566 = vadd.f32 %v276, %v565
    %v567 = vpop.f32.mrb[0].mxu0
    %v568 = vadd.f32 %v278, %v567
    %v569 = vpop.f32.mrb[0].mxu0
    %v570 = vadd.f32 %v280, %v569
    %571 = vmatprep.mubr.bf16.mxu0 0
    %572 = vmatmul.mubr.bf16.gmra.mrb[0].mxu0 %v488
    %v573 = vpop.f32.mrb[0].mxu0
    %v574 = vadd.f32 %v284, %v573
    %v575 = vpop.f32.mrb[0].mxu0
    %v576 = vadd.f32 %v286, %v575
    %v577 = vpop.f32.mrb[0].mxu0
    %v578 = vadd.f32 %v288, %v577
    %v579 = vpop.f32.mrb[0].mxu0
    %v580 = vadd.f32 %v290, %v579
    %581 = vmatprep.mubr.bf16.mxu0 0
    %582 = vmatmul.mubr.bf16.gmra.mrb[0].mxu0 %v491
    %v583 = vpop.f32.mrb[0].mxu0
    %v584 = vadd.f32 %v294, %v583
    %v585 = vpop.f32.mrb[0].mxu0
    %v586 = vadd.f32 %v296, %v585
    %v587 = vpop.f32.mrb[0].mxu0
    %v588 = vadd.f32 %v298, %v587
    %v589 = vpop.f32.mrb[0].mxu0
    %v590 = vadd.f32 %v300, %v589
    %591 = vmatprep.mubr.bf16.mxu0 0
    %592 = vmatmul.mubr.bf16.gmra.mrb[0].mxu0 %v494
    %v593 = vpop.f32.mrb[0].mxu0
    %v594 = vadd.f32 %v304, %v593
    %v595 = vpop.f32.mrb[0].mxu0
    %v596 = vadd.f32 %v306, %v595
    %v597 = vpop.f32.mrb[0].mxu0
    %v598 = vadd.f32 %v308, %v597
    %v599 = vpop.f32.mrb[0].mxu0
    %v600 = vadd.f32 %v310, %v599
    %601 = vmatprep.mubr.bf16.mxu0 0
    %602 = vmatmul.mubr.bf16.gmra.mrb[0].mxu0 %v497
    %v603 = vpop.f32.mrb[0].mxu0
    %v604 = vadd.f32 %v314, %v603
    %v605 = vpop.f32.mrb[0].mxu0
    %v606 = vadd.f32 %v316, %v605
    %v607 = vpop.f32.mrb[0].mxu0
    %v608 = vadd.f32 %v318, %v607
    %v609 = vpop.f32.mrb[0].mxu0
    %v610 = vadd.f32 %v320, %v609
    %611 = vdwg.mxu0
    %612 = vmatprep.subr.bf16.mxu0 %v462
    %613 = vmatpush1.bf16.msra.mxu0 %v461
    %614 = vmatprep.subr.bf16.mxu0 %v466
    %615 = vmatpush1.bf16.msra.mxu0 %v465
    %616 = vmatprep.subr.bf16.mxu0 0
    %617 = vmatpush1.bf16.msra.mxu0 0
    %618 = vmatprep.subr.bf16.mxu0 0
    %619 = vmatpush1.bf16.msra.mxu0 0
    %620 = vmatprep.subr.bf16.mxu0 0
    %621 = vmatpush1.bf16.msra.mxu0 0
    %622 = vmatprep.subr.bf16.mxu0 0
    %623 = vmatpush1.bf16.msra.mxu0 0
    %624 = vmatprep.subr.bf16.mxu0 0
    %625 = vmatpush1.bf16.msra.mxu0 0
    %626 = vmatprep.subr.bf16.mxu0 0
    %627 = vmatpush1.bf16.msra.mxu0 0
    %628 = vmatprep.subr.bf16.mxu0 0
    %629 = vmatpush1.bf16.msra.mxu0 0
    %630 = vmatprep.subr.bf16.mxu0 0
    %631 = vmatpush1.bf16.msra.mxu0 0
    %632 = vmatprep.subr.bf16.mxu0 0
    %633 = vmatpush1.bf16.msra.mxu0 0
    %634 = vmatprep.subr.bf16.mxu0 0
    %635 = vmatpush1.bf16.msra.mxu0 0
    %636 = vmatprep.subr.bf16.mxu0 0
    %637 = vmatpush1.bf16.msra.mxu0 0
    %638 = vmatprep.subr.bf16.mxu0 0
    %639 = vmatpush1.bf16.msra.mxu0 0
    %640 = vmatprep.subr.bf16.mxu0 0
    %641 = vmatpush1.bf16.msra.mxu0 0
    %642 = vmatprep.subr.bf16.mxu0 0
    %643 = vmatpush1.bf16.msra.mxu0 0
    %644 = vmatprep.mubr.bf16.mxu0 0
    %645 = vmatmul.mubr.bf16.gmra.mrb[0].mxu0 %v476
    %v646 = vpop.f32.mrb[0].mxu0
    %v647 = vadd.f32 %v357, %v646
    %v648 = vpop.f32.mrb[0].mxu0
    %v649 = vadd.f32 %v359, %v648
    %v650 = vpop.f32.mrb[0].mxu0
    %v651 = vadd.f32 %v361, %v650
    %v652 = vpop.f32.mrb[0].mxu0
    %v653 = vadd.f32 %v363, %v652
    %654 = vmatprep.mubr.bf16.mxu0 0
    %655 = vmatmul.mubr.bf16.gmra.mrb[0].mxu0 %v479
    %v656 = vpop.f32.mrb[0].mxu0
    %v657 = vadd.f32 %v367, %v656
    %v658 = vpop.f32.mrb[0].mxu0
    %v659 = vadd.f32 %v369, %v658
    %v660 = vpop.f32.mrb[0].mxu0
    %v661 = vadd.f32 %v371, %v660
    %v662 = vpop.f32.mrb[0].mxu0
    %v663 = vadd.f32 %v373, %v662
    %664 = vmatprep.mubr.bf16.mxu0 0
    %665 = vmatmul.mubr.bf16.gmra.mrb[0].mxu0 %v482
    %v666 = vpop.f32.mrb[0].mxu0
    %v667 = vadd.f32 %v377, %v666
    %v668 = vpop.f32.mrb[0].mxu0
    %v669 = vadd.f32 %v379, %v668
    %v670 = vpop.f32.mrb[0].mxu0
    %v671 = vadd.f32 %v381, %v670
    %v672 = vpop.f32.mrb[0].mxu0
    %v673 = vadd.f32 %v383, %v672
    %674 = vmatprep.mubr.bf16.mxu0 0
    %675 = vmatmul.mubr.bf16.gmra.mrb[0].mxu0 %v485
    %v676 = vpop.f32.mrb[0].mxu0
    %v677 = vadd.f32 %v387, %v676
    %v678 = vpop.f32.mrb[0].mxu0
    %v679 = vadd.f32 %v389, %v678
    %v680 = vpop.f32.mrb[0].mxu0
    %v681 = vadd.f32 %v391, %v680
    %v682 = vpop.f32.mrb[0].mxu0
    %v683 = vadd.f32 %v393, %v682
    %684 = vmatprep.mubr.bf16.mxu0 0
    %685 = vmatmul.mubr.bf16.gmra.mrb[0].mxu0 %v488
    %v686 = vpop.f32.mrb[0].mxu0
    %v687 = vadd.f32 %v397, %v686
    %v688 = vpop.f32.mrb[0].mxu0
    %v689 = vadd.f32 %v399, %v688
    %v690 = vpop.f32.mrb[0].mxu0
    %v691 = vadd.f32 %v401, %v690
    %v692 = vpop.f32.mrb[0].mxu0
    %v693 = vadd.f32 %v403, %v692
    %694 = vmatprep.mubr.bf16.mxu0 0
    %695 = vmatmul.mubr.bf16.gmra.mrb[0].mxu0 %v491
    %v696 = vpop.f32.mrb[0].mxu0
    %v697 = vadd.f32 %v407, %v696
    %v698 = vpop.f32.mrb[0].mxu0
    %v699 = vadd.f32 %v409, %v698
    %v700 = vpop.f32.mrb[0].mxu0
    %v701 = vadd.f32 %v411, %v700
    %v702 = vpop.f32.mrb[0].mxu0
    %v703 = vadd.f32 %v413, %v702
    %704 = vmatprep.mubr.bf16.mxu0 0
    %705 = vmatmul.mubr.bf16.gmra.mrb[0].mxu0 %v494
    %v706 = vpop.f32.mrb[0].mxu0
    %v707 = vadd.f32 %v417, %v706
    %v708 = vpop.f32.mrb[0].mxu0
    %v709 = vadd.f32 %v419, %v708
    %v710 = vpop.f32.mrb[0].mxu0
    %v711 = vadd.f32 %v421, %v710
    %v712 = vpop.f32.mrb[0].mxu0
    %v713 = vadd.f32 %v423, %v712
    %714 = vmatprep.mubr.bf16.mxu0 0
    %715 = vmatmul.mubr.bf16.gmra.mrb[0].mxu0 %v497
    %v716 = vpop.f32.mrb[0].mxu0
    %v717 = vadd.f32 %v427, %v716
    %v718 = vpop.f32.mrb[0].mxu0
    %v719 = vadd.f32 %v429, %v718
    %v720 = vpop.f32.mrb[0].mxu0
    %v721 = vadd.f32 %v431, %v720
    %v722 = vpop.f32.mrb[0].mxu0
    %v723 = vadd.f32 %v433, %v722
    %724 = vdwg.mxu0
    %v725 = vld [vmem:[%s0 + $0x10] sm:$0xff]
    %v726 = vld [vmem:[%s0 + $0x18] sm:$0xff]
    %v727 = vld [vmem:[%s0 + $0x20] sm:$0xff]
    %v728 = vld [vmem:[%s0 + $0x28] sm:$0xff]
    %v729 = vld [vmem:[%s0 + $0x30] sm:$0xff]
    %v730 = vld [vmem:[%s0 + $0x38] sm:$0xff]
    %v731 = vld [vmem:[%s0 + $0x40] sm:$0xff]
    %v732 = vld [vmem:[%s0 + $0x48] sm:$0xff]
    %v733 = vld [vmem:[%s0 + $0x50] sm:$0xff]
    %v734 = vld [vmem:[%s0 + $0x58] sm:$0xff]
    %v735 = vld [vmem:[%s0 + $0x60] sm:$0xff]
    %v736 = vld [vmem:[%s0 + $0x68] sm:$0xff]
    %v737 = vld [vmem:[%s0 + $0x70] sm:$0xff]
    %v738 = vld [vmem:[%s0 + $0x78] sm:$0xff]
    %v739 = vld [vmem:[%s0 + $0x80] sm:$0xff]
    %v740 = vld [vmem:[%s0 + $0x88] sm:$0xff]
    %v741 = vpack.c.bf16 %v726, %v725
    %v742 = vpack.c.bf16 %v728, %v727
    %v743 = vpack.c.bf16 %v730, %v729
    %v744 = vpack.c.bf16 %v732, %v731
    %v745 = vpack.c.bf16 %v734, %v733
    %v746 = vpack.c.bf16 %v736, %v735
    %v747 = vpack.c.bf16 %v738, %v737
    %v748 = vpack.c.bf16 %v740, %v739
    %s749 = scalar_lea.vmem [#allocation4], 128
    %v750 = vld [vmem:[%s749] sm:$0xff]
    %v751 = vld [vmem:[%s749 + $0x8] sm:$0xff]
    %v752 = vld [vmem:[%s749 + $0x10] sm:$0xff]
    %v753 = vld [vmem:[%s749 + $0x18] sm:$0xff]
    %v754 = vld [vmem:[%s749 + $0x20] sm:$0xff]
    %v755 = vld [vmem:[%s749 + $0x28] sm:$0xff]
    %v756 = vld [vmem:[%s749 + $0x30] sm:$0xff]
    %v757 = vld [vmem:[%s749 + $0x38] sm:$0xff]
    %v766 = vunpack.c.l.b16 %v750
    %v767 = vunpack.c.h.b16 %v750
    %v768 = vunpack.c.l.b16 %v751
    %v769 = vunpack.c.h.b16 %v751
    %v770 = vunpack.c.l.b16 %v752
    %v771 = vunpack.c.h.b16 %v752
    %v772 = vunpack.c.l.b16 %v753
    %v773 = vunpack.c.h.b16 %v753
    %v774 = vunpack.c.l.b16 %v754
    %v775 = vunpack.c.h.b16 %v754
    %v776 = vunpack.c.l.b16 %v755
    %v777 = vunpack.c.h.b16 %v755
    %v778 = vunpack.c.l.b16 %v756
    %v779 = vunpack.c.h.b16 %v756
    %v780 = vunpack.c.l.b16 %v757
    %v781 = vunpack.c.h.b16 %v757
    %v782 = vpack.c.b16 %v770, %v766
    %v783 = vpack.c.b16 %v771, %v767
    %v784 = vpack.c.b16 %v772, %v768
    %v785 = vpack.c.b16 %v773, %v769
    %v786 = vpack.c.b16 %v778, %v774
    %v787 = vpack.c.b16 %v779, %v775
    %v788 = vpack.c.b16 %v780, %v776
    %v789 = vpack.c.b16 %v781, %v777
    %v799 = vsel %vm184, %v741, 0
    %v802 = vsel %vm184, %v742, 0
    %v805 = vsel %vm184, %v743, 0
    %v808 = vsel %vm184, %v744, 0
    %v811 = vsel %vm184, %v745, 0
    %v814 = vsel %vm184, %v746, 0
    %v817 = vsel %vm184, %v747, 0
    %v820 = vsel %vm184, %v748, 0
    %822 = vmatprep.subr.bf16.mxu0 %v783
    %823 = vmatpush1.bf16.msra.mxu0 %v782
    %824 = vmatprep.subr.bf16.mxu0 %v787
    %825 = vmatpush1.bf16.msra.mxu0 %v786
    %826 = vmatprep.subr.bf16.mxu0 0
    %827 = vmatpush1.bf16.msra.mxu0 0
    %828 = vmatprep.subr.bf16.mxu0 0
    %829 = vmatpush1.bf16.msra.mxu0 0
    %830 = vmatprep.subr.bf16.mxu0 0
    %831 = vmatpush1.bf16.msra.mxu0 0
    %832 = vmatprep.subr.bf16.mxu0 0
    %833 = vmatpush1.bf16.msra.mxu0 0
    %834 = vmatprep.subr.bf16.mxu0 0
    %835 = vmatpush1.bf16.msra.mxu0 0
    %836 = vmatprep.subr.bf16.mxu0 0
    %837 = vmatpush1.bf16.msra.mxu0 0
    %838 = vmatprep.subr.bf16.mxu0 0
    %839 = vmatpush1.bf16.msra.mxu0 0
    %840 = vmatprep.subr.bf16.mxu0 0
    %841 = vmatpush1.bf16.msra.mxu0 0
    %842 = vmatprep.subr.bf16.mxu0 0
    %843 = vmatpush1.bf16.msra.mxu0 0
    %844 = vmatprep.subr.bf16.mxu0 0
    %845 = vmatpush1.bf16.msra.mxu0 0
    %846 = vmatprep.subr.bf16.mxu0 0
    %847 = vmatpush1.bf16.msra.mxu0 0
    %848 = vmatprep.subr.bf16.mxu0 0
    %849 = vmatpush1.bf16.msra.mxu0 0
    %850 = vmatprep.subr.bf16.mxu0 0
    %851 = vmatpush1.bf16.msra.mxu0 0
    %852 = vmatprep.subr.bf16.mxu0 0
    %853 = vmatpush1.bf16.msra.mxu0 0
    %854 = vmatprep.mubr.bf16.mxu0 0
    %855 = vmatmul.mubr.bf16.gmra.mrb[0].mxu0 %v799
    %v856 = vpop.f32.mrb[0].mxu0
    %v857 = vadd.f32 0.0, %v856
    %v858 = vpop.f32.mrb[0].mxu0
    %v859 = vadd.f32 0.0, %v858
    %v860 = vpop.f32.mrb[0].mxu0
    %v861 = vadd.f32 0.0, %v860
    %v862 = vpop.f32.mrb[0].mxu0
    %v863 = vadd.f32 0.0, %v862
    %864 = vmatprep.mubr.bf16.mxu0 0
    %865 = vmatmul.mubr.bf16.gmra.mrb[0].mxu0 %v802
    %v866 = vpop.f32.mrb[0].mxu0
    %v867 = vadd.f32 0.0, %v866
    %v868 = vpop.f32.mrb[0].mxu0
    %v869 = vadd.f32 0.0, %v868
    %v870 = vpop.f32.mrb[0].mxu0
    %v871 = vadd.f32 0.0, %v870
    %v872 = vpop.f32.mrb[0].mxu0
    %v873 = vadd.f32 0.0, %v872
    %874 = vmatprep.mubr.bf16.mxu0 0
    %875 = vmatmul.mubr.bf16.gmra.mrb[0].mxu0 %v805
    %v876 = vpop.f32.mrb[0].mxu0
    %v877 = vadd.f32 0.0, %v876
    %v878 = vpop.f32.mrb[0].mxu0
    %v879 = vadd.f32 0.0, %v878
    %v880 = vpop.f32.mrb[0].mxu0
    %v881 = vadd.f32 0.0, %v880
    %v882 = vpop.f32.mrb[0].mxu0
    %v883 = vadd.f32 0.0, %v882
    %884 = vmatprep.mubr.bf16.mxu0 0
    %885 = vmatmul.mubr.bf16.gmra.mrb[0].mxu0 %v808
    %v886 = vpop.f32.mrb[0].mxu0
    %v887 = vadd.f32 0.0, %v886
    %v888 = vpop.f32.mrb[0].mxu0
    %v889 = vadd.f32 0.0, %v888
    %v890 = vpop.f32.mrb[0].mxu0
    %v891 = vadd.f32 0.0, %v890
    %v892 = vpop.f32.mrb[0].mxu0
    %v893 = vadd.f32 0.0, %v892
    %894 = vmatprep.mubr.bf16.mxu0 0
    %895 = vmatmul.mubr.bf16.gmra.mrb[0].mxu0 %v811
    %v896 = vpop.f32.mrb[0].mxu0
    %v897 = vadd.f32 0.0, %v896
    %v898 = vpop.f32.mrb[0].mxu0
    %v899 = vadd.f32 0.0, %v898
    %v900 = vpop.f32.mrb[0].mxu0
    %v901 = vadd.f32 0.0, %v900
    %v902 = vpop.f32.mrb[0].mxu0
    %v903 = vadd.f32 0.0, %v902
    %904 = vmatprep.mubr.bf16.mxu0 0
    %905 = vmatmul.mubr.bf16.gmra.mrb[0].mxu0 %v814
    %v906 = vpop.f32.mrb[0].mxu0
    %v907 = vadd.f32 0.0, %v906
    %v908 = vpop.f32.mrb[0].mxu0
    %v909 = vadd.f32 0.0, %v908
    %v910 = vpop.f32.mrb[0].mxu0
    %v911 = vadd.f32 0.0, %v910
    %v912 = vpop.f32.mrb[0].mxu0
    %v913 = vadd.f32 0.0, %v912
    %914 = vmatprep.mubr.bf16.mxu0 0
    %915 = vmatmul.mubr.bf16.gmra.mrb[0].mxu0 %v817
    %v916 = vpop.f32.mrb[0].mxu0
    %v917 = vadd.f32 0.0, %v916
    %v918 = vpop.f32.mrb[0].mxu0
    %v919 = vadd.f32 0.0, %v918
    %v920 = vpop.f32.mrb[0].mxu0
    %v921 = vadd.f32 0.0, %v920
    %v922 = vpop.f32.mrb[0].mxu0
    %v923 = vadd.f32 0.0, %v922
    %924 = vmatprep.mubr.bf16.mxu0 0
    %925 = vmatmul.mubr.bf16.gmra.mrb[0].mxu0 %v820
    %v926 = vpop.f32.mrb[0].mxu0
    %v927 = vadd.f32 0.0, %v926
    %v928 = vpop.f32.mrb[0].mxu0
    %v929 = vadd.f32 0.0, %v928
    %v930 = vpop.f32.mrb[0].mxu0
    %v931 = vadd.f32 0.0, %v930
    %v932 = vpop.f32.mrb[0].mxu0
    %v933 = vadd.f32 0.0, %v932
    %934 = vdwg.mxu0
    %935 = vmatprep.subr.bf16.mxu0 %v785
    %936 = vmatpush1.bf16.msra.mxu0 %v784
    %937 = vmatprep.subr.bf16.mxu0 %v789
    %938 = vmatpush1.bf16.msra.mxu0 %v788
    %939 = vmatprep.subr.bf16.mxu0 0
    %940 = vmatpush1.bf16.msra.mxu0 0
    %941 = vmatprep.subr.bf16.mxu0 0
    %942 = vmatpush1.bf16.msra.mxu0 0
    %943 = vmatprep.subr.bf16.mxu0 0
    %944 = vmatpush1.bf16.msra.mxu0 0
    %945 = vmatprep.subr.bf16.mxu0 0
    %946 = vmatpush1.bf16.msra.mxu0 0
    %947 = vmatprep.subr.bf16.mxu0 0
    %948 = vmatpush1.bf16.msra.mxu0 0
    %949 = vmatprep.subr.bf16.mxu0 0
    %950 = vmatpush1.bf16.msra.mxu0 0
    %951 = vmatprep.subr.bf16.mxu0 0
    %952 = vmatpush1.bf16.msra.mxu0 0
    %953 = vmatprep.subr.bf16.mxu0 0
    %954 = vmatpush1.bf16.msra.mxu0 0
    %955 = vmatprep.subr.bf16.mxu0 0
    %956 = vmatpush1.bf16.msra.mxu0 0
    %957 = vmatprep.subr.bf16.mxu0 0
    %958 = vmatpush1.bf16.msra.mxu0 0
    %959 = vmatprep.subr.bf16.mxu0 0
    %960 = vmatpush1.bf16.msra.mxu0 0
    %961 = vmatprep.subr.bf16.mxu0 0
    %962 = vmatpush1.bf16.msra.mxu0 0
    %963 = vmatprep.subr.bf16.mxu0 0
    %964 = vmatpush1.bf16.msra.mxu0 0
    %965 = vmatprep.subr.bf16.mxu0 0
    %966 = vmatpush1.bf16.msra.mxu0 0
    %967 = vmatprep.mubr.bf16.mxu0 0
    %968 = vmatmul.mubr.bf16.gmra.mrb[0].mxu0 %v799
    %v969 = vpop.f32.mrb[0].mxu0
    %v970 = vadd.f32 0.0, %v969
    %v971 = vpop.f32.mrb[0].mxu0
    %v972 = vadd.f32 0.0, %v971
    %v973 = vpop.f32.mrb[0].mxu0
    %v974 = vadd.f32 0.0, %v973
    %v975 = vpop.f32.mrb[0].mxu0
    %v976 = vadd.f32 0.0, %v975
    %977 = vmatprep.mubr.bf16.mxu0 0
    %978 = vmatmul.mubr.bf16.gmra.mrb[0].mxu0 %v802
    %v979 = vpop.f32.mrb[0].mxu0
    %v980 = vadd.f32 0.0, %v979
    %v981 = vpop.f32.mrb[0].mxu0
    %v982 = vadd.f32 0.0, %v981
    %v983 = vpop.f32.mrb[0].mxu0
    %v984 = vadd.f32 0.0, %v983
    %v985 = vpop.f32.mrb[0].mxu0
    %v986 = vadd.f32 0.0, %v985
    %987 = vmatprep.mubr.bf16.mxu0 0
    %988 = vmatmul.mubr.bf16.gmra.mrb[0].mxu0 %v805
    %v989 = vpop.f32.mrb[0].mxu0
    %v990 = vadd.f32 0.0, %v989
    %v991 = vpop.f32.mrb[0].mxu0
    %v992 = vadd.f32 0.0, %v991
    %v993 = vpop.f32.mrb[0].mxu0
    %v994 = vadd.f32 0.0, %v993
    %v995 = vpop.f32.mrb[0].mxu0
    %v996 = vadd.f32 0.0, %v995
    %997 = vmatprep.mubr.bf16.mxu0 0
    %998 = vmatmul.mubr.bf16.gmra.mrb[0].mxu0 %v808
    %v999 = vpop.f32.mrb[0].mxu0
    %v1000 = vadd.f32 0.0, %v999
    %v1001 = vpop.f32.mrb[0].mxu0
    %v1002 = vadd.f32 0.0, %v1001
    %v1003 = vpop.f32.mrb[0].mxu0
    %v1004 = vadd.f32 0.0, %v1003
    %v1005 = vpop.f32.mrb[0].mxu0
    %v1006 = vadd.f32 0.0, %v1005
    %1007 = vmatprep.mubr.bf16.mxu0 0
    %1008 = vmatmul.mubr.bf16.gmra.mrb[0].mxu0 %v811
    %v1009 = vpop.f32.mrb[0].mxu0
    %v1010 = vadd.f32 0.0, %v1009
    %v1011 = vpop.f32.mrb[0].mxu0
    %v1012 = vadd.f32 0.0, %v1011
    %v1013 = vpop.f32.mrb[0].mxu0
    %v1014 = vadd.f32 0.0, %v1013
    %v1015 = vpop.f32.mrb[0].mxu0
    %v1016 = vadd.f32 0.0, %v1015
    %1017 = vmatprep.mubr.bf16.mxu0 0
    %1018 = vmatmul.mubr.bf16.gmra.mrb[0].mxu0 %v814
    %v1019 = vpop.f32.mrb[0].mxu0
    %v1020 = vadd.f32 0.0, %v1019
    %v1021 = vpop.f32.mrb[0].mxu0
    %v1022 = vadd.f32 0.0, %v1021
    %v1023 = vpop.f32.mrb[0].mxu0
    %v1024 = vadd.f32 0.0, %v1023
    %v1025 = vpop.f32.mrb[0].mxu0
    %v1026 = vadd.f32 0.0, %v1025
    %1027 = vmatprep.mubr.bf16.mxu0 0
    %1028 = vmatmul.mubr.bf16.gmra.mrb[0].mxu0 %v817
    %v1029 = vpop.f32.mrb[0].mxu0
    %v1030 = vadd.f32 0.0, %v1029
    %v1031 = vpop.f32.mrb[0].mxu0
    %v1032 = vadd.f32 0.0, %v1031
    %v1033 = vpop.f32.mrb[0].mxu0
    %v1034 = vadd.f32 0.0, %v1033
    %v1035 = vpop.f32.mrb[0].mxu0
    %v1036 = vadd.f32 0.0, %v1035
    %1037 = vmatprep.mubr.bf16.mxu0 0
    %1038 = vmatmul.mubr.bf16.gmra.mrb[0].mxu0 %v820
    %v1039 = vpop.f32.mrb[0].mxu0
    %v1040 = vadd.f32 0.0, %v1039
    %v1041 = vpop.f32.mrb[0].mxu0
    %v1042 = vadd.f32 0.0, %v1041
    %v1043 = vpop.f32.mrb[0].mxu0
    %v1044 = vadd.f32 0.0, %v1043
    %v1045 = vpop.f32.mrb[0].mxu0
    %v1046 = vadd.f32 0.0, %v1045
    %1047 = vdwg.mxu0
    %v1048 = vadd.f32 %v534, %v857
    %v1049 = vadd.f32 %v536, %v859
    %v1050 = vadd.f32 %v647, %v970
    %v1051 = vadd.f32 %v649, %v972
    %v1052 = vadd.f32 %v538, %v861
    %v1053 = vadd.f32 %v540, %v863
    %v1054 = vadd.f32 %v651, %v974
    %v1055 = vadd.f32 %v653, %v976
    %v1056 = vadd.f32 %v544, %v867
    %v1057 = vadd.f32 %v546, %v869
    %v1058 = vadd.f32 %v657, %v980
    %v1059 = vadd.f32 %v659, %v982
    %v1060 = vadd.f32 %v548, %v871
    %v1061 = vadd.f32 %v550, %v873
    %v1062 = vadd.f32 %v661, %v984
    %v1063 = vadd.f32 %v663, %v986
    %v1064 = vadd.f32 %v554, %v877
    %v1065 = vadd.f32 %v556, %v879
    %v1066 = vadd.f32 %v667, %v990
    %v1067 = vadd.f32 %v669, %v992
    %v1068 = vadd.f32 %v558, %v881
    %v1069 = vadd.f32 %v560, %v883
    %v1070 = vadd.f32 %v671, %v994
    %v1071 = vadd.f32 %v673, %v996
    %v1072 = vadd.f32 %v564, %v887
    %v1073 = vadd.f32 %v566, %v889
    %v1074 = vadd.f32 %v677, %v1000
    %v1075 = vadd.f32 %v679, %v1002
    %v1076 = vadd.f32 %v568, %v891
    %v1077 = vadd.f32 %v570, %v893
    %v1078 = vadd.f32 %v681, %v1004
    %v1079 = vadd.f32 %v683, %v1006
    %v1080 = vadd.f32 %v574, %v897
    %v1081 = vadd.f32 %v576, %v899
    %v1082 = vadd.f32 %v687, %v1010
    %v1083 = vadd.f32 %v689, %v1012
    %v1084 = vadd.f32 %v578, %v901
    %v1085 = vadd.f32 %v580, %v903
    %v1086 = vadd.f32 %v691, %v1014
    %v1087 = vadd.f32 %v693, %v1016
    %v1088 = vadd.f32 %v584, %v907
    %v1089 = vadd.f32 %v586, %v909
    %v1090 = vadd.f32 %v697, %v1020
    %v1091 = vadd.f32 %v699, %v1022
    %v1092 = vadd.f32 %v588, %v911
    %v1093 = vadd.f32 %v590, %v913
    %v1094 = vadd.f32 %v701, %v1024
    %v1095 = vadd.f32 %v703, %v1026
    %v1096 = vadd.f32 %v594, %v917
    %v1097 = vadd.f32 %v596, %v919
    %v1098 = vadd.f32 %v707, %v1030
    %v1099 = vadd.f32 %v709, %v1032
    %v1100 = vadd.f32 %v598, %v921
    %v1101 = vadd.f32 %v600, %v923
    %v1102 = vadd.f32 %v711, %v1034
    %v1103 = vadd.f32 %v713, %v1036
    %v1104 = vadd.f32 %v604, %v927
    %v1105 = vadd.f32 %v606, %v929
    %v1106 = vadd.f32 %v717, %v1040
    %v1107 = vadd.f32 %v719, %v1042
    %v1108 = vadd.f32 %v608, %v931
    %v1109 = vadd.f32 %v610, %v933
    %v1110 = vadd.f32 %v721, %v1044
    %v1111 = vadd.f32 %v723, %v1046
    %v1112 = vld [vmem:[%s2] sm:$0xf]
    %v1114 = vlaneseq
    %v1115 = vshrl.u32 %v1114, 7
    %v1116 = vsub.s32 0, %v1115
    %v1117 = vrot.slane %v1112, %v1116
    %v1118 = vlaneseq
    %v1119 = vshrl.u32 %v1118, 7
    %v1120 = vsub.s32 1, %v1119
    %v1121 = vrot.slane %v1112, %v1120
    %v1122 = vlaneseq
    %v1123 = vshrl.u32 %v1122, 7
    %v1124 = vsub.s32 2, %v1123
    %v1125 = vrot.slane %v1112, %v1124
    %v1126 = vlaneseq
    %v1127 = vshrl.u32 %v1126, 7
    %v1128 = vsub.s32 3, %v1127
    %v1129 = vrot.slane %v1112, %v1128
    %v1134 = vadd.f32 %v1048, %v1117
    %v1135 = vadd.f32 %v1049, %v1121
    %v1136 = vadd.f32 %v1050, %v1125
    %v1137 = vadd.f32 %v1051, %v1129
    %v1138 = vadd.f32 %v1052, %v1117
    %v1139 = vadd.f32 %v1053, %v1121
    %v1140 = vadd.f32 %v1054, %v1125
    %v1141 = vadd.f32 %v1055, %v1129
    %v1142 = vadd.f32 %v1056, %v1117
    %v1143 = vadd.f32 %v1057, %v1121
    %v1144 = vadd.f32 %v1058, %v1125
    %v1145 = vadd.f32 %v1059, %v1129
    %v1146 = vadd.f32 %v1060, %v1117
    %v1147 = vadd.f32 %v1061, %v1121
    %v1148 = vadd.f32 %v1062, %v1125
    %v1149 = vadd.f32 %v1063, %v1129
    %v1150 = vadd.f32 %v1064, %v1117
    %v1151 = vadd.f32 %v1065, %v1121
    %v1152 = vadd.f32 %v1066, %v1125
    %v1153 = vadd.f32 %v1067, %v1129
    %v1154 = vadd.f32 %v1068, %v1117
    %v1155 = vadd.f32 %v1069, %v1121
    %v1156 = vadd.f32 %v1070, %v1125
    %v1157 = vadd.f32 %v1071, %v1129
    %v1158 = vadd.f32 %v1072, %v1117
    %v1159 = vadd.f32 %v1073, %v1121
    %v1160 = vadd.f32 %v1074, %v1125
    %v1161 = vadd.f32 %v1075, %v1129
    %v1162 = vadd.f32 %v1076, %v1117
    %v1163 = vadd.f32 %v1077, %v1121
    %v1164 = vadd.f32 %v1078, %v1125
    %v1165 = vadd.f32 %v1079, %v1129
    %v1166 = vadd.f32 %v1080, %v1117
    %v1167 = vadd.f32 %v1081, %v1121
    %v1168 = vadd.f32 %v1082, %v1125
    %v1169 = vadd.f32 %v1083, %v1129
    %v1170 = vadd.f32 %v1084, %v1117
    %v1171 = vadd.f32 %v1085, %v1121
    %v1172 = vadd.f32 %v1086, %v1125
    %v1173 = vadd.f32 %v1087, %v1129
    %v1174 = vadd.f32 %v1088, %v1117
    %v1175 = vadd.f32 %v1089, %v1121
    %v1176 = vadd.f32 %v1090, %v1125
    %v1177 = vadd.f32 %v1091, %v1129
    %v1178 = vadd.f32 %v1092, %v1117
    %v1179 = vadd.f32 %v1093, %v1121
    %v1180 = vadd.f32 %v1094, %v1125
    %v1181 = vadd.f32 %v1095, %v1129
    %v1182 = vadd.f32 %v1096, %v1117
    %v1183 = vadd.f32 %v1097, %v1121
    %v1184 = vadd.f32 %v1098, %v1125
    %v1185 = vadd.f32 %v1099, %v1129
    %v1186 = vadd.f32 %v1100, %v1117
    %v1187 = vadd.f32 %v1101, %v1121
    %v1188 = vadd.f32 %v1102, %v1125
    %v1189 = vadd.f32 %v1103, %v1129
    %v1190 = vadd.f32 %v1104, %v1117
    %v1191 = vadd.f32 %v1105, %v1121
    %v1192 = vadd.f32 %v1106, %v1125
    %v1193 = vadd.f32 %v1107, %v1129
    %v1194 = vadd.f32 %v1108, %v1117
    %v1195 = vadd.f32 %v1109, %v1121
    %v1196 = vadd.f32 %v1110, %v1125
    %v1197 = vadd.f32 %v1111, %v1129
    %v1198 = vmax.f32 %v1134, %v1136
    %v1199 = vmax.f32 %v1135, %v1137
    %v1200 = vmax.f32 %v1138, %v1140
    %v1201 = vmax.f32 %v1139, %v1141
    %v1202 = vmax.f32 %v1142, %v1144
    %v1203 = vmax.f32 %v1143, %v1145
    %v1204 = vmax.f32 %v1146, %v1148
    %v1205 = vmax.f32 %v1147, %v1149
    %v1206 = vmax.f32 %v1150, %v1152
    %v1207 = vmax.f32 %v1151, %v1153
    %v1208 = vmax.f32 %v1154, %v1156
    %v1209 = vmax.f32 %v1155, %v1157
    %v1210 = vmax.f32 %v1158, %v1160
    %v1211 = vmax.f32 %v1159, %v1161
    %v1212 = vmax.f32 %v1162, %v1164
    %v1213 = vmax.f32 %v1163, %v1165
    %v1214 = vmax.f32 %v1166, %v1168
    %v1215 = vmax.f32 %v1167, %v1169
    %v1216 = vmax.f32 %v1170, %v1172
    %v1217 = vmax.f32 %v1171, %v1173
    %v1218 = vmax.f32 %v1174, %v1176
    %v1219 = vmax.f32 %v1175, %v1177
    %v1220 = vmax.f32 %v1178, %v1180
    %v1221 = vmax.f32 %v1179, %v1181
    %v1222 = vmax.f32 %v1182, %v1184
    %v1223 = vmax.f32 %v1183, %v1185
    %v1224 = vmax.f32 %v1186, %v1188
    %v1225 = vmax.f32 %v1187, %v1189
    %v1226 = vmax.f32 %v1190, %v1192
    %v1227 = vmax.f32 %v1191, %v1193
    %v1228 = vmax.f32 %v1194, %v1196
    %v1229 = vmax.f32 %v1195, %v1197
    %1230 = vst [vmem:[#allocation2] sm:$0xff] 0.0
    %1231 = vst [vmem:[#allocation2 + $0x8] sm:$0xff] 0.0
    %vm1232 = vcmask 523264
    %1233 = vst.msk [vmem:[#allocation2 + $0x10] sm:$0xff] %vm1232, 0.0
    %1234 = vst [vmem:[#allocation2 + $0xd8] sm:$0xff] 0.0
    %1235 = vst [vmem:[#allocation2 + $0xe0] sm:$0xff] 0.0
    %1236 = vst.msk [vmem:[#allocation2 + $0xe8] sm:$0xff] %vm1232, 0.0
    %1237 = vst.msk [vmem:[#allocation2] sm:$0xff] %vm184, 0.0
    %1238 = vst.msk [vmem:[#allocation2 + $0x18] sm:$0xff] %vm184, 0.0
    %1239 = vst.msk [vmem:[#allocation2 + $0x30] sm:$0xff] %vm184, 0.0
    %1240 = vst.msk [vmem:[#allocation2 + $0x48] sm:$0xff] %vm184, 0.0
    %1241 = vst.msk [vmem:[#allocation2 + $0x60] sm:$0xff] %vm184, 0.0
    %1242 = vst.msk [vmem:[#allocation2 + $0x78] sm:$0xff] %vm184, 0.0
    %1243 = vst.msk [vmem:[#allocation2 + $0x90] sm:$0xff] %vm184, 0.0
    %1244 = vst.msk [vmem:[#allocation2 + $0xa8] sm:$0xff] %vm184, 0.0
    %1245 = vst.msk [vmem:[#allocation2 + $0xc0] sm:$0xff] %vm184, 0.0
    %1246 = vst.msk [vmem:[#allocation2 + $0xd8] sm:$0xff] %vm184, 0.0
    %vm1247 = vcmask 523520
    %1248 = vst.msk [vmem:[#allocation2 + $0x10] sm:$0xff] %vm1247, 0.0
    %1249 = vst.msk [vmem:[#allocation2 + $0x28] sm:$0xff] %vm1247, 0.0
    %1250 = vst.msk [vmem:[#allocation2 + $0x40] sm:$0xff] %vm1247, 0.0
    %1251 = vst.msk [vmem:[#allocation2 + $0x58] sm:$0xff] %vm1247, 0.0
    %1252 = vst.msk [vmem:[#allocation2 + $0x70] sm:$0xff] %vm1247, 0.0
    %1253 = vst.msk [vmem:[#allocation2 + $0x88] sm:$0xff] %vm1247, 0.0
    %1254 = vst.msk [vmem:[#allocation2 + $0xa0] sm:$0xff] %vm1247, 0.0
    %1255 = vst.msk [vmem:[#allocation2 + $0xb8] sm:$0xff] %vm1247, 0.0
    %1256 = vst.msk [vmem:[#allocation2 + $0xd0] sm:$0xff] %vm1247, 0.0
    %1257 = vst.msk [vmem:[#allocation2 + $0xe8] sm:$0xff] %vm1247, 0.0
    %v1258 = vmax.f32 %v1198, %v1200
    %v1259 = vmax.f32 %v1199, %v1201
    %vm1260 = vcmp.gt.f32.partialorder %v1258, 0.0
    %vm1261 = vcmp.gt.f32.partialorder %v1259, 0.0
    %v1262 = vmul.f32 %v1258, 0.01
    %v1263 = vmul.f32 %v1259, 0.01
    %v1264 = vsel %vm1260, %v1258, %v1262
    %v1265 = vsel %vm1261, %v1259, %v1263
    %1268 = vrot.lane.b32.xlu0 %v1264, 32
    %v1269 = vpop.permute.xlu0 %1268
    %1270 = vrot.lane.b32.xlu0 %v1265, 32
    %v1271 = vpop.permute.xlu0 %1270
    %v1272 = vsel %vm184, %v1269, %v1271
    %vm1276 = vcmask 1047808
    %1277 = vst.msk [vmem:[#allocation2 + $0x18] sm:$0xff] %vm1276, %v1269
    %1278 = vst [vmem:[#allocation2 + $0x20] sm:$0xff] %v1272
    %1279 = vst.msk [vmem:[#allocation2 + $0x28] sm:$0xff] %vm184, %v1271
    %v1280 = vmax.f32 %v1202, %v1204
    %v1281 = vmax.f32 %v1203, %v1205
    %vm1282 = vcmp.gt.f32.partialorder %v1280, 0.0
    %vm1283 = vcmp.gt.f32.partialorder %v1281, 0.0
    %v1284 = vmul.f32 %v1280, 0.01
    %v1285 = vmul.f32 %v1281, 0.01
    %v1286 = vsel %vm1282, %v1280, %v1284
    %v1287 = vsel %vm1283, %v1281, %v1285
    %1290 = vrot.lane.b32.xlu0 %v1286, 32
    %v1291 = vpop.permute.xlu0 %1290
    %1292 = vrot.lane.b32.xlu0 %v1287, 32
    %v1293 = vpop.permute.xlu0 %1292
    %v1294 = vsel %vm184, %v1291, %v1293
    %1298 = vst.msk [vmem:[#allocation2 + $0x30] sm:$0xff] %vm1276, %v1291
    %1299 = vst [vmem:[#allocation2 + $0x38] sm:$0xff] %v1294
    %1300 = vst.msk [vmem:[#allocation2 + $0x40] sm:$0xff] %vm184, %v1293
    %v1301 = vmax.f32 %v1206, %v1208
    %v1302 = vmax.f32 %v1207, %v1209
    %vm1303 = vcmp.gt.f32.partialorder %v1301, 0.0
    %vm1304 = vcmp.gt.f32.partialorder %v1302, 0.0
    %v1305 = vmul.f32 %v1301, 0.01
    %v1306 = vmul.f32 %v1302, 0.01
    %v1307 = vsel %vm1303, %v1301, %v1305
    %v1308 = vsel %vm1304, %v1302, %v1306
    %1311 = vrot.lane.b32.xlu0 %v1307, 32
    %v1312 = vpop.permute.xlu0 %1311
    %1313 = vrot.lane.b32.xlu0 %v1308, 32
    %v1314 = vpop.permute.xlu0 %1313
    %v1315 = vsel %vm184, %v1312, %v1314
    %1319 = vst.msk [vmem:[#allocation2 + $0x48] sm:$0xff] %vm1276, %v1312
    %1320 = vst [vmem:[#allocation2 + $0x50] sm:$0xff] %v1315
    %1321 = vst.msk [vmem:[#allocation2 + $0x58] sm:$0xff] %vm184, %v1314
    %v1322 = vmax.f32 %v1210, %v1212
    %v1323 = vmax.f32 %v1211, %v1213
    %vm1324 = vcmp.gt.f32.partialorder %v1322, 0.0
    %vm1325 = vcmp.gt.f32.partialorder %v1323, 0.0
    %v1326 = vmul.f32 %v1322, 0.01
    %v1327 = vmul.f32 %v1323, 0.01
    %v1328 = vsel %vm1324, %v1322, %v1326
    %v1329 = vsel %vm1325, %v1323, %v1327
    %1332 = vrot.lane.b32.xlu0 %v1328, 32
    %v1333 = vpop.permute.xlu0 %1332
    %1334 = vrot.lane.b32.xlu0 %v1329, 32
    %v1335 = vpop.permute.xlu0 %1334
    %v1336 = vsel %vm184, %v1333, %v1335
    %1340 = vst.msk [vmem:[#allocation2 + $0x60] sm:$0xff] %vm1276, %v1333
    %1341 = vst [vmem:[#allocation2 + $0x68] sm:$0xff] %v1336
    %1342 = vst.msk [vmem:[#allocation2 + $0x70] sm:$0xff] %vm184, %v1335
    %v1343 = vmax.f32 %v1214, %v1216
    %v1344 = vmax.f32 %v1215, %v1217
    %vm1345 = vcmp.gt.f32.partialorder %v1343, 0.0
    %vm1346 = vcmp.gt.f32.partialorder %v1344, 0.0
    %v1347 = vmul.f32 %v1343, 0.01
    %v1348 = vmul.f32 %v1344, 0.01
    %v1349 = vsel %vm1345, %v1343, %v1347
    %v1350 = vsel %vm1346, %v1344, %v1348
    %1353 = vrot.lane.b32.xlu0 %v1349, 32
    %v1354 = vpop.permute.xlu0 %1353
    %1355 = vrot.lane.b32.xlu0 %v1350, 32
    %v1356 = vpop.permute.xlu0 %1355
    %v1357 = vsel %vm184, %v1354, %v1356
    %1361 = vst.msk [vmem:[#allocation2 + $0x78] sm:$0xff] %vm1276, %v1354
    %1362 = vst [vmem:[#allocation2 + $0x80] sm:$0xff] %v1357
    %1363 = vst.msk [vmem:[#allocation2 + $0x88] sm:$0xff] %vm184, %v1356
    %v1364 = vmax.f32 %v1218, %v1220
    %v1365 = vmax.f32 %v1219, %v1221
    %vm1366 = vcmp.gt.f32.partialorder %v1364, 0.0
    %vm1367 = vcmp.gt.f32.partialorder %v1365, 0.0
    %v1368 = vmul.f32 %v1364, 0.01
    %v1369 = vmul.f32 %v1365, 0.01
    %v1370 = vsel %vm1366, %v1364, %v1368
    %v1371 = vsel %vm1367, %v1365, %v1369
    %1374 = vrot.lane.b32.xlu0 %v1370, 32
    %v1375 = vpop.permute.xlu0 %1374
    %1376 = vrot.lane.b32.xlu0 %v1371, 32
    %v1377 = vpop.permute.xlu0 %1376
    %v1378 = vsel %vm184, %v1375, %v1377
    %1382 = vst.msk [vmem:[#allocation2 + $0x90] sm:$0xff] %vm1276, %v1375
    %1383 = vst [vmem:[#allocation2 + $0x98] sm:$0xff] %v1378
    %1384 = vst.msk [vmem:[#allocation2 + $0xa0] sm:$0xff] %vm184, %v1377
    %v1385 = vmax.f32 %v1222, %v1224
    %v1386 = vmax.f32 %v1223, %v1225
    %vm1387 = vcmp.gt.f32.partialorder %v1385, 0.0
    %vm1388 = vcmp.gt.f32.partialorder %v1386, 0.0
    %v1389 = vmul.f32 %v1385, 0.01
    %v1390 = vmul.f32 %v1386, 0.01
    %v1391 = vsel %vm1387, %v1385, %v1389
    %v1392 = vsel %vm1388, %v1386, %v1390
    %1395 = vrot.lane.b32.xlu0 %v1391, 32
    %v1396 = vpop.permute.xlu0 %1395
    %1397 = vrot.lane.b32.xlu0 %v1392, 32
    %v1398 = vpop.permute.xlu0 %1397
    %v1399 = vsel %vm184, %v1396, %v1398
    %1403 = vst.msk [vmem:[#allocation2 + $0xa8] sm:$0xff] %vm1276, %v1396
    %1404 = vst [vmem:[#allocation2 + $0xb0] sm:$0xff] %v1399
    %1405 = vst.msk [vmem:[#allocation2 + $0xb8] sm:$0xff] %vm184, %v1398
    %v1406 = vmax.f32 %v1226, %v1228
    %v1407 = vmax.f32 %v1227, %v1229
    %vm1408 = vcmp.gt.f32.partialorder %v1406, 0.0
    %vm1409 = vcmp.gt.f32.partialorder %v1407, 0.0
    %v1410 = vmul.f32 %v1406, 0.01
    %v1411 = vmul.f32 %v1407, 0.01
    %v1412 = vsel %vm1408, %v1406, %v1410
    %v1413 = vsel %vm1409, %v1407, %v1411
    %1416 = vrot.lane.b32.xlu0 %v1412, 32
    %v1417 = vpop.permute.xlu0 %1416
    %1418 = vrot.lane.b32.xlu0 %v1413, 32
    %v1419 = vpop.permute.xlu0 %1418
    %v1420 = vsel %vm184, %v1417, %v1419
    %1424 = vst.msk [vmem:[#allocation2 + $0xc0] sm:$0xff] %vm1276, %v1417
    %1425 = vst [vmem:[#allocation2 + $0xc8] sm:$0xff] %v1420
    %1426 = vst.msk [vmem:[#allocation2 + $0xd0] sm:$0xff] %vm184, %v1419
    %v1427 = vld [vmem:[#allocation2] sm:$0xff]
    %v1428 = vld [vmem:[#allocation2 + $0x8] sm:$0xff]
    %v1429 = vld [vmem:[#allocation2 + $0x10] sm:$0xff]
    %v1430 = vld [vmem:[#allocation2 + $0x18] sm:$0xff]
    %v1431 = vld [vmem:[#allocation2 + $0x20] sm:$0xff]
    %v1432 = vld [vmem:[#allocation2 + $0x28] sm:$0xff]
    %v1433 = vld [vmem:[#allocation2 + $0x30] sm:$0xff]
    %v1434 = vld [vmem:[#allocation2 + $0x38] sm:$0xff]
    %v1435 = vld [vmem:[#allocation2 + $0x40] sm:$0xff]
    %v1436 = vld [vmem:[#allocation2 + $0x48] sm:$0xff]
    %v1437 = vld [vmem:[#allocation2 + $0x50] sm:$0xff]
    %v1438 = vld [vmem:[#allocation2 + $0x58] sm:$0xff]
    %v1439 = vld [vmem:[#allocation2 + $0x60] sm:$0xff]
    %v1440 = vld [vmem:[#allocation2 + $0x68] sm:$0xff]
    %v1441 = vld [vmem:[#allocation2 + $0x70] sm:$0xff]
    %v1442 = vld [vmem:[#allocation2 + $0x78] sm:$0xff]
    %v1443 = vld [vmem:[#allocation2 + $0x80] sm:$0xff]
    %v1444 = vld [vmem:[#allocation2 + $0x88] sm:$0xff]
    %v1445 = vld [vmem:[#allocation2 + $0x90] sm:$0xff]
    %v1446 = vld [vmem:[#allocation2 + $0x98] sm:$0xff]
    %v1447 = vld [vmem:[#allocation2 + $0xa0] sm:$0xff]
    %v1448 = vld [vmem:[#allocation2 + $0xa8] sm:$0xff]
    %v1449 = vld [vmem:[#allocation2 + $0xb0] sm:$0xff]
    %v1450 = vld [vmem:[#allocation2 + $0xb8] sm:$0xff]
    %v1451 = vpack.c.bf16 %v1430, %v1427
    %v1452 = vpack.c.bf16 %v1431, %v1428
    %v1453 = vpack.c.bf16 %v1432, %v1429
    %v1454 = vpack.c.bf16 %v1436, %v1433
    %v1455 = vpack.c.bf16 %v1437, %v1434
    %v1456 = vpack.c.bf16 %v1438, %v1435
    %v1457 = vpack.c.bf16 %v1442, %v1439
    %v1458 = vpack.c.bf16 %v1443, %v1440
    %v1459 = vpack.c.bf16 %v1444, %v1441
    %v1460 = vpack.c.bf16 %v1448, %v1445
    %v1461 = vpack.c.bf16 %v1449, %v1446
    %v1462 = vpack.c.bf16 %v1450, %v1447
    %v1463 = vld [vmem:[#allocation6] sm:$0xff]
    %v1464 = vld [vmem:[#allocation6 + $0x8] sm:$0xff]
    %v1465 = vld [vmem:[#allocation6 + $0x10] sm:$0xff]
    %v1466 = vld [vmem:[#allocation6 + $0x18] sm:$0xff]
    %v1467 = vld [vmem:[#allocation6 + $0x20] sm:$0xff]
    %v1468 = vld [vmem:[#allocation6 + $0x28] sm:$0xff]
    %v1469 = vld [vmem:[#allocation6 + $0x30] sm:$0xff]
    %v1470 = vld [vmem:[#allocation6 + $0x38] sm:$0xff]
    %v1471 = vld [vmem:[#allocation6 + $0x40] sm:$0xff]
    %v1472 = vld [vmem:[#allocation6 + $0x48] sm:$0xff]
    %v1473 = vld [vmem:[#allocation6 + $0x50] sm:$0xff]
    %v1474 = vld [vmem:[#allocation6 + $0x58] sm:$0xff]
    %v1475 = vld [vmem:[#allocation6 + $0x60] sm:$0xff]
    %v1476 = vld [vmem:[#allocation6 + $0x68] sm:$0xff]
    %v1477 = vld [vmem:[#allocation6 + $0x70] sm:$0xff]
    %v1478 = vld [vmem:[#allocation6 + $0x78] sm:$0xff]
    %v1479 = vld [vmem:[#allocation6 + $0x80] sm:$0xff]
    %v1480 = vld [vmem:[#allocation6 + $0x88] sm:$0xff]
    %v1481 = vld [vmem:[#allocation6 + $0x90] sm:$0xff]
    %v1482 = vld [vmem:[#allocation6 + $0x98] sm:$0xff]
    %v1483 = vld [vmem:[#allocation6 + $0xa0] sm:$0xff]
    %v1484 = vld [vmem:[#allocation6 + $0xa8] sm:$0xff]
    %v1485 = vld [vmem:[#allocation6 + $0xb0] sm:$0xff]
    %v1486 = vld [vmem:[#allocation6 + $0xb8] sm:$0xff]
    %v1487 = vld [vmem:[#allocation6 + $0xc0] sm:$0xff]
    %v1488 = vld [vmem:[#allocation6 + $0xc8] sm:$0xff]
    %v1489 = vld [vmem:[#allocation6 + $0xd0] sm:$0xff]
    %v1490 = vld [vmem:[#allocation6 + $0xd8] sm:$0xff]
    %v1491 = vld [vmem:[#allocation6 + $0xe0] sm:$0xff]
    %v1492 = vld [vmem:[#allocation6 + $0xe8] sm:$0xff]
    %v1493 = vld [vmem:[#allocation6 + $0xf0] sm:$0xff]
    %v1494 = vld [vmem:[#allocation6 + $0xf8] sm:$0xff]
    %v1495 = vld [vmem:[#allocation6 + $0x100] sm:$0xff]
    %v1496 = vld [vmem:[#allocation6 + $0x108] sm:$0xff]
    %v1497 = vld [vmem:[#allocation6 + $0x110] sm:$0xff]
    %v1498 = vld [vmem:[#allocation6 + $0x118] sm:$0xff]
    %v1499 = vld [vmem:[#allocation6 + $0x120] sm:$0xff]
    %v1500 = vld [vmem:[#allocation6 + $0x128] sm:$0xff]
    %v1501 = vld [vmem:[#allocation6 + $0x130] sm:$0xff]
    %v1502 = vld [vmem:[#allocation6 + $0x138] sm:$0xff]
    %v1503 = vld [vmem:[#allocation2 + $0xc0] sm:$0xff]
    %v1504 = vld [vmem:[#allocation2 + $0xc8] sm:$0xff]
    %v1505 = vld [vmem:[#allocation2 + $0xd0] sm:$0xff]
    %v1506 = vpack.c.bf16 %v1433, %v1430
    %v1507 = vpack.c.bf16 %v1434, %v1431
    %v1508 = vpack.c.bf16 %v1435, %v1432
    %v1509 = vpack.c.bf16 %v1439, %v1436
    %v1510 = vpack.c.bf16 %v1440, %v1437
    %v1511 = vpack.c.bf16 %v1441, %v1438
    %v1512 = vpack.c.bf16 %v1445, %v1442
    %v1513 = vpack.c.bf16 %v1446, %v1443
    %v1514 = vpack.c.bf16 %v1447, %v1444
    %v1515 = vpack.c.bf16 %v1503, %v1448
    %v1516 = vpack.c.bf16 %v1504, %v1449
    %v1517 = vpack.c.bf16 %v1505, %v1450
    %s1518 = scalar_lea.vmem [#allocation6], 320
    %v1519 = vld [vmem:[%s1518] sm:$0xff]
    %v1520 = vld [vmem:[%s1518 + $0x8] sm:$0xff]
    %v1521 = vld [vmem:[%s1518 + $0x10] sm:$0xff]
    %v1522 = vld [vmem:[%s1518 + $0x18] sm:$0xff]
    %v1523 = vld [vmem:[%s1518 + $0x20] sm:$0xff]
    %v1524 = vld [vmem:[%s1518 + $0x28] sm:$0xff]
    %v1525 = vld [vmem:[%s1518 + $0x30] sm:$0xff]
    %v1526 = vld [vmem:[%s1518 + $0x38] sm:$0xff]
    %v1527 = vld [vmem:[%s1518 + $0x40] sm:$0xff]
    %v1528 = vld [vmem:[%s1518 + $0x48] sm:$0xff]
    %v1529 = vld [vmem:[%s1518 + $0x50] sm:$0xff]
    %v1530 = vld [vmem:[%s1518 + $0x58] sm:$0xff]
    %v1531 = vld [vmem:[%s1518 + $0x60] sm:$0xff]
    %v1532 = vld [vmem:[%s1518 + $0x68] sm:$0xff]
    %v1533 = vld [vmem:[%s1518 + $0x70] sm:$0xff]
    %v1534 = vld [vmem:[%s1518 + $0x78] sm:$0xff]
    %v1535 = vld [vmem:[%s1518 + $0x80] sm:$0xff]
    %v1536 = vld [vmem:[%s1518 + $0x88] sm:$0xff]
    %v1537 = vld [vmem:[%s1518 + $0x90] sm:$0xff]
    %v1538 = vld [vmem:[%s1518 + $0x98] sm:$0xff]
    %v1539 = vld [vmem:[%s1518 + $0xa0] sm:$0xff]
    %v1540 = vld [vmem:[%s1518 + $0xa8] sm:$0xff]
    %v1541 = vld [vmem:[%s1518 + $0xb0] sm:$0xff]
    %v1542 = vld [vmem:[%s1518 + $0xb8] sm:$0xff]
    %v1543 = vld [vmem:[%s1518 + $0xc0] sm:$0xff]
    %v1544 = vld [vmem:[%s1518 + $0xc8] sm:$0xff]
    %v1545 = vld [vmem:[%s1518 + $0xd0] sm:$0xff]
    %v1546 = vld [vmem:[%s1518 + $0xd8] sm:$0xff]
    %v1547 = vld [vmem:[%s1518 + $0xe0] sm:$0xff]
    %v1548 = vld [vmem:[%s1518 + $0xe8] sm:$0xff]
    %v1549 = vld [vmem:[%s1518 + $0xf0] sm:$0xff]
    %v1550 = vld [vmem:[%s1518 + $0xf8] sm:$0xff]
    %v1551 = vld [vmem:[%s1518 + $0x100] sm:$0xff]
    %v1552 = vld [vmem:[%s1518 + $0x108] sm:$0xff]
    %v1553 = vld [vmem:[%s1518 + $0x110] sm:$0xff]
    %v1554 = vld [vmem:[%s1518 + $0x118] sm:$0xff]
    %v1555 = vld [vmem:[%s1518 + $0x120] sm:$0xff]
    %v1556 = vld [vmem:[%s1518 + $0x128] sm:$0xff]
    %v1557 = vld [vmem:[%s1518 + $0x130] sm:$0xff]
    %v1558 = vld [vmem:[%s1518 + $0x138] sm:$0xff]
    %v1599 = vunpack.c.l.b16 %v1519
    %v1600 = vunpack.c.h.b16 %v1519
    %v1601 = vunpack.c.l.b16 %v1520
    %v1602 = vunpack.c.h.b16 %v1520
    %v1603 = vunpack.c.l.b16 %v1521
    %v1604 = vunpack.c.h.b16 %v1521
    %v1605 = vunpack.c.l.b16 %v1522
    %v1606 = vunpack.c.h.b16 %v1522
    %v1607 = vunpack.c.l.b16 %v1523
    %v1608 = vunpack.c.h.b16 %v1523
    %v1609 = vunpack.c.l.b16 %v1524
    %v1610 = vunpack.c.h.b16 %v1524
    %v1611 = vunpack.c.l.b16 %v1525
    %v1612 = vunpack.c.h.b16 %v1525
    %v1613 = vunpack.c.l.b16 %v1526
    %v1614 = vunpack.c.h.b16 %v1526
    %v1615 = vunpack.c.l.b16 %v1527
    %v1616 = vunpack.c.h.b16 %v1527
    %v1617 = vunpack.c.l.b16 %v1528
    %v1618 = vunpack.c.h.b16 %v1528
    %v1619 = vunpack.c.l.b16 %v1529
    %v1620 = vunpack.c.h.b16 %v1529
    %v1621 = vunpack.c.l.b16 %v1530
    %v1622 = vunpack.c.h.b16 %v1530
    %v1623 = vunpack.c.l.b16 %v1531
    %v1624 = vunpack.c.h.b16 %v1531
    %v1625 = vunpack.c.l.b16 %v1532
    %v1626 = vunpack.c.h.b16 %v1532
    %v1627 = vunpack.c.l.b16 %v1533
    %v1628 = vunpack.c.h.b16 %v1533
    %v1629 = vunpack.c.l.b16 %v1534
    %v1630 = vunpack.c.h.b16 %v1534
    %v1631 = vunpack.c.l.b16 %v1535
    %v1632 = vunpack.c.h.b16 %v1535
    %v1633 = vunpack.c.l.b16 %v1536
    %v1634 = vunpack.c.h.b16 %v1536
    %v1635 = vunpack.c.l.b16 %v1537
    %v1636 = vunpack.c.h.b16 %v1537
    %v1637 = vunpack.c.l.b16 %v1538
    %v1638 = vunpack.c.h.b16 %v1538
    %v1639 = vunpack.c.l.b16 %v1539
    %v1640 = vunpack.c.h.b16 %v1539
    %v1641 = vunpack.c.l.b16 %v1540
    %v1642 = vunpack.c.h.b16 %v1540
    %v1643 = vunpack.c.l.b16 %v1541
    %v1644 = vunpack.c.h.b16 %v1541
    %v1645 = vunpack.c.l.b16 %v1542
    %v1646 = vunpack.c.h.b16 %v1542
    %v1647 = vunpack.c.l.b16 %v1543
    %v1648 = vunpack.c.h.b16 %v1543
    %v1649 = vunpack.c.l.b16 %v1544
    %v1650 = vunpack.c.h.b16 %v1544
    %v1651 = vunpack.c.l.b16 %v1545
    %v1652 = vunpack.c.h.b16 %v1545
    %v1653 = vunpack.c.l.b16 %v1546
    %v1654 = vunpack.c.h.b16 %v1546
    %v1655 = vunpack.c.l.b16 %v1547
    %v1656 = vunpack.c.h.b16 %v1547
    %v1657 = vunpack.c.l.b16 %v1548
    %v1658 = vunpack.c.h.b16 %v1548
    %v1659 = vunpack.c.l.b16 %v1549
    %v1660 = vunpack.c.h.b16 %v1549
    %v1661 = vunpack.c.l.b16 %v1550
    %v1662 = vunpack.c.h.b16 %v1550
    %v1663 = vunpack.c.l.b16 %v1551
    %v1664 = vunpack.c.h.b16 %v1551
    %v1665 = vunpack.c.l.b16 %v1552
    %v1666 = vunpack.c.h.b16 %v1552
    %v1667 = vunpack.c.l.b16 %v1553
    %v1668 = vunpack.c.h.b16 %v1553
    %v1669 = vunpack.c.l.b16 %v1554
    %v1670 = vunpack.c.h.b16 %v1554
    %v1671 = vunpack.c.l.b16 %v1555
    %v1672 = vunpack.c.h.b16 %v1555
    %v1673 = vunpack.c.l.b16 %v1556
    %v1674 = vunpack.c.h.b16 %v1556
    %v1675 = vunpack.c.l.b16 %v1557
    %v1676 = vunpack.c.h.b16 %v1557
    %v1677 = vunpack.c.l.b16 %v1558
    %v1678 = vunpack.c.h.b16 %v1558
    %v1679 = vpack.c.b16 %v1601, %v1599
    %v1680 = vpack.c.b16 %v1602, %v1600
    %v1681 = vpack.c.b16 %v1605, %v1603
    %v1682 = vpack.c.b16 %v1606, %v1604
    %v1683 = vpack.c.b16 %v1609, %v1607
    %v1684 = vpack.c.b16 %v1610, %v1608
    %v1685 = vpack.c.b16 %v1613, %v1611
    %v1686 = vpack.c.b16 %v1614, %v1612
    %v1687 = vpack.c.b16 %v1617, %v1615
    %v1688 = vpack.c.b16 %v1618, %v1616
    %v1689 = vpack.c.b16 %v1621, %v1619
    %v1690 = vpack.c.b16 %v1622, %v1620
    %v1691 = vpack.c.b16 %v1625, %v1623
    %v1692 = vpack.c.b16 %v1626, %v1624
    %v1693 = vpack.c.b16 %v1629, %v1627
    %v1694 = vpack.c.b16 %v1630, %v1628
    %v1695 = vpack.c.b16 %v1633, %v1631
    %v1696 = vpack.c.b16 %v1634, %v1632
    %v1697 = vpack.c.b16 %v1637, %v1635
    %v1698 = vpack.c.b16 %v1638, %v1636
    %v1699 = vpack.c.b16 %v1641, %v1639
    %v1700 = vpack.c.b16 %v1642, %v1640
    %v1701 = vpack.c.b16 %v1645, %v1643
    %v1702 = vpack.c.b16 %v1646, %v1644
    %v1703 = vpack.c.b16 %v1649, %v1647
    %v1704 = vpack.c.b16 %v1650, %v1648
    %v1705 = vpack.c.b16 %v1653, %v1651
    %v1706 = vpack.c.b16 %v1654, %v1652
    %v1707 = vpack.c.b16 %v1657, %v1655
    %v1708 = vpack.c.b16 %v1658, %v1656
    %v1709 = vpack.c.b16 %v1661, %v1659
    %v1710 = vpack.c.b16 %v1662, %v1660
    %v1711 = vpack.c.b16 %v1665, %v1663
    %v1712 = vpack.c.b16 %v1666, %v1664
    %v1713 = vpack.c.b16 %v1669, %v1667
    %v1714 = vpack.c.b16 %v1670, %v1668
    %v1715 = vpack.c.b16 %v1673, %v1671
    %v1716 = vpack.c.b16 %v1674, %v1672
    %v1717 = vpack.c.b16 %v1677, %v1675
    %v1718 = vpack.c.b16 %v1678, %v1676
    %v1760 = vsel %vm1232, %v1508, 0
    %v1763 = vsel %vm1232, %v1511, 0
    %v1766 = vsel %vm1232, %v1514, 0
    %v1769 = vsel %vm1232, %v1517, 0
    %1771 = vmatprep.subr.bf16.mxu0 %v1680
    %1772 = vmatpush1.bf16.msra.mxu0 %v1679
    %1773 = vmatprep.subr.bf16.mxu0 %v1682
    %1774 = vmatpush1.bf16.msra.mxu0 %v1681
    %1775 = vmatprep.subr.bf16.mxu0 %v1684
    %1776 = vmatpush1.bf16.msra.mxu0 %v1683
    %1777 = vmatprep.subr.bf16.mxu0 %v1686
    %1778 = vmatpush1.bf16.msra.mxu0 %v1685
    %1779 = vmatprep.subr.bf16.mxu0 %v1688
    %1780 = vmatpush1.bf16.msra.mxu0 %v1687
    %1781 = vmatprep.subr.bf16.mxu0 %v1690
    %1782 = vmatpush1.bf16.msra.mxu0 %v1689
    %1783 = vmatprep.subr.bf16.mxu0 %v1692
    %1784 = vmatpush1.bf16.msra.mxu0 %v1691
    %1785 = vmatprep.subr.bf16.mxu0 %v1694
    %1786 = vmatpush1.bf16.msra.mxu0 %v1693
    %1787 = vmatprep.subr.bf16.mxu0 %v1696
    %1788 = vmatpush1.bf16.msra.mxu0 %v1695
    %1789 = vmatprep.subr.bf16.mxu0 %v1698
    %1790 = vmatpush1.bf16.msra.mxu0 %v1697
    %1791 = vmatprep.subr.bf16.mxu0 %v1700
    %1792 = vmatpush1.bf16.msra.mxu0 %v1699
    %1793 = vmatprep.subr.bf16.mxu0 %v1702
    %1794 = vmatpush1.bf16.msra.mxu0 %v1701
    %1795 = vmatprep.subr.bf16.mxu0 %v1704
    %1796 = vmatpush1.bf16.msra.mxu0 %v1703
    %1797 = vmatprep.subr.bf16.mxu0 %v1706
    %1798 = vmatpush1.bf16.msra.mxu0 %v1705
    %1799 = vmatprep.subr.bf16.mxu0 %v1708
    %1800 = vmatpush1.bf16.msra.mxu0 %v1707
    %1801 = vmatprep.subr.bf16.mxu0 %v1710
    %1802 = vmatpush1.bf16.msra.mxu0 %v1709
    %1803 = vmatprep.mubr.bf16.mxu0 %v1507
    %1804 = vmatmul.mubr.bf16.gmra.mrb[0].mxu0 %v1506
    %v1805 = vpop.f32.mrb[0].mxu0
    %v1806 = vadd.f32 0.0, %v1805
    %v1807 = vpop.f32.mrb[0].mxu0
    %v1808 = vadd.f32 0.0, %v1807
    %v1809 = vpop.f32.mrb[0].mxu0
    %v1810 = vadd.f32 0.0, %v1809
    %v1811 = vpop.f32.mrb[0].mxu0
    %v1812 = vadd.f32 0.0, %v1811
    %1813 = vmatprep.mubr.bf16.mxu0 %v1510
    %1814 = vmatmul.mubr.bf16.gmra.mrb[0].mxu0 %v1509
    %v1815 = vpop.f32.mrb[0].mxu0
    %v1816 = vadd.f32 0.0, %v1815
    %v1817 = vpop.f32.mrb[0].mxu0
    %v1818 = vadd.f32 0.0, %v1817
    %v1819 = vpop.f32.mrb[0].mxu0
    %v1820 = vadd.f32 0.0, %v1819
    %v1821 = vpop.f32.mrb[0].mxu0
    %v1822 = vadd.f32 0.0, %v1821
    %1823 = vmatprep.mubr.bf16.mxu0 %v1513
    %1824 = vmatmul.mubr.bf16.gmra.mrb[0].mxu0 %v1512
    %v1825 = vpop.f32.mrb[0].mxu0
    %v1826 = vadd.f32 0.0, %v1825
    %v1827 = vpop.f32.mrb[0].mxu0
    %v1828 = vadd.f32 0.0, %v1827
    %v1829 = vpop.f32.mrb[0].mxu0
    %v1830 = vadd.f32 0.0, %v1829
    %v1831 = vpop.f32.mrb[0].mxu0
    %v1832 = vadd.f32 0.0, %v1831
    %1833 = vmatprep.mubr.bf16.mxu0 %v1516
    %1834 = vmatmul.mubr.bf16.gmra.mrb[0].mxu0 %v1515
    %v1835 = vpop.f32.mrb[0].mxu0
    %v1836 = vadd.f32 0.0, %v1835
    %v1837 = vpop.f32.mrb[0].mxu0
    %v1838 = vadd.f32 0.0, %v1837
    %v1839 = vpop.f32.mrb[0].mxu0
    %v1840 = vadd.f32 0.0, %v1839
    %v1841 = vpop.f32.mrb[0].mxu0
    %v1842 = vadd.f32 0.0, %v1841
    %1843 = vdwg.mxu0
    %1844 = vmatprep.subr.bf16.mxu0 %v1712
    %1845 = vmatpush1.bf16.msra.mxu0 %v1711
    %1846 = vmatprep.subr.bf16.mxu0 %v1714
    %1847 = vmatpush1.bf16.msra.mxu0 %v1713
    %1848 = vmatprep.subr.bf16.mxu0 %v1716
    %1849 = vmatpush1.bf16.msra.mxu0 %v1715
    %1850 = vmatprep.subr.bf16.mxu0 %v1718
    %1851 = vmatpush1.bf16.msra.mxu0 %v1717
    %1852 = vmatprep.subr.bf16.mxu0 0
    %1853 = vmatpush1.bf16.msra.mxu0 0
    %1854 = vmatprep.subr.bf16.mxu0 0
    %1855 = vmatpush1.bf16.msra.mxu0 0
    %1856 = vmatprep.subr.bf16.mxu0 0
    %1857 = vmatpush1.bf16.msra.mxu0 0
    %1858 = vmatprep.subr.bf16.mxu0 0
    %1859 = vmatpush1.bf16.msra.mxu0 0
    %1860 = vmatprep.subr.bf16.mxu0 0
    %1861 = vmatpush1.bf16.msra.mxu0 0
    %1862 = vmatprep.subr.bf16.mxu0 0
    %1863 = vmatpush1.bf16.msra.mxu0 0
    %1864 = vmatprep.subr.bf16.mxu0 0
    %1865 = vmatpush1.bf16.msra.mxu0 0
    %1866 = vmatprep.subr.bf16.mxu0 0
    %1867 = vmatpush1.bf16.msra.mxu0 0
    %1868 = vmatprep.subr.bf16.mxu0 0
    %1869 = vmatpush1.bf16.msra.mxu0 0
    %1870 = vmatprep.subr.bf16.mxu0 0
    %1871 = vmatpush1.bf16.msra.mxu0 0
    %1872 = vmatprep.subr.bf16.mxu0 0
    %1873 = vmatpush1.bf16.msra.mxu0 0
    %1874 = vmatprep.subr.bf16.mxu0 0
    %1875 = vmatpush1.bf16.msra.mxu0 0
    %1876 = vmatprep.mubr.bf16.mxu0 0
    %1877 = vmatmul.mubr.bf16.gmra.mrb[0].mxu0 %v1760
    %v1878 = vpop.f32.mrb[0].mxu0
    %v1879 = vadd.f32 %v1806, %v1878
    %v1880 = vpop.f32.mrb[0].mxu0
    %v1881 = vadd.f32 %v1808, %v1880
    %v1882 = vpop.f32.mrb[0].mxu0
    %v1883 = vadd.f32 %v1810, %v1882
    %v1884 = vpop.f32.mrb[0].mxu0
    %v1885 = vadd.f32 %v1812, %v1884
    %1886 = vmatprep.mubr.bf16.mxu0 0
    %1887 = vmatmul.mubr.bf16.gmra.mrb[0].mxu0 %v1763
    %v1888 = vpop.f32.mrb[0].mxu0
    %v1889 = vadd.f32 %v1816, %v1888
    %v1890 = vpop.f32.mrb[0].mxu0
    %v1891 = vadd.f32 %v1818, %v1890
    %v1892 = vpop.f32.mrb[0].mxu0
    %v1893 = vadd.f32 %v1820, %v1892
    %v1894 = vpop.f32.mrb[0].mxu0
    %v1895 = vadd.f32 %v1822, %v1894
    %1896 = vmatprep.mubr.bf16.mxu0 0
    %1897 = vmatmul.mubr.bf16.gmra.mrb[0].mxu0 %v1766
    %v1898 = vpop.f32.mrb[0].mxu0
    %v1899 = vadd.f32 %v1826, %v1898
    %v1900 = vpop.f32.mrb[0].mxu0
    %v1901 = vadd.f32 %v1828, %v1900
    %v1902 = vpop.f32.mrb[0].mxu0
    %v1903 = vadd.f32 %v1830, %v1902
    %v1904 = vpop.f32.mrb[0].mxu0
    %v1905 = vadd.f32 %v1832, %v1904
    %1906 = vmatprep.mubr.bf16.mxu0 0
    %1907 = vmatmul.mubr.bf16.gmra.mrb[0].mxu0 %v1769
    %v1908 = vpop.f32.mrb[0].mxu0
    %v1909 = vadd.f32 %v1836, %v1908
    %v1910 = vpop.f32.mrb[0].mxu0
    %v1911 = vadd.f32 %v1838, %v1910
    %v1912 = vpop.f32.mrb[0].mxu0
    %v1913 = vadd.f32 %v1840, %v1912
    %v1914 = vpop.f32.mrb[0].mxu0
    %v1915 = vadd.f32 %v1842, %v1914
    %1916 = vdwg.mxu0
    %v1957 = vunpack.c.l.b16 %v1463
    %v1958 = vunpack.c.h.b16 %v1463
    %v1959 = vunpack.c.l.b16 %v1464
    %v1960 = vunpack.c.h.b16 %v1464
    %v1961 = vunpack.c.l.b16 %v1465
    %v1962 = vunpack.c.h.b16 %v1465
    %v1963 = vunpack.c.l.b16 %v1466
    %v1964 = vunpack.c.h.b16 %v1466
    %v1965 = vunpack.c.l.b16 %v1467
    %v1966 = vunpack.c.h.b16 %v1467
    %v1967 = vunpack.c.l.b16 %v1468
    %v1968 = vunpack.c.h.b16 %v1468
    %v1969 = vunpack.c.l.b16 %v1469
    %v1970 = vunpack.c.h.b16 %v1469
    %v1971 = vunpack.c.l.b16 %v1470
    %v1972 = vunpack.c.h.b16 %v1470
    %v1973 = vunpack.c.l.b16 %v1471
    %v1974 = vunpack.c.h.b16 %v1471
    %v1975 = vunpack.c.l.b16 %v1472
    %v1976 = vunpack.c.h.b16 %v1472
    %v1977 = vunpack.c.l.b16 %v1473
    %v1978 = vunpack.c.h.b16 %v1473
    %v1979 = vunpack.c.l.b16 %v1474
    %v1980 = vunpack.c.h.b16 %v1474
    %v1981 = vunpack.c.l.b16 %v1475
    %v1982 = vunpack.c.h.b16 %v1475
    %v1983 = vunpack.c.l.b16 %v1476
    %v1984 = vunpack.c.h.b16 %v1476
    %v1985 = vunpack.c.l.b16 %v1477
    %v1986 = vunpack.c.h.b16 %v1477
    %v1987 = vunpack.c.l.b16 %v1478
    %v1988 = vunpack.c.h.b16 %v1478
    %v1989 = vunpack.c.l.b16 %v1479
    %v1990 = vunpack.c.h.b16 %v1479
    %v1991 = vunpack.c.l.b16 %v1480
    %v1992 = vunpack.c.h.b16 %v1480
    %v1993 = vunpack.c.l.b16 %v1481
    %v1994 = vunpack.c.h.b16 %v1481
    %v1995 = vunpack.c.l.b16 %v1482
    %v1996 = vunpack.c.h.b16 %v1482
    %v1997 = vunpack.c.l.b16 %v1483
    %v1998 = vunpack.c.h.b16 %v1483
    %v1999 = vunpack.c.l.b16 %v1484
    %v2000 = vunpack.c.h.b16 %v1484
    %v2001 = vunpack.c.l.b16 %v1485
    %v2002 = vunpack.c.h.b16 %v1485
    %v2003 = vunpack.c.l.b16 %v1486
    %v2004 = vunpack.c.h.b16 %v1486
    %v2005 = vunpack.c.l.b16 %v1487
    %v2006 = vunpack.c.h.b16 %v1487
    %v2007 = vunpack.c.l.b16 %v1488
    %v2008 = vunpack.c.h.b16 %v1488
    %v2009 = vunpack.c.l.b16 %v1489
    %v2010 = vunpack.c.h.b16 %v1489
    %v2011 = vunpack.c.l.b16 %v1490
    %v2012 = vunpack.c.h.b16 %v1490
    %v2013 = vunpack.c.l.b16 %v1491
    %v2014 = vunpack.c.h.b16 %v1491
    %v2015 = vunpack.c.l.b16 %v1492
    %v2016 = vunpack.c.h.b16 %v1492
    %v2017 = vunpack.c.l.b16 %v1493
    %v2018 = vunpack.c.h.b16 %v1493
    %v2019 = vunpack.c.l.b16 %v1494
    %v2020 = vunpack.c.h.b16 %v1494
    %v2021 = vunpack.c.l.b16 %v1495
    %v2022 = vunpack.c.h.b16 %v1495
    %v2023 = vunpack.c.l.b16 %v1496
    %v2024 = vunpack.c.h.b16 %v1496
    %v2025 = vunpack.c.l.b16 %v1497
    %v2026 = vunpack.c.h.b16 %v1497
    %v2027 = vunpack.c.l.b16 %v1498
    %v2028 = vunpack.c.h.b16 %v1498
    %v2029 = vunpack.c.l.b16 %v1499
    %v2030 = vunpack.c.h.b16 %v1499
    %v2031 = vunpack.c.l.b16 %v1500
    %v2032 = vunpack.c.h.b16 %v1500
    %v2033 = vunpack.c.l.b16 %v1501
    %v2034 = vunpack.c.h.b16 %v1501
    %v2035 = vunpack.c.l.b16 %v1502
    %v2036 = vunpack.c.h.b16 %v1502
    %v2037 = vpack.c.b16 %v1959, %v1957
    %v2038 = vpack.c.b16 %v1960, %v1958
    %v2039 = vpack.c.b16 %v1963, %v1961
    %v2040 = vpack.c.b16 %v1964, %v1962
    %v2041 = vpack.c.b16 %v1967, %v1965
    %v2042 = vpack.c.b16 %v1968, %v1966
    %v2043 = vpack.c.b16 %v1971, %v1969
    %v2044 = vpack.c.b16 %v1972, %v1970
    %v2045 = vpack.c.b16 %v1975, %v1973
    %v2046 = vpack.c.b16 %v1976, %v1974
    %v2047 = vpack.c.b16 %v1979, %v1977
    %v2048 = vpack.c.b16 %v1980, %v1978
    %v2049 = vpack.c.b16 %v1983, %v1981
    %v2050 = vpack.c.b16 %v1984, %v1982
    %v2051 = vpack.c.b16 %v1987, %v1985
    %v2052 = vpack.c.b16 %v1988, %v1986
    %v2053 = vpack.c.b16 %v1991, %v1989
    %v2054 = vpack.c.b16 %v1992, %v1990
    %v2055 = vpack.c.b16 %v1995, %v1993
    %v2056 = vpack.c.b16 %v1996, %v1994
    %v2057 = vpack.c.b16 %v1999, %v1997
    %v2058 = vpack.c.b16 %v2000, %v1998
    %v2059 = vpack.c.b16 %v2003, %v2001
    %v2060 = vpack.c.b16 %v2004, %v2002
    %v2061 = vpack.c.b16 %v2007, %v2005
    %v2062 = vpack.c.b16 %v2008, %v2006
    %v2063 = vpack.c.b16 %v2011, %v2009
    %v2064 = vpack.c.b16 %v2012, %v2010
    %v2065 = vpack.c.b16 %v2015, %v2013
    %v2066 = vpack.c.b16 %v2016, %v2014
    %v2067 = vpack.c.b16 %v2019, %v2017
    %v2068 = vpack.c.b16 %v2020, %v2018
    %v2069 = vpack.c.b16 %v2023, %v2021
    %v2070 = vpack.c.b16 %v2024, %v2022
    %v2071 = vpack.c.b16 %v2027, %v2025
    %v2072 = vpack.c.b16 %v2028, %v2026
    %v2073 = vpack.c.b16 %v2031, %v2029
    %v2074 = vpack.c.b16 %v2032, %v2030
    %v2075 = vpack.c.b16 %v2035, %v2033
    %v2076 = vpack.c.b16 %v2036, %v2034
    %v2118 = vsel %vm1232, %v1453, 0
    %v2121 = vsel %vm1232, %v1456, 0
    %v2124 = vsel %vm1232, %v1459, 0
    %v2127 = vsel %vm1232, %v1462, 0
    %2129 = vmatprep.subr.bf16.mxu0 %v2038
    %2130 = vmatpush1.bf16.msra.mxu0 %v2037
    %2131 = vmatprep.subr.bf16.mxu0 %v2040
    %2132 = vmatpush1.bf16.msra.mxu0 %v2039
    %2133 = vmatprep.subr.bf16.mxu0 %v2042
    %2134 = vmatpush1.bf16.msra.mxu0 %v2041
    %2135 = vmatprep.subr.bf16.mxu0 %v2044
    %2136 = vmatpush1.bf16.msra.mxu0 %v2043
    %2137 = vmatprep.subr.bf16.mxu0 %v2046
    %2138 = vmatpush1.bf16.msra.mxu0 %v2045
    %2139 = vmatprep.subr.bf16.mxu0 %v2048
    %2140 = vmatpush1.bf16.msra.mxu0 %v2047
    %2141 = vmatprep.subr.bf16.mxu0 %v2050
    %2142 = vmatpush1.bf16.msra.mxu0 %v2049
    %2143 = vmatprep.subr.bf16.mxu0 %v2052
    %2144 = vmatpush1.bf16.msra.mxu0 %v2051
    %2145 = vmatprep.subr.bf16.mxu0 %v2054
    %2146 = vmatpush1.bf16.msra.mxu0 %v2053
    %2147 = vmatprep.subr.bf16.mxu0 %v2056
    %2148 = vmatpush1.bf16.msra.mxu0 %v2055
    %2149 = vmatprep.subr.bf16.mxu0 %v2058
    %2150 = vmatpush1.bf16.msra.mxu0 %v2057
    %2151 = vmatprep.subr.bf16.mxu0 %v2060
    %2152 = vmatpush1.bf16.msra.mxu0 %v2059
    %2153 = vmatprep.subr.bf16.mxu0 %v2062
    %2154 = vmatpush1.bf16.msra.mxu0 %v2061
    %2155 = vmatprep.subr.bf16.mxu0 %v2064
    %2156 = vmatpush1.bf16.msra.mxu0 %v2063
    %2157 = vmatprep.subr.bf16.mxu0 %v2066
    %2158 = vmatpush1.bf16.msra.mxu0 %v2065
    %2159 = vmatprep.subr.bf16.mxu0 %v2068
    %2160 = vmatpush1.bf16.msra.mxu0 %v2067
    %2161 = vmatprep.mubr.bf16.mxu0 %v1452
    %2162 = vmatmul.mubr.bf16.gmra.mrb[0].mxu0 %v1451
    %v2163 = vpop.f32.mrb[0].mxu0
    %v2164 = vadd.f32 %v1879, %v2163
    %v2165 = vpop.f32.mrb[0].mxu0
    %v2166 = vadd.f32 %v1881, %v2165
    %v2167 = vpop.f32.mrb[0].mxu0
    %v2168 = vadd.f32 %v1883, %v2167
    %v2169 = vpop.f32.mrb[0].mxu0
    %v2170 = vadd.f32 %v1885, %v2169
    %2171 = vmatprep.mubr.bf16.mxu0 %v1455
    %2172 = vmatmul.mubr.bf16.gmra.mrb[0].mxu0 %v1454
    %v2173 = vpop.f32.mrb[0].mxu0
    %v2174 = vadd.f32 %v1889, %v2173
    %v2175 = vpop.f32.mrb[0].mxu0
    %v2176 = vadd.f32 %v1891, %v2175
    %v2177 = vpop.f32.mrb[0].mxu0
    %v2178 = vadd.f32 %v1893, %v2177
    %v2179 = vpop.f32.mrb[0].mxu0
    %v2180 = vadd.f32 %v1895, %v2179
    %2181 = vmatprep.mubr.bf16.mxu0 %v1458
    %2182 = vmatmul.mubr.bf16.gmra.mrb[0].mxu0 %v1457
    %v2183 = vpop.f32.mrb[0].mxu0
    %v2184 = vadd.f32 %v1899, %v2183
    %v2185 = vpop.f32.mrb[0].mxu0
    %v2186 = vadd.f32 %v1901, %v2185
    %v2187 = vpop.f32.mrb[0].mxu0
    %v2188 = vadd.f32 %v1903, %v2187
    %v2189 = vpop.f32.mrb[0].mxu0
    %v2190 = vadd.f32 %v1905, %v2189
    %2191 = vmatprep.mubr.bf16.mxu0 %v1461
    %2192 = vmatmul.mubr.bf16.gmra.mrb[0].mxu0 %v1460
    %v2193 = vpop.f32.mrb[0].mxu0
    %v2194 = vadd.f32 %v1909, %v2193
    %v2195 = vpop.f32.mrb[0].mxu0
    %v2196 = vadd.f32 %v1911, %v2195
    %v2197 = vpop.f32.mrb[0].mxu0
    %v2198 = vadd.f32 %v1913, %v2197
    %v2199 = vpop.f32.mrb[0].mxu0
    %v2200 = vadd.f32 %v1915, %v2199
    %2201 = vdwg.mxu0
    %2202 = vmatprep.subr.bf16.mxu0 %v2070
    %2203 = vmatpush1.bf16.msra.mxu0 %v2069
    %2204 = vmatprep.subr.bf16.mxu0 %v2072
    %2205 = vmatpush1.bf16.msra.mxu0 %v2071
    %2206 = vmatprep.subr.bf16.mxu0 %v2074
    %2207 = vmatpush1.bf16.msra.mxu0 %v2073
    %2208 = vmatprep.subr.bf16.mxu0 %v2076
    %2209 = vmatpush1.bf16.msra.mxu0 %v2075
    %2210 = vmatprep.subr.bf16.mxu0 0
    %2211 = vmatpush1.bf16.msra.mxu0 0
    %2212 = vmatprep.subr.bf16.mxu0 0
    %2213 = vmatpush1.bf16.msra.mxu0 0
    %2214 = vmatprep.subr.bf16.mxu0 0
    %2215 = vmatpush1.bf16.msra.mxu0 0
    %2216 = vmatprep.subr.bf16.mxu0 0
    %2217 = vmatpush1.bf16.msra.mxu0 0
    %2218 = vmatprep.subr.bf16.mxu0 0
    %2219 = vmatpush1.bf16.msra.mxu0 0
    %2220 = vmatprep.subr.bf16.mxu0 0
    %2221 = vmatpush1.bf16.msra.mxu0 0
    %2222 = vmatprep.subr.bf16.mxu0 0
    %2223 = vmatpush1.bf16.msra.mxu0 0
    %2224 = vmatprep.subr.bf16.mxu0 0
    %2225 = vmatpush1.bf16.msra.mxu0 0
    %2226 = vmatprep.subr.bf16.mxu0 0
    %2227 = vmatpush1.bf16.msra.mxu0 0
    %2228 = vmatprep.subr.bf16.mxu0 0
    %2229 = vmatpush1.bf16.msra.mxu0 0
    %2230 = vmatprep.subr.bf16.mxu0 0
    %2231 = vmatpush1.bf16.msra.mxu0 0
    %2232 = vmatprep.subr.bf16.mxu0 0
    %2233 = vmatpush1.bf16.msra.mxu0 0
    %2234 = vmatprep.mubr.bf16.mxu0 0
    %2235 = vmatmul.mubr.bf16.gmra.mrb[0].mxu0 %v2118
    %v2236 = vpop.f32.mrb[0].mxu0
    %v2237 = vadd.f32 %v2164, %v2236
    %v2238 = vpop.f32.mrb[0].mxu0
    %v2239 = vadd.f32 %v2166, %v2238
    %v2240 = vpop.f32.mrb[0].mxu0
    %v2241 = vadd.f32 %v2168, %v2240
    %v2242 = vpop.f32.mrb[0].mxu0
    %v2243 = vadd.f32 %v2170, %v2242
    %2244 = vmatprep.mubr.bf16.mxu0 0
    %2245 = vmatmul.mubr.bf16.gmra.mrb[0].mxu0 %v2121
    %v2246 = vpop.f32.mrb[0].mxu0
    %v2247 = vadd.f32 %v2174, %v2246
    %v2248 = vpop.f32.mrb[0].mxu0
    %v2249 = vadd.f32 %v2176, %v2248
    %v2250 = vpop.f32.mrb[0].mxu0
    %v2251 = vadd.f32 %v2178, %v2250
    %v2252 = vpop.f32.mrb[0].mxu0
    %v2253 = vadd.f32 %v2180, %v2252
    %2254 = vmatprep.mubr.bf16.mxu0 0
    %2255 = vmatmul.mubr.bf16.gmra.mrb[0].mxu0 %v2124
    %v2256 = vpop.f32.mrb[0].mxu0
    %v2257 = vadd.f32 %v2184, %v2256
    %v2258 = vpop.f32.mrb[0].mxu0
    %v2259 = vadd.f32 %v2186, %v2258
    %v2260 = vpop.f32.mrb[0].mxu0
    %v2261 = vadd.f32 %v2188, %v2260
    %v2262 = vpop.f32.mrb[0].mxu0
    %v2263 = vadd.f32 %v2190, %v2262
    %2264 = vmatprep.mubr.bf16.mxu0 0
    %2265 = vmatmul.mubr.bf16.gmra.mrb[0].mxu0 %v2127
    %v2266 = vpop.f32.mrb[0].mxu0
    %v2267 = vadd.f32 %v2194, %v2266
    %v2268 = vpop.f32.mrb[0].mxu0
    %v2269 = vadd.f32 %v2196, %v2268
    %v2270 = vpop.f32.mrb[0].mxu0
    %v2271 = vadd.f32 %v2198, %v2270
    %v2272 = vpop.f32.mrb[0].mxu0
    %v2273 = vadd.f32 %v2200, %v2272
    %2274 = vdwg.mxu0
    %v2275 = vld [vmem:[#allocation2 + $0x30] sm:$0xff]
    %v2276 = vld [vmem:[#allocation2 + $0x38] sm:$0xff]
    %v2277 = vld [vmem:[#allocation2 + $0x40] sm:$0xff]
    %v2278 = vld [vmem:[#allocation2 + $0x48] sm:$0xff]
    %v2279 = vld [vmem:[#allocation2 + $0x50] sm:$0xff]
    %v2280 = vld [vmem:[#allocation2 + $0x58] sm:$0xff]
    %v2281 = vld [vmem:[#allocation2 + $0x60] sm:$0xff]
    %v2282 = vld [vmem:[#allocation2 + $0x68] sm:$0xff]
    %v2283 = vld [vmem:[#allocation2 + $0x70] sm:$0xff]
    %v2284 = vld [vmem:[#allocation2 + $0x78] sm:$0xff]
    %v2285 = vld [vmem:[#allocation2 + $0x80] sm:$0xff]
    %v2286 = vld [vmem:[#allocation2 + $0x88] sm:$0xff]
    %v2287 = vld [vmem:[#allocation2 + $0x90] sm:$0xff]
    %v2288 = vld [vmem:[#allocation2 + $0x98] sm:$0xff]
    %v2289 = vld [vmem:[#allocation2 + $0xa0] sm:$0xff]
    %v2290 = vld [vmem:[#allocation2 + $0xa8] sm:$0xff]
    %v2291 = vld [vmem:[#allocation2 + $0xb0] sm:$0xff]
    %v2292 = vld [vmem:[#allocation2 + $0xb8] sm:$0xff]
    %v2293 = vld [vmem:[#allocation2 + $0xc0] sm:$0xff]
    %v2294 = vld [vmem:[#allocation2 + $0xc8] sm:$0xff]
    %v2295 = vld [vmem:[#allocation2 + $0xd0] sm:$0xff]
    %v2296 = vld [vmem:[#allocation2 + $0xd8] sm:$0xff]
    %v2297 = vld [vmem:[#allocation2 + $0xe0] sm:$0xff]
    %v2298 = vld [vmem:[#allocation2 + $0xe8] sm:$0xff]
    %v2299 = vpack.c.bf16 %v2278, %v2275
    %v2300 = vpack.c.bf16 %v2279, %v2276
    %v2301 = vpack.c.bf16 %v2280, %v2277
    %v2302 = vpack.c.bf16 %v2284, %v2281
    %v2303 = vpack.c.bf16 %v2285, %v2282
    %v2304 = vpack.c.bf16 %v2286, %v2283
    %v2305 = vpack.c.bf16 %v2290, %v2287
    %v2306 = vpack.c.bf16 %v2291, %v2288
    %v2307 = vpack.c.bf16 %v2292, %v2289
    %v2308 = vpack.c.bf16 %v2296, %v2293
    %v2309 = vpack.c.bf16 %v2297, %v2294
    %v2310 = vpack.c.bf16 %v2298, %v2295
    %s2311 = scalar_lea.vmem [#allocation6], 640
    %v2312 = vld [vmem:[%s2311] sm:$0xff]
    %v2313 = vld [vmem:[%s2311 + $0x8] sm:$0xff]
    %v2314 = vld [vmem:[%s2311 + $0x10] sm:$0xff]
    %v2315 = vld [vmem:[%s2311 + $0x18] sm:$0xff]
    %v2316 = vld [vmem:[%s2311 + $0x20] sm:$0xff]
    %v2317 = vld [vmem:[%s2311 + $0x28] sm:$0xff]
    %v2318 = vld [vmem:[%s2311 + $0x30] sm:$0xff]
    %v2319 = vld [vmem:[%s2311 + $0x38] sm:$0xff]
    %v2320 = vld [vmem:[%s2311 + $0x40] sm:$0xff]
    %v2321 = vld [vmem:[%s2311 + $0x48] sm:$0xff]
    %v2322 = vld [vmem:[%s2311 + $0x50] sm:$0xff]
    %v2323 = vld [vmem:[%s2311 + $0x58] sm:$0xff]
    %v2324 = vld [vmem:[%s2311 + $0x60] sm:$0xff]
    %v2325 = vld [vmem:[%s2311 + $0x68] sm:$0xff]
    %v2326 = vld [vmem:[%s2311 + $0x70] sm:$0xff]
    %v2327 = vld [vmem:[%s2311 + $0x78] sm:$0xff]
    %v2328 = vld [vmem:[%s2311 + $0x80] sm:$0xff]
    %v2329 = vld [vmem:[%s2311 + $0x88] sm:$0xff]
    %v2330 = vld [vmem:[%s2311 + $0x90] sm:$0xff]
    %v2331 = vld [vmem:[%s2311 + $0x98] sm:$0xff]
    %v2332 = vld [vmem:[%s2311 + $0xa0] sm:$0xff]
    %v2333 = vld [vmem:[%s2311 + $0xa8] sm:$0xff]
    %v2334 = vld [vmem:[%s2311 + $0xb0] sm:$0xff]
    %v2335 = vld [vmem:[%s2311 + $0xb8] sm:$0xff]
    %v2336 = vld [vmem:[%s2311 + $0xc0] sm:$0xff]
    %v2337 = vld [vmem:[%s2311 + $0xc8] sm:$0xff]
    %v2338 = vld [vmem:[%s2311 + $0xd0] sm:$0xff]
    %v2339 = vld [vmem:[%s2311 + $0xd8] sm:$0xff]
    %v2340 = vld [vmem:[%s2311 + $0xe0] sm:$0xff]
    %v2341 = vld [vmem:[%s2311 + $0xe8] sm:$0xff]
    %v2342 = vld [vmem:[%s2311 + $0xf0] sm:$0xff]
    %v2343 = vld [vmem:[%s2311 + $0xf8] sm:$0xff]
    %v2344 = vld [vmem:[%s2311 + $0x100] sm:$0xff]
    %v2345 = vld [vmem:[%s2311 + $0x108] sm:$0xff]
    %v2346 = vld [vmem:[%s2311 + $0x110] sm:$0xff]
    %v2347 = vld [vmem:[%s2311 + $0x118] sm:$0xff]
    %v2348 = vld [vmem:[%s2311 + $0x120] sm:$0xff]
    %v2349 = vld [vmem:[%s2311 + $0x128] sm:$0xff]
    %v2350 = vld [vmem:[%s2311 + $0x130] sm:$0xff]
    %v2351 = vld [vmem:[%s2311 + $0x138] sm:$0xff]
    %v2392 = vunpack.c.l.b16 %v2312
    %v2393 = vunpack.c.h.b16 %v2312
    %v2394 = vunpack.c.l.b16 %v2313
    %v2395 = vunpack.c.h.b16 %v2313
    %v2396 = vunpack.c.l.b16 %v2314
    %v2397 = vunpack.c.h.b16 %v2314
    %v2398 = vunpack.c.l.b16 %v2315
    %v2399 = vunpack.c.h.b16 %v2315
    %v2400 = vunpack.c.l.b16 %v2316
    %v2401 = vunpack.c.h.b16 %v2316
    %v2402 = vunpack.c.l.b16 %v2317
    %v2403 = vunpack.c.h.b16 %v2317
    %v2404 = vunpack.c.l.b16 %v2318
    %v2405 = vunpack.c.h.b16 %v2318
    %v2406 = vunpack.c.l.b16 %v2319
    %v2407 = vunpack.c.h.b16 %v2319
    %v2408 = vunpack.c.l.b16 %v2320
    %v2409 = vunpack.c.h.b16 %v2320
    %v2410 = vunpack.c.l.b16 %v2321
    %v2411 = vunpack.c.h.b16 %v2321
    %v2412 = vunpack.c.l.b16 %v2322
    %v2413 = vunpack.c.h.b16 %v2322
    %v2414 = vunpack.c.l.b16 %v2323
    %v2415 = vunpack.c.h.b16 %v2323
    %v2416 = vunpack.c.l.b16 %v2324
    %v2417 = vunpack.c.h.b16 %v2324
    %v2418 = vunpack.c.l.b16 %v2325
    %v2419 = vunpack.c.h.b16 %v2325
    %v2420 = vunpack.c.l.b16 %v2326
    %v2421 = vunpack.c.h.b16 %v2326
    %v2422 = vunpack.c.l.b16 %v2327
    %v2423 = vunpack.c.h.b16 %v2327
    %v2424 = vunpack.c.l.b16 %v2328
    %v2425 = vunpack.c.h.b16 %v2328
    %v2426 = vunpack.c.l.b16 %v2329
    %v2427 = vunpack.c.h.b16 %v2329
    %v2428 = vunpack.c.l.b16 %v2330
    %v2429 = vunpack.c.h.b16 %v2330
    %v2430 = vunpack.c.l.b16 %v2331
    %v2431 = vunpack.c.h.b16 %v2331
    %v2432 = vunpack.c.l.b16 %v2332
    %v2433 = vunpack.c.h.b16 %v2332
    %v2434 = vunpack.c.l.b16 %v2333
    %v2435 = vunpack.c.h.b16 %v2333
    %v2436 = vunpack.c.l.b16 %v2334
    %v2437 = vunpack.c.h.b16 %v2334
    %v2438 = vunpack.c.l.b16 %v2335
    %v2439 = vunpack.c.h.b16 %v2335
    %v2440 = vunpack.c.l.b16 %v2336
    %v2441 = vunpack.c.h.b16 %v2336
    %v2442 = vunpack.c.l.b16 %v2337
    %v2443 = vunpack.c.h.b16 %v2337
    %v2444 = vunpack.c.l.b16 %v2338
    %v2445 = vunpack.c.h.b16 %v2338
    %v2446 = vunpack.c.l.b16 %v2339
    %v2447 = vunpack.c.h.b16 %v2339
    %v2448 = vunpack.c.l.b16 %v2340
    %v2449 = vunpack.c.h.b16 %v2340
    %v2450 = vunpack.c.l.b16 %v2341
    %v2451 = vunpack.c.h.b16 %v2341
    %v2452 = vunpack.c.l.b16 %v2342
    %v2453 = vunpack.c.h.b16 %v2342
    %v2454 = vunpack.c.l.b16 %v2343
    %v2455 = vunpack.c.h.b16 %v2343
    %v2456 = vunpack.c.l.b16 %v2344
    %v2457 = vunpack.c.h.b16 %v2344
    %v2458 = vunpack.c.l.b16 %v2345
    %v2459 = vunpack.c.h.b16 %v2345
    %v2460 = vunpack.c.l.b16 %v2346
    %v2461 = vunpack.c.h.b16 %v2346
    %v2462 = vunpack.c.l.b16 %v2347
    %v2463 = vunpack.c.h.b16 %v2347
    %v2464 = vunpack.c.l.b16 %v2348
    %v2465 = vunpack.c.h.b16 %v2348
    %v2466 = vunpack.c.l.b16 %v2349
    %v2467 = vunpack.c.h.b16 %v2349
    %v2468 = vunpack.c.l.b16 %v2350
    %v2469 = vunpack.c.h.b16 %v2350
    %v2470 = vunpack.c.l.b16 %v2351
    %v2471 = vunpack.c.h.b16 %v2351
    %v2472 = vpack.c.b16 %v2394, %v2392
    %v2473 = vpack.c.b16 %v2395, %v2393
    %v2474 = vpack.c.b16 %v2398, %v2396
    %v2475 = vpack.c.b16 %v2399, %v2397
    %v2476 = vpack.c.b16 %v2402, %v2400
    %v2477 = vpack.c.b16 %v2403, %v2401
    %v2478 = vpack.c.b16 %v2406, %v2404
    %v2479 = vpack.c.b16 %v2407, %v2405
    %v2480 = vpack.c.b16 %v2410, %v2408
    %v2481 = vpack.c.b16 %v2411, %v2409
    %v2482 = vpack.c.b16 %v2414, %v2412
    %v2483 = vpack.c.b16 %v2415, %v2413
    %v2484 = vpack.c.b16 %v2418, %v2416
    %v2485 = vpack.c.b16 %v2419, %v2417
    %v2486 = vpack.c.b16 %v2422, %v2420
    %v2487 = vpack.c.b16 %v2423, %v2421
    %v2488 = vpack.c.b16 %v2426, %v2424
    %v2489 = vpack.c.b16 %v2427, %v2425
    %v2490 = vpack.c.b16 %v2430, %v2428
    %v2491 = vpack.c.b16 %v2431, %v2429
    %v2492 = vpack.c.b16 %v2434, %v2432
    %v2493 = vpack.c.b16 %v2435, %v2433
    %v2494 = vpack.c.b16 %v2438, %v2436
    %v2495 = vpack.c.b16 %v2439, %v2437
    %v2496 = vpack.c.b16 %v2442, %v2440
    %v2497 = vpack.c.b16 %v2443, %v2441
    %v2498 = vpack.c.b16 %v2446, %v2444
    %v2499 = vpack.c.b16 %v2447, %v2445
    %v2500 = vpack.c.b16 %v2450, %v2448
    %v2501 = vpack.c.b16 %v2451, %v2449
    %v2502 = vpack.c.b16 %v2454, %v2452
    %v2503 = vpack.c.b16 %v2455, %v2453
    %v2504 = vpack.c.b16 %v2458, %v2456
    %v2505 = vpack.c.b16 %v2459, %v2457
    %v2506 = vpack.c.b16 %v2462, %v2460
    %v2507 = vpack.c.b16 %v2463, %v2461
    %v2508 = vpack.c.b16 %v2466, %v2464
    %v2509 = vpack.c.b16 %v2467, %v2465
    %v2510 = vpack.c.b16 %v2470, %v2468
    %v2511 = vpack.c.b16 %v2471, %v2469
    %v2553 = vsel %vm1232, %v2301, 0
    %v2556 = vsel %vm1232, %v2304, 0
    %v2559 = vsel %vm1232, %v2307, 0
    %v2562 = vsel %vm1232, %v2310, 0
    %2564 = vmatprep.subr.bf16.mxu0 %v2473
    %2565 = vmatpush1.bf16.msra.mxu0 %v2472
    %2566 = vmatprep.subr.bf16.mxu0 %v2475
    %2567 = vmatpush1.bf16.msra.mxu0 %v2474
    %2568 = vmatprep.subr.bf16.mxu0 %v2477
    %2569 = vmatpush1.bf16.msra.mxu0 %v2476
    %2570 = vmatprep.subr.bf16.mxu0 %v2479
    %2571 = vmatpush1.bf16.msra.mxu0 %v2478
    %2572 = vmatprep.subr.bf16.mxu0 %v2481
    %2573 = vmatpush1.bf16.msra.mxu0 %v2480
    %2574 = vmatprep.subr.bf16.mxu0 %v2483
    %2575 = vmatpush1.bf16.msra.mxu0 %v2482
    %2576 = vmatprep.subr.bf16.mxu0 %v2485
    %2577 = vmatpush1.bf16.msra.mxu0 %v2484
    %2578 = vmatprep.subr.bf16.mxu0 %v2487
    %2579 = vmatpush1.bf16.msra.mxu0 %v2486
    %2580 = vmatprep.subr.bf16.mxu0 %v2489
    %2581 = vmatpush1.bf16.msra.mxu0 %v2488
    %2582 = vmatprep.subr.bf16.mxu0 %v2491
    %2583 = vmatpush1.bf16.msra.mxu0 %v2490
    %2584 = vmatprep.subr.bf16.mxu0 %v2493
    %2585 = vmatpush1.bf16.msra.mxu0 %v2492
    %2586 = vmatprep.subr.bf16.mxu0 %v2495
    %2587 = vmatpush1.bf16.msra.mxu0 %v2494
    %2588 = vmatprep.subr.bf16.mxu0 %v2497
    %2589 = vmatpush1.bf16.msra.mxu0 %v2496
    %2590 = vmatprep.subr.bf16.mxu0 %v2499
    %2591 = vmatpush1.bf16.msra.mxu0 %v2498
    %2592 = vmatprep.subr.bf16.mxu0 %v2501
    %2593 = vmatpush1.bf16.msra.mxu0 %v2500
    %2594 = vmatprep.subr.bf16.mxu0 %v2503
    %2595 = vmatpush1.bf16.msra.mxu0 %v2502
    %2596 = vmatprep.mubr.bf16.mxu0 %v2300
    %2597 = vmatmul.mubr.bf16.gmra.mrb[0].mxu0 %v2299
    %v2598 = vpop.f32.mrb[0].mxu0
    %v2599 = vadd.f32 0.0, %v2598
    %v2600 = vpop.f32.mrb[0].mxu0
    %v2601 = vadd.f32 0.0, %v2600
    %v2602 = vpop.f32.mrb[0].mxu0
    %v2603 = vadd.f32 0.0, %v2602
    %v2604 = vpop.f32.mrb[0].mxu0
    %v2605 = vadd.f32 0.0, %v2604
    %2606 = vmatprep.mubr.bf16.mxu0 %v2303
    %2607 = vmatmul.mubr.bf16.gmra.mrb[0].mxu0 %v2302
    %v2608 = vpop.f32.mrb[0].mxu0
    %v2609 = vadd.f32 0.0, %v2608
    %v2610 = vpop.f32.mrb[0].mxu0
    %v2611 = vadd.f32 0.0, %v2610
    %v2612 = vpop.f32.mrb[0].mxu0
    %v2613 = vadd.f32 0.0, %v2612
    %v2614 = vpop.f32.mrb[0].mxu0
    %v2615 = vadd.f32 0.0, %v2614
    %2616 = vmatprep.mubr.bf16.mxu0 %v2306
    %2617 = vmatmul.mubr.bf16.gmra.mrb[0].mxu0 %v2305
    %v2618 = vpop.f32.mrb[0].mxu0
    %v2619 = vadd.f32 0.0, %v2618
    %v2620 = vpop.f32.mrb[0].mxu0
    %v2621 = vadd.f32 0.0, %v2620
    %v2622 = vpop.f32.mrb[0].mxu0
    %v2623 = vadd.f32 0.0, %v2622
    %v2624 = vpop.f32.mrb[0].mxu0
    %v2625 = vadd.f32 0.0, %v2624
    %2626 = vmatprep.mubr.bf16.mxu0 %v2309
    %2627 = vmatmul.mubr.bf16.gmra.mrb[0].mxu0 %v2308
    %v2628 = vpop.f32.mrb[0].mxu0
    %v2629 = vadd.f32 0.0, %v2628
    %v2630 = vpop.f32.mrb[0].mxu0
    %v2631 = vadd.f32 0.0, %v2630
    %v2632 = vpop.f32.mrb[0].mxu0
    %v2633 = vadd.f32 0.0, %v2632
    %v2634 = vpop.f32.mrb[0].mxu0
    %v2635 = vadd.f32 0.0, %v2634
    %2636 = vdwg.mxu0
    %2637 = vmatprep.subr.bf16.mxu0 %v2505
    %2638 = vmatpush1.bf16.msra.mxu0 %v2504
    %2639 = vmatprep.subr.bf16.mxu0 %v2507
    %2640 = vmatpush1.bf16.msra.mxu0 %v2506
    %2641 = vmatprep.subr.bf16.mxu0 %v2509
    %2642 = vmatpush1.bf16.msra.mxu0 %v2508
    %2643 = vmatprep.subr.bf16.mxu0 %v2511
    %2644 = vmatpush1.bf16.msra.mxu0 %v2510
    %2645 = vmatprep.subr.bf16.mxu0 0
    %2646 = vmatpush1.bf16.msra.mxu0 0
    %2647 = vmatprep.subr.bf16.mxu0 0
    %2648 = vmatpush1.bf16.msra.mxu0 0
    %2649 = vmatprep.subr.bf16.mxu0 0
    %2650 = vmatpush1.bf16.msra.mxu0 0
    %2651 = vmatprep.subr.bf16.mxu0 0
    %2652 = vmatpush1.bf16.msra.mxu0 0
    %2653 = vmatprep.subr.bf16.mxu0 0
    %2654 = vmatpush1.bf16.msra.mxu0 0
    %2655 = vmatprep.subr.bf16.mxu0 0
    %2656 = vmatpush1.bf16.msra.mxu0 0
    %2657 = vmatprep.subr.bf16.mxu0 0
    %2658 = vmatpush1.bf16.msra.mxu0 0
    %2659 = vmatprep.subr.bf16.mxu0 0
    %2660 = vmatpush1.bf16.msra.mxu0 0
    %2661 = vmatprep.subr.bf16.mxu0 0
    %2662 = vmatpush1.bf16.msra.mxu0 0
    %2663 = vmatprep.subr.bf16.mxu0 0
    %2664 = vmatpush1.bf16.msra.mxu0 0
    %2665 = vmatprep.subr.bf16.mxu0 0
    %2666 = vmatpush1.bf16.msra.mxu0 0
    %2667 = vmatprep.subr.bf16.mxu0 0
    %2668 = vmatpush1.bf16.msra.mxu0 0
    %2669 = vmatprep.mubr.bf16.mxu0 0
    %2670 = vmatmul.mubr.bf16.gmra.mrb[0].mxu0 %v2553
    %v2671 = vpop.f32.mrb[0].mxu0
    %v2672 = vadd.f32 %v2599, %v2671
    %v2673 = vpop.f32.mrb[0].mxu0
    %v2674 = vadd.f32 %v2601, %v2673
    %v2675 = vpop.f32.mrb[0].mxu0
    %v2676 = vadd.f32 %v2603, %v2675
    %v2677 = vpop.f32.mrb[0].mxu0
    %v2678 = vadd.f32 %v2605, %v2677
    %2679 = vmatprep.mubr.bf16.mxu0 0
    %2680 = vmatmul.mubr.bf16.gmra.mrb[0].mxu0 %v2556
    %v2681 = vpop.f32.mrb[0].mxu0
    %v2682 = vadd.f32 %v2609, %v2681
    %v2683 = vpop.f32.mrb[0].mxu0
    %v2684 = vadd.f32 %v2611, %v2683
    %v2685 = vpop.f32.mrb[0].mxu0
    %v2686 = vadd.f32 %v2613, %v2685
    %v2687 = vpop.f32.mrb[0].mxu0
    %v2688 = vadd.f32 %v2615, %v2687
    %2689 = vmatprep.mubr.bf16.mxu0 0
    %2690 = vmatmul.mubr.bf16.gmra.mrb[0].mxu0 %v2559
    %v2691 = vpop.f32.mrb[0].mxu0
    %v2692 = vadd.f32 %v2619, %v2691
    %v2693 = vpop.f32.mrb[0].mxu0
    %v2694 = vadd.f32 %v2621, %v2693
    %v2695 = vpop.f32.mrb[0].mxu0
    %v2696 = vadd.f32 %v2623, %v2695
    %v2697 = vpop.f32.mrb[0].mxu0
    %v2698 = vadd.f32 %v2625, %v2697
    %2699 = vmatprep.mubr.bf16.mxu0 0
    %2700 = vmatmul.mubr.bf16.gmra.mrb[0].mxu0 %v2562
    %v2701 = vpop.f32.mrb[0].mxu0
    %v2702 = vadd.f32 %v2629, %v2701
    %v2703 = vpop.f32.mrb[0].mxu0
    %v2704 = vadd.f32 %v2631, %v2703
    %v2705 = vpop.f32.mrb[0].mxu0
    %v2706 = vadd.f32 %v2633, %v2705
    %v2707 = vpop.f32.mrb[0].mxu0
    %v2708 = vadd.f32 %v2635, %v2707
    %2709 = vdwg.mxu0
    %v2710 = vadd.f32 %v2237, %v2672
    %v2711 = vadd.f32 %v2239, %v2674
    %v2712 = vadd.f32 %v2241, %v2676
    %v2713 = vadd.f32 %v2243, %v2678
    %v2714 = vadd.f32 %v2247, %v2682
    %v2715 = vadd.f32 %v2249, %v2684
    %v2716 = vadd.f32 %v2251, %v2686
    %v2717 = vadd.f32 %v2253, %v2688
    %v2718 = vadd.f32 %v2257, %v2692
    %v2719 = vadd.f32 %v2259, %v2694
    %v2720 = vadd.f32 %v2261, %v2696
    %v2721 = vadd.f32 %v2263, %v2698
    %v2722 = vadd.f32 %v2267, %v2702
    %v2723 = vadd.f32 %v2269, %v2704
    %v2724 = vadd.f32 %v2271, %v2706
    %v2725 = vadd.f32 %v2273, %v2708
    %v2726 = vld [vmem:[%s4] sm:$0x3]
    %v2728 = vlaneseq
    %v2729 = vshrl.u32 %v2728, 7
    %v2730 = vsub.s32 0, %v2729
    %v2731 = vrot.slane %v2726, %v2730
    %v2732 = vlaneseq
    %v2733 = vshrl.u32 %v2732, 7
    %v2734 = vsub.s32 1, %v2733
    %v2735 = vrot.slane %v2726, %v2734
    %v2738 = vadd.f32 %v2710, %v2731
    %v2739 = vadd.f32 %v2711, %v2735
    %v2740 = vadd.f32 %v2712, %v2731
    %v2741 = vadd.f32 %v2713, %v2735
    %v2742 = vadd.f32 %v2714, %v2731
    %v2743 = vadd.f32 %v2715, %v2735
    %v2744 = vadd.f32 %v2716, %v2731
    %v2745 = vadd.f32 %v2717, %v2735
    %v2746 = vadd.f32 %v2718, %v2731
    %v2747 = vadd.f32 %v2719, %v2735
    %v2748 = vadd.f32 %v2720, %v2731
    %v2749 = vadd.f32 %v2721, %v2735
    %v2750 = vadd.f32 %v2722, %v2731
    %v2751 = vadd.f32 %v2723, %v2735
    %v2752 = vadd.f32 %v2724, %v2731
    %v2753 = vadd.f32 %v2725, %v2735
    %v2754 = vmax.f32 %v2738, %v2739
    %v2755 = vmax.f32 %v2740, %v2741
    %v2756 = vmax.f32 %v2742, %v2743
    %v2757 = vmax.f32 %v2744, %v2745
    %v2758 = vmax.f32 %v2746, %v2747
    %v2759 = vmax.f32 %v2748, %v2749
    %v2760 = vmax.f32 %v2750, %v2751
    %v2761 = vmax.f32 %v2752, %v2753
    %2762 = vst [vmem:[#allocation3] sm:$0xff] 0.0
    %2763 = vst.msk [vmem:[#allocation3 + $0x8] sm:$0xff] %vm1232, 0.0
    %2764 = vst [vmem:[#allocation3 + $0x50] sm:$0xff] 0.0
    %2765 = vst.msk [vmem:[#allocation3 + $0x58] sm:$0xff] %vm1232, 0.0
    %2766 = vst.msk [vmem:[#allocation3] sm:$0xff] %vm184, 0.0
    %2767 = vst.msk [vmem:[#allocation3 + $0x10] sm:$0xff] %vm184, 0.0
    %2768 = vst.msk [vmem:[#allocation3 + $0x20] sm:$0xff] %vm184, 0.0
    %2769 = vst.msk [vmem:[#allocation3 + $0x30] sm:$0xff] %vm184, 0.0
    %2770 = vst.msk [vmem:[#allocation3 + $0x40] sm:$0xff] %vm184, 0.0
    %2771 = vst.msk [vmem:[#allocation3 + $0x50] sm:$0xff] %vm184, 0.0
    %2772 = vst.msk [vmem:[#allocation3 + $0x8] sm:$0xff] %vm1247, 0.0
    %2773 = vst.msk [vmem:[#allocation3 + $0x18] sm:$0xff] %vm1247, 0.0
    %2774 = vst.msk [vmem:[#allocation3 + $0x28] sm:$0xff] %vm1247, 0.0
    %2775 = vst.msk [vmem:[#allocation3 + $0x38] sm:$0xff] %vm1247, 0.0
    %2776 = vst.msk [vmem:[#allocation3 + $0x48] sm:$0xff] %vm1247, 0.0
    %2777 = vst.msk [vmem:[#allocation3 + $0x58] sm:$0xff] %vm1247, 0.0
    %v2778 = vmax.f32 %v2754, %v2755
    %vm2779 = vcmp.gt.f32.partialorder %v2778, 0.0
    %v2780 = vmul.f32 %v2778, 0.01
    %v2781 = vsel %vm2779, %v2778, %v2780
    %2783 = vrot.lane.b32.xlu0 %v2781, 32
    %v2784 = vpop.permute.xlu0 %2783
    %2786 = vst.msk [vmem:[#allocation3 + $0x10] sm:$0xff] %vm1276, %v2784
    %2787 = vst.msk [vmem:[#allocation3 + $0x18] sm:$0xff] %vm184, %v2784
    %v2788 = vmax.f32 %v2756, %v2757
    %vm2789 = vcmp.gt.f32.partialorder %v2788, 0.0
    %v2790 = vmul.f32 %v2788, 0.01
    %v2791 = vsel %vm2789, %v2788, %v2790
    %2793 = vrot.lane.b32.xlu0 %v2791, 32
    %v2794 = vpop.permute.xlu0 %2793
    %2796 = vst.msk [vmem:[#allocation3 + $0x20] sm:$0xff] %vm1276, %v2794
    %2797 = vst.msk [vmem:[#allocation3 + $0x28] sm:$0xff] %vm184, %v2794
    %v2798 = vmax.f32 %v2758, %v2759
    %vm2799 = vcmp.gt.f32.partialorder %v2798, 0.0
    %v2800 = vmul.f32 %v2798, 0.01
    %v2801 = vsel %vm2799, %v2798, %v2800
    %2803 = vrot.lane.b32.xlu0 %v2801, 32
    %v2804 = vpop.permute.xlu0 %2803
    %2806 = vst.msk [vmem:[#allocation3 + $0x30] sm:$0xff] %vm1276, %v2804
    %2807 = vst.msk [vmem:[#allocation3 + $0x38] sm:$0xff] %vm184, %v2804
    %v2808 = vmax.f32 %v2760, %v2761
    %vm2809 = vcmp.gt.f32.partialorder %v2808, 0.0
    %v2810 = vmul.f32 %v2808, 0.01
    %v2811 = vsel %vm2809, %v2808, %v2810
    %2813 = vrot.lane.b32.xlu0 %v2811, 32
    %v2814 = vpop.permute.xlu0 %2813
    %2816 = vst.msk [vmem:[#allocation3 + $0x40] sm:$0xff] %vm1276, %v2814
    %2817 = vst.msk [vmem:[#allocation3 + $0x48] sm:$0xff] %vm184, %v2814
    %v2818 = vld [vmem:[#allocation3] sm:$0xff]
    %v2819 = vld [vmem:[#allocation3 + $0x8] sm:$0xff]
    %v2820 = vld [vmem:[#allocation3 + $0x10] sm:$0xff]
    %v2821 = vld [vmem:[#allocation3 + $0x18] sm:$0xff]
    %v2822 = vld [vmem:[#allocation3 + $0x20] sm:$0xff]
    %v2823 = vld [vmem:[#allocation3 + $0x28] sm:$0xff]
    %v2824 = vld [vmem:[#allocation3 + $0x30] sm:$0xff]
    %v2825 = vld [vmem:[#allocation3 + $0x38] sm:$0xff]
    %v2826 = vpack.c.bf16 %v2820, %v2818
    %v2827 = vpack.c.bf16 %v2821, %v2819
    %v2828 = vpack.c.bf16 %v2824, %v2822
    %v2829 = vpack.c.bf16 %v2825, %v2823
    %v2830 = vld [vmem:[%s5] sm:$0xff]
    %v2831 = vld [vmem:[%s5 + $0x8] sm:$0xff]
    %v2832 = vld [vmem:[%s5 + $0x10] sm:$0xff]
    %v2833 = vld [vmem:[%s5 + $0x18] sm:$0xff]
    %v2834 = vld [vmem:[%s5 + $0x20] sm:$0xff]
    %v2835 = vld [vmem:[%s5 + $0x28] sm:$0xff]
    %v2836 = vld [vmem:[%s5 + $0x30] sm:$0xff]
    %v2837 = vld [vmem:[%s5 + $0x38] sm:$0xff]
    %v2838 = vld [vmem:[%s5 + $0x40] sm:$0xff]
    %v2839 = vld [vmem:[%s5 + $0x48] sm:$0xff]
    %v2840 = vld [vmem:[%s5 + $0x50] sm:$0xff]
    %v2841 = vld [vmem:[%s5 + $0x58] sm:$0xff]
    %v2842 = vld [vmem:[%s5 + $0x60] sm:$0xff]
    %v2843 = vld [vmem:[%s5 + $0x68] sm:$0xff]
    %v2844 = vld [vmem:[%s5 + $0x70] sm:$0xff]
    %v2845 = vld [vmem:[%s5 + $0x78] sm:$0xff]
    %v2846 = vld [vmem:[%s5 + $0x80] sm:$0xff]
    %v2847 = vld [vmem:[%s5 + $0x88] sm:$0xff]
    %v2848 = vld [vmem:[%s5 + $0x90] sm:$0xff]
    %v2849 = vld [vmem:[%s5 + $0x98] sm:$0xff]
    %v2850 = vld [vmem:[%s5 + $0xa0] sm:$0xff]
    %v2851 = vld [vmem:[%s5 + $0xa8] sm:$0xff]
    %v2852 = vld [vmem:[%s5 + $0xb0] sm:$0xff]
    %v2853 = vld [vmem:[%s5 + $0xb8] sm:$0xff]
    %v2854 = vld [vmem:[#allocation3 + $0x40] sm:$0xff]
    %v2855 = vld [vmem:[#allocation3 + $0x48] sm:$0xff]
    %v2856 = vpack.c.bf16 %v2822, %v2820
    %v2857 = vpack.c.bf16 %v2823, %v2821
    %v2858 = vpack.c.bf16 %v2854, %v2824
    %v2859 = vpack.c.bf16 %v2855, %v2825
    %s2860 = scalar_lea.vmem %s5, 192
    %v2861 = vld [vmem:[%s2860] sm:$0xff]
    %v2862 = vld [vmem:[%s2860 + $0x8] sm:$0xff]
    %v2863 = vld [vmem:[%s2860 + $0x10] sm:$0xff]
    %v2864 = vld [vmem:[%s2860 + $0x18] sm:$0xff]
    %v2865 = vld [vmem:[%s2860 + $0x20] sm:$0xff]
    %v2866 = vld [vmem:[%s2860 + $0x28] sm:$0xff]
    %v2867 = vld [vmem:[%s2860 + $0x30] sm:$0xff]
    %v2868 = vld [vmem:[%s2860 + $0x38] sm:$0xff]
    %v2869 = vld [vmem:[%s2860 + $0x40] sm:$0xff]
    %v2870 = vld [vmem:[%s2860 + $0x48] sm:$0xff]
    %v2871 = vld [vmem:[%s2860 + $0x50] sm:$0xff]
    %v2872 = vld [vmem:[%s2860 + $0x58] sm:$0xff]
    %v2873 = vld [vmem:[%s2860 + $0x60] sm:$0xff]
    %v2874 = vld [vmem:[%s2860 + $0x68] sm:$0xff]
    %v2875 = vld [vmem:[%s2860 + $0x70] sm:$0xff]
    %v2876 = vld [vmem:[%s2860 + $0x78] sm:$0xff]
    %v2877 = vld [vmem:[%s2860 + $0x80] sm:$0xff]
    %v2878 = vld [vmem:[%s2860 + $0x88] sm:$0xff]
    %v2879 = vld [vmem:[%s2860 + $0x90] sm:$0xff]
    %v2880 = vld [vmem:[%s2860 + $0x98] sm:$0xff]
    %v2881 = vld [vmem:[%s2860 + $0xa0] sm:$0xff]
    %v2882 = vld [vmem:[%s2860 + $0xa8] sm:$0xff]
    %v2883 = vld [vmem:[%s2860 + $0xb0] sm:$0xff]
    %v2884 = vld [vmem:[%s2860 + $0xb8] sm:$0xff]
    %v2909 = vunpack.c.l.b16 %v2861
    %v2910 = vunpack.c.h.b16 %v2861
    %v2911 = vunpack.c.l.b16 %v2862
    %v2912 = vunpack.c.h.b16 %v2862
    %v2913 = vunpack.c.l.b16 %v2863
    %v2914 = vunpack.c.h.b16 %v2863
    %v2915 = vunpack.c.l.b16 %v2864
    %v2916 = vunpack.c.h.b16 %v2864
    %v2917 = vunpack.c.l.b16 %v2865
    %v2918 = vunpack.c.h.b16 %v2865
    %v2919 = vunpack.c.l.b16 %v2866
    %v2920 = vunpack.c.h.b16 %v2866
    %v2921 = vunpack.c.l.b16 %v2867
    %v2922 = vunpack.c.h.b16 %v2867
    %v2923 = vunpack.c.l.b16 %v2868
    %v2924 = vunpack.c.h.b16 %v2868
    %v2925 = vunpack.c.l.b16 %v2869
    %v2926 = vunpack.c.h.b16 %v2869
    %v2927 = vunpack.c.l.b16 %v2870
    %v2928 = vunpack.c.h.b16 %v2870
    %v2929 = vunpack.c.l.b16 %v2871
    %v2930 = vunpack.c.h.b16 %v2871
    %v2931 = vunpack.c.l.b16 %v2872
    %v2932 = vunpack.c.h.b16 %v2872
    %v2933 = vunpack.c.l.b16 %v2873
    %v2934 = vunpack.c.h.b16 %v2873
    %v2935 = vunpack.c.l.b16 %v2874
    %v2936 = vunpack.c.h.b16 %v2874
    %v2937 = vunpack.c.l.b16 %v2875
    %v2938 = vunpack.c.h.b16 %v2875
    %v2939 = vunpack.c.l.b16 %v2876
    %v2940 = vunpack.c.h.b16 %v2876
    %v2941 = vunpack.c.l.b16 %v2877
    %v2942 = vunpack.c.h.b16 %v2877
    %v2943 = vunpack.c.l.b16 %v2878
    %v2944 = vunpack.c.h.b16 %v2878
    %v2945 = vunpack.c.l.b16 %v2879
    %v2946 = vunpack.c.h.b16 %v2879
    %v2947 = vunpack.c.l.b16 %v2880
    %v2948 = vunpack.c.h.b16 %v2880
    %v2949 = vunpack.c.l.b16 %v2881
    %v2950 = vunpack.c.h.b16 %v2881
    %v2951 = vunpack.c.l.b16 %v2882
    %v2952 = vunpack.c.h.b16 %v2882
    %v2953 = vunpack.c.l.b16 %v2883
    %v2954 = vunpack.c.h.b16 %v2883
    %v2955 = vunpack.c.l.b16 %v2884
    %v2956 = vunpack.c.h.b16 %v2884
    %v2957 = vpack.c.b16 %v2911, %v2909
    %v2958 = vpack.c.b16 %v2912, %v2910
    %v2959 = vpack.c.b16 %v2915, %v2913
    %v2960 = vpack.c.b16 %v2916, %v2914
    %v2961 = vpack.c.b16 %v2919, %v2917
    %v2962 = vpack.c.b16 %v2920, %v2918
    %v2963 = vpack.c.b16 %v2923, %v2921
    %v2964 = vpack.c.b16 %v2924, %v2922
    %v2965 = vpack.c.b16 %v2927, %v2925
    %v2966 = vpack.c.b16 %v2928, %v2926
    %v2967 = vpack.c.b16 %v2931, %v2929
    %v2968 = vpack.c.b16 %v2932, %v2930
    %v2969 = vpack.c.b16 %v2935, %v2933
    %v2970 = vpack.c.b16 %v2936, %v2934
    %v2971 = vpack.c.b16 %v2939, %v2937
    %v2972 = vpack.c.b16 %v2940, %v2938
    %v2973 = vpack.c.b16 %v2943, %v2941
    %v2974 = vpack.c.b16 %v2944, %v2942
    %v2975 = vpack.c.b16 %v2947, %v2945
    %v2976 = vpack.c.b16 %v2948, %v2946
    %v2977 = vpack.c.b16 %v2951, %v2949
    %v2978 = vpack.c.b16 %v2952, %v2950
    %v2979 = vpack.c.b16 %v2955, %v2953
    %v2980 = vpack.c.b16 %v2956, %v2954
    %v3006 = vsel %vm1232, %v2857, 0
    %v3009 = vsel %vm1232, %v2859, 0
    %3011 = vmatprep.subr.bf16.mxu0 %v2958
    %3012 = vmatpush1.bf16.msra.mxu0 %v2957
    %3013 = vmatprep.subr.bf16.mxu0 %v2960
    %3014 = vmatpush1.bf16.msra.mxu0 %v2959
    %3015 = vmatprep.subr.bf16.mxu0 %v2962
    %3016 = vmatpush1.bf16.msra.mxu0 %v2961
    %3017 = vmatprep.subr.bf16.mxu0 %v2964
    %3018 = vmatpush1.bf16.msra.mxu0 %v2963
    %3019 = vmatprep.subr.bf16.mxu0 %v2966
    %3020 = vmatpush1.bf16.msra.mxu0 %v2965
    %3021 = vmatprep.subr.bf16.mxu0 %v2968
    %3022 = vmatpush1.bf16.msra.mxu0 %v2967
    %3023 = vmatprep.subr.bf16.mxu0 %v2970
    %3024 = vmatpush1.bf16.msra.mxu0 %v2969
    %3025 = vmatprep.subr.bf16.mxu0 %v2972
    %3026 = vmatpush1.bf16.msra.mxu0 %v2971
    %3027 = vmatprep.subr.bf16.mxu0 %v2974
    %3028 = vmatpush1.bf16.msra.mxu0 %v2973
    %3029 = vmatprep.subr.bf16.mxu0 %v2976
    %3030 = vmatpush1.bf16.msra.mxu0 %v2975
    %3031 = vmatprep.subr.bf16.mxu0 %v2978
    %3032 = vmatpush1.bf16.msra.mxu0 %v2977
    %3033 = vmatprep.subr.bf16.mxu0 %v2980
    %3034 = vmatpush1.bf16.msra.mxu0 %v2979
    %3035 = vmatprep.subr.bf16.mxu0 0
    %3036 = vmatpush1.bf16.msra.mxu0 0
    %3037 = vmatprep.subr.bf16.mxu0 0
    %3038 = vmatpush1.bf16.msra.mxu0 0
    %3039 = vmatprep.subr.bf16.mxu0 0
    %3040 = vmatpush1.bf16.msra.mxu0 0
    %3041 = vmatprep.subr.bf16.mxu0 0
    %3042 = vmatpush1.bf16.msra.mxu0 0
    %3043 = vmatprep.mubr.bf16.mxu0 %v3006
    %3044 = vmatmul.mubr.bf16.gmra.mrb[0].mxu0 %v2856
    %v3045 = vpop.f32.mrb[0].mxu0
    %v3046 = vadd.f32 0.0, %v3045
    %v3047 = vpop.f32.mrb[0].mxu0
    %v3048 = vadd.f32 0.0, %v3047
    %v3049 = vpop.f32.mrb[0].mxu0
    %v3050 = vadd.f32 0.0, %v3049
    %v3051 = vpop.f32.mrb[0].mxu0
    %v3052 = vadd.f32 0.0, %v3051
    %3053 = vmatprep.mubr.bf16.mxu0 %v3009
    %3054 = vmatmul.mubr.bf16.gmra.mrb[0].mxu0 %v2858
    %v3055 = vpop.f32.mrb[0].mxu0
    %v3056 = vadd.f32 0.0, %v3055
    %v3057 = vpop.f32.mrb[0].mxu0
    %v3058 = vadd.f32 0.0, %v3057
    %v3059 = vpop.f32.mrb[0].mxu0
    %v3060 = vadd.f32 0.0, %v3059
    %v3061 = vpop.f32.mrb[0].mxu0
    %v3062 = vadd.f32 0.0, %v3061
    %3063 = vdwg.mxu0
    %v3088 = vunpack.c.l.b16 %v2830
    %v3089 = vunpack.c.h.b16 %v2830
    %v3090 = vunpack.c.l.b16 %v2831
    %v3091 = vunpack.c.h.b16 %v2831
    %v3092 = vunpack.c.l.b16 %v2832
    %v3093 = vunpack.c.h.b16 %v2832
    %v3094 = vunpack.c.l.b16 %v2833
    %v3095 = vunpack.c.h.b16 %v2833
    %v3096 = vunpack.c.l.b16 %v2834
    %v3097 = vunpack.c.h.b16 %v2834
    %v3098 = vunpack.c.l.b16 %v2835
    %v3099 = vunpack.c.h.b16 %v2835
    %v3100 = vunpack.c.l.b16 %v2836
    %v3101 = vunpack.c.h.b16 %v2836
    %v3102 = vunpack.c.l.b16 %v2837
    %v3103 = vunpack.c.h.b16 %v2837
    %v3104 = vunpack.c.l.b16 %v2838
    %v3105 = vunpack.c.h.b16 %v2838
    %v3106 = vunpack.c.l.b16 %v2839
    %v3107 = vunpack.c.h.b16 %v2839
    %v3108 = vunpack.c.l.b16 %v2840
    %v3109 = vunpack.c.h.b16 %v2840
    %v3110 = vunpack.c.l.b16 %v2841
    %v3111 = vunpack.c.h.b16 %v2841
    %v3112 = vunpack.c.l.b16 %v2842
    %v3113 = vunpack.c.h.b16 %v2842
    %v3114 = vunpack.c.l.b16 %v2843
    %v3115 = vunpack.c.h.b16 %v2843
    %v3116 = vunpack.c.l.b16 %v2844
    %v3117 = vunpack.c.h.b16 %v2844
    %v3118 = vunpack.c.l.b16 %v2845
    %v3119 = vunpack.c.h.b16 %v2845
    %v3120 = vunpack.c.l.b16 %v2846
    %v3121 = vunpack.c.h.b16 %v2846
    %v3122 = vunpack.c.l.b16 %v2847
    %v3123 = vunpack.c.h.b16 %v2847
    %v3124 = vunpack.c.l.b16 %v2848
    %v3125 = vunpack.c.h.b16 %v2848
    %v3126 = vunpack.c.l.b16 %v2849
    %v3127 = vunpack.c.h.b16 %v2849
    %v3128 = vunpack.c.l.b16 %v2850
    %v3129 = vunpack.c.h.b16 %v2850
    %v3130 = vunpack.c.l.b16 %v2851
    %v3131 = vunpack.c.h.b16 %v2851
    %v3132 = vunpack.c.l.b16 %v2852
    %v3133 = vunpack.c.h.b16 %v2852
    %v3134 = vunpack.c.l.b16 %v2853
    %v3135 = vunpack.c.h.b16 %v2853
    %v3136 = vpack.c.b16 %v3090, %v3088
    %v3137 = vpack.c.b16 %v3091, %v3089
    %v3138 = vpack.c.b16 %v3094, %v3092
    %v3139 = vpack.c.b16 %v3095, %v3093
    %v3140 = vpack.c.b16 %v3098, %v3096
    %v3141 = vpack.c.b16 %v3099, %v3097
    %v3142 = vpack.c.b16 %v3102, %v3100
    %v3143 = vpack.c.b16 %v3103, %v3101
    %v3144 = vpack.c.b16 %v3106, %v3104
    %v3145 = vpack.c.b16 %v3107, %v3105
    %v3146 = vpack.c.b16 %v3110, %v3108
    %v3147 = vpack.c.b16 %v3111, %v3109
    %v3148 = vpack.c.b16 %v3114, %v3112
    %v3149 = vpack.c.b16 %v3115, %v3113
    %v3150 = vpack.c.b16 %v3118, %v3116
    %v3151 = vpack.c.b16 %v3119, %v3117
    %v3152 = vpack.c.b16 %v3122, %v3120
    %v3153 = vpack.c.b16 %v3123, %v3121
    %v3154 = vpack.c.b16 %v3126, %v3124
    %v3155 = vpack.c.b16 %v3127, %v3125
    %v3156 = vpack.c.b16 %v3130, %v3128
    %v3157 = vpack.c.b16 %v3131, %v3129
    %v3158 = vpack.c.b16 %v3134, %v3132
    %v3159 = vpack.c.b16 %v3135, %v3133
    %v3185 = vsel %vm1232, %v2827, 0
    %v3188 = vsel %vm1232, %v2829, 0
    %3190 = vmatprep.subr.bf16.mxu0 %v3137
    %3191 = vmatpush1.bf16.msra.mxu0 %v3136
    %3192 = vmatprep.subr.bf16.mxu0 %v3139
    %3193 = vmatpush1.bf16.msra.mxu0 %v3138
    %3194 = vmatprep.subr.bf16.mxu0 %v3141
    %3195 = vmatpush1.bf16.msra.mxu0 %v3140
    %3196 = vmatprep.subr.bf16.mxu0 %v3143
    %3197 = vmatpush1.bf16.msra.mxu0 %v3142
    %3198 = vmatprep.subr.bf16.mxu0 %v3145
    %3199 = vmatpush1.bf16.msra.mxu0 %v3144
    %3200 = vmatprep.subr.bf16.mxu0 %v3147
    %3201 = vmatpush1.bf16.msra.mxu0 %v3146
    %3202 = vmatprep.subr.bf16.mxu0 %v3149
    %3203 = vmatpush1.bf16.msra.mxu0 %v3148
    %3204 = vmatprep.subr.bf16.mxu0 %v3151
    %3205 = vmatpush1.bf16.msra.mxu0 %v3150
    %3206 = vmatprep.subr.bf16.mxu0 %v3153
    %3207 = vmatpush1.bf16.msra.mxu0 %v3152
    %3208 = vmatprep.subr.bf16.mxu0 %v3155
    %3209 = vmatpush1.bf16.msra.mxu0 %v3154
    %3210 = vmatprep.subr.bf16.mxu0 %v3157
    %3211 = vmatpush1.bf16.msra.mxu0 %v3156
    %3212 = vmatprep.subr.bf16.mxu0 %v3159
    %3213 = vmatpush1.bf16.msra.mxu0 %v3158
    %3214 = vmatprep.subr.bf16.mxu0 0
    %3215 = vmatpush1.bf16.msra.mxu0 0
    %3216 = vmatprep.subr.bf16.mxu0 0
    %3217 = vmatpush1.bf16.msra.mxu0 0
    %3218 = vmatprep.subr.bf16.mxu0 0
    %3219 = vmatpush1.bf16.msra.mxu0 0
    %3220 = vmatprep.subr.bf16.mxu0 0
    %3221 = vmatpush1.bf16.msra.mxu0 0
    %3222 = vmatprep.mubr.bf16.mxu0 %v3185
    %3223 = vmatmul.mubr.bf16.gmra.mrb[0].mxu0 %v2826
    %v3224 = vpop.f32.mrb[0].mxu0
    %v3225 = vadd.f32 %v3046, %v3224
    %v3226 = vpop.f32.mrb[0].mxu0
    %v3227 = vadd.f32 %v3048, %v3226
    %v3228 = vpop.f32.mrb[0].mxu0
    %v3229 = vadd.f32 %v3050, %v3228
    %v3230 = vpop.f32.mrb[0].mxu0
    %v3231 = vadd.f32 %v3052, %v3230
    %3232 = vmatprep.mubr.bf16.mxu0 %v3188
    %3233 = vmatmul.mubr.bf16.gmra.mrb[0].mxu0 %v2828
    %v3234 = vpop.f32.mrb[0].mxu0
    %v3235 = vadd.f32 %v3056, %v3234
    %v3236 = vpop.f32.mrb[0].mxu0
    %v3237 = vadd.f32 %v3058, %v3236
    %v3238 = vpop.f32.mrb[0].mxu0
    %v3239 = vadd.f32 %v3060, %v3238
    %v3240 = vpop.f32.mrb[0].mxu0
    %v3241 = vadd.f32 %v3062, %v3240
    %3242 = vdwg.mxu0
    %v3243 = vld [vmem:[#allocation3 + $0x20] sm:$0xff]
    %v3244 = vld [vmem:[#allocation3 + $0x28] sm:$0xff]
    %v3245 = vld [vmem:[#allocation3 + $0x30] sm:$0xff]
    %v3246 = vld [vmem:[#allocation3 + $0x38] sm:$0xff]
    %v3247 = vld [vmem:[#allocation3 + $0x40] sm:$0xff]
    %v3248 = vld [vmem:[#allocation3 + $0x48] sm:$0xff]
    %v3249 = vld [vmem:[#allocation3 + $0x50] sm:$0xff]
    %v3250 = vld [vmem:[#allocation3 + $0x58] sm:$0xff]
    %v3251 = vpack.c.bf16 %v3245, %v3243
    %v3252 = vpack.c.bf16 %v3246, %v3244
    %v3253 = vpack.c.bf16 %v3249, %v3247
    %v3254 = vpack.c.bf16 %v3250, %v3248
    %s3255 = scalar_lea.vmem %s5, 384
    %v3256 = vld [vmem:[%s3255] sm:$0xff]
    %v3257 = vld [vmem:[%s3255 + $0x8] sm:$0xff]
    %v3258 = vld [vmem:[%s3255 + $0x10] sm:$0xff]
    %v3259 = vld [vmem:[%s3255 + $0x18] sm:$0xff]
    %v3260 = vld [vmem:[%s3255 + $0x20] sm:$0xff]
    %v3261 = vld [vmem:[%s3255 + $0x28] sm:$0xff]
    %v3262 = vld [vmem:[%s3255 + $0x30] sm:$0xff]
    %v3263 = vld [vmem:[%s3255 + $0x38] sm:$0xff]
    %v3264 = vld [vmem:[%s3255 + $0x40] sm:$0xff]
    %v3265 = vld [vmem:[%s3255 + $0x48] sm:$0xff]
    %v3266 = vld [vmem:[%s3255 + $0x50] sm:$0xff]
    %v3267 = vld [vmem:[%s3255 + $0x58] sm:$0xff]
    %v3268 = vld [vmem:[%s3255 + $0x60] sm:$0xff]
    %v3269 = vld [vmem:[%s3255 + $0x68] sm:$0xff]
    %v3270 = vld [vmem:[%s3255 + $0x70] sm:$0xff]
    %v3271 = vld [vmem:[%s3255 + $0x78] sm:$0xff]
    %v3272 = vld [vmem:[%s3255 + $0x80] sm:$0xff]
    %v3273 = vld [vmem:[%s3255 + $0x88] sm:$0xff]
    %v3274 = vld [vmem:[%s3255 + $0x90] sm:$0xff]
    %v3275 = vld [vmem:[%s3255 + $0x98] sm:$0xff]
    %v3276 = vld [vmem:[%s3255 + $0xa0] sm:$0xff]
    %v3277 = vld [vmem:[%s3255 + $0xa8] sm:$0xff]
    %v3278 = vld [vmem:[%s3255 + $0xb0] sm:$0xff]
    %v3279 = vld [vmem:[%s3255 + $0xb8] sm:$0xff]
    %v3304 = vunpack.c.l.b16 %v3256
    %v3305 = vunpack.c.h.b16 %v3256
    %v3306 = vunpack.c.l.b16 %v3257
    %v3307 = vunpack.c.h.b16 %v3257
    %v3308 = vunpack.c.l.b16 %v3258
    %v3309 = vunpack.c.h.b16 %v3258
    %v3310 = vunpack.c.l.b16 %v3259
    %v3311 = vunpack.c.h.b16 %v3259
    %v3312 = vunpack.c.l.b16 %v3260
    %v3313 = vunpack.c.h.b16 %v3260
    %v3314 = vunpack.c.l.b16 %v3261
    %v3315 = vunpack.c.h.b16 %v3261
    %v3316 = vunpack.c.l.b16 %v3262
    %v3317 = vunpack.c.h.b16 %v3262
    %v3318 = vunpack.c.l.b16 %v3263
    %v3319 = vunpack.c.h.b16 %v3263
    %v3320 = vunpack.c.l.b16 %v3264
    %v3321 = vunpack.c.h.b16 %v3264
    %v3322 = vunpack.c.l.b16 %v3265
    %v3323 = vunpack.c.h.b16 %v3265
    %v3324 = vunpack.c.l.b16 %v3266
    %v3325 = vunpack.c.h.b16 %v3266
    %v3326 = vunpack.c.l.b16 %v3267
    %v3327 = vunpack.c.h.b16 %v3267
    %v3328 = vunpack.c.l.b16 %v3268
    %v3329 = vunpack.c.h.b16 %v3268
    %v3330 = vunpack.c.l.b16 %v3269
    %v3331 = vunpack.c.h.b16 %v3269
    %v3332 = vunpack.c.l.b16 %v3270
    %v3333 = vunpack.c.h.b16 %v3270
    %v3334 = vunpack.c.l.b16 %v3271
    %v3335 = vunpack.c.h.b16 %v3271
    %v3336 = vunpack.c.l.b16 %v3272
    %v3337 = vunpack.c.h.b16 %v3272
    %v3338 = vunpack.c.l.b16 %v3273
    %v3339 = vunpack.c.h.b16 %v3273
    %v3340 = vunpack.c.l.b16 %v3274
    %v3341 = vunpack.c.h.b16 %v3274
    %v3342 = vunpack.c.l.b16 %v3275
    %v3343 = vunpack.c.h.b16 %v3275
    %v3344 = vunpack.c.l.b16 %v3276
    %v3345 = vunpack.c.h.b16 %v3276
    %v3346 = vunpack.c.l.b16 %v3277
    %v3347 = vunpack.c.h.b16 %v3277
    %v3348 = vunpack.c.l.b16 %v3278
    %v3349 = vunpack.c.h.b16 %v3278
    %v3350 = vunpack.c.l.b16 %v3279
    %v3351 = vunpack.c.h.b16 %v3279
    %v3352 = vpack.c.b16 %v3306, %v3304
    %v3353 = vpack.c.b16 %v3307, %v3305
    %v3354 = vpack.c.b16 %v3310, %v3308
    %v3355 = vpack.c.b16 %v3311, %v3309
    %v3356 = vpack.c.b16 %v3314, %v3312
    %v3357 = vpack.c.b16 %v3315, %v3313
    %v3358 = vpack.c.b16 %v3318, %v3316
    %v3359 = vpack.c.b16 %v3319, %v3317
    %v3360 = vpack.c.b16 %v3322, %v3320
    %v3361 = vpack.c.b16 %v3323, %v3321
    %v3362 = vpack.c.b16 %v3326, %v3324
    %v3363 = vpack.c.b16 %v3327, %v3325
    %v3364 = vpack.c.b16 %v3330, %v3328
    %v3365 = vpack.c.b16 %v3331, %v3329
    %v3366 = vpack.c.b16 %v3334, %v3332
    %v3367 = vpack.c.b16 %v3335, %v3333
    %v3368 = vpack.c.b16 %v3338, %v3336
    %v3369 = vpack.c.b16 %v3339, %v3337
    %v3370 = vpack.c.b16 %v3342, %v3340
    %v3371 = vpack.c.b16 %v3343, %v3341
    %v3372 = vpack.c.b16 %v3346, %v3344
    %v3373 = vpack.c.b16 %v3347, %v3345
    %v3374 = vpack.c.b16 %v3350, %v3348
    %v3375 = vpack.c.b16 %v3351, %v3349
    %v3401 = vsel %vm1232, %v3252, 0
    %v3404 = vsel %vm1232, %v3254, 0
    %3406 = vmatprep.subr.bf16.mxu0 %v3353
    %3407 = vmatpush1.bf16.msra.mxu0 %v3352
    %3408 = vmatprep.subr.bf16.mxu0 %v3355
    %3409 = vmatpush1.bf16.msra.mxu0 %v3354
    %3410 = vmatprep.subr.bf16.mxu0 %v3357
    %3411 = vmatpush1.bf16.msra.mxu0 %v3356
    %3412 = vmatprep.subr.bf16.mxu0 %v3359
    %3413 = vmatpush1.bf16.msra.mxu0 %v3358
    %3414 = vmatprep.subr.bf16.mxu0 %v3361
    %3415 = vmatpush1.bf16.msra.mxu0 %v3360
    %3416 = vmatprep.subr.bf16.mxu0 %v3363
    %3417 = vmatpush1.bf16.msra.mxu0 %v3362
    %3418 = vmatprep.subr.bf16.mxu0 %v3365
    %3419 = vmatpush1.bf16.msra.mxu0 %v3364
    %3420 = vmatprep.subr.bf16.mxu0 %v3367
    %3421 = vmatpush1.bf16.msra.mxu0 %v3366
    %3422 = vmatprep.subr.bf16.mxu0 %v3369
    %3423 = vmatpush1.bf16.msra.mxu0 %v3368
    %3424 = vmatprep.subr.bf16.mxu0 %v3371
    %3425 = vmatpush1.bf16.msra.mxu0 %v3370
    %3426 = vmatprep.subr.bf16.mxu0 %v3373
    %3427 = vmatpush1.bf16.msra.mxu0 %v3372
    %3428 = vmatprep.subr.bf16.mxu0 %v3375
    %3429 = vmatpush1.bf16.msra.mxu0 %v3374
    %3430 = vmatprep.subr.bf16.mxu0 0
    %3431 = vmatpush1.bf16.msra.mxu0 0
    %3432 = vmatprep.subr.bf16.mxu0 0
    %3433 = vmatpush1.bf16.msra.mxu0 0
    %3434 = vmatprep.subr.bf16.mxu0 0
    %3435 = vmatpush1.bf16.msra.mxu0 0
    %3436 = vmatprep.subr.bf16.mxu0 0
    %3437 = vmatpush1.bf16.msra.mxu0 0
    %3438 = vmatprep.mubr.bf16.mxu0 %v3401
    %3439 = vmatmul.mubr.bf16.gmra.mrb[0].mxu0 %v3251
    %v3440 = vpop.f32.mrb[0].mxu0
    %v3441 = vadd.f32 0.0, %v3440
    %v3442 = vpop.f32.mrb[0].mxu0
    %v3443 = vadd.f32 0.0, %v3442
    %v3444 = vpop.f32.mrb[0].mxu0
    %v3445 = vadd.f32 0.0, %v3444
    %v3446 = vpop.f32.mrb[0].mxu0
    %v3447 = vadd.f32 0.0, %v3446
    %3448 = vmatprep.mubr.bf16.mxu0 %v3404
    %3449 = vmatmul.mubr.bf16.gmra.mrb[0].mxu0 %v3253
    %v3450 = vpop.f32.mrb[0].mxu0
    %v3451 = vadd.f32 0.0, %v3450
    %v3452 = vpop.f32.mrb[0].mxu0
    %v3453 = vadd.f32 0.0, %v3452
    %v3454 = vpop.f32.mrb[0].mxu0
    %v3455 = vadd.f32 0.0, %v3454
    %v3456 = vpop.f32.mrb[0].mxu0
    %v3457 = vadd.f32 0.0, %v3456
    %3458 = vdwg.mxu0
    %v3459 = vadd.f32 %v3225, %v3441
    %v3460 = vadd.f32 %v3227, %v3443
    %v3461 = vadd.f32 %v3229, %v3445
    %v3462 = vadd.f32 %v3231, %v3447
    %v3463 = vadd.f32 %v3235, %v3451
    %v3464 = vadd.f32 %v3237, %v3453
    %v3465 = vadd.f32 %v3239, %v3455
    %v3466 = vadd.f32 %v3241, %v3457
    %v3467 = vld [vmem:[%s6] sm:$0x3]
    %v3469 = vlaneseq
    %v3470 = vshrl.u32 %v3469, 7
    %v3471 = vsub.s32 0, %v3470
    %v3472 = vrot.slane %v3467, %v3471
    %v3473 = vlaneseq
    %v3474 = vshrl.u32 %v3473, 7
    %v3475 = vsub.s32 1, %v3474
    %v3476 = vrot.slane %v3467, %v3475
    %v3479 = vadd.f32 %v3459, %v3472
    %v3480 = vadd.f32 %v3460, %v3476
    %v3481 = vadd.f32 %v3461, %v3472
    %v3482 = vadd.f32 %v3462, %v3476
    %v3483 = vadd.f32 %v3463, %v3472
    %v3484 = vadd.f32 %v3464, %v3476
    %v3485 = vadd.f32 %v3465, %v3472
    %v3486 = vadd.f32 %v3466, %v3476
    %3495 = vrot.lane.b32.xlu0 %v3479, 64
    %v3496 = vpop.permute.xlu0 %3495
    %3497 = vrot.lane.b32.xlu0 %v3480, 64
    %v3498 = vpop.permute.xlu0 %3497
    %3499 = vrot.lane.b32.xlu0 %v3481, 64
    %v3500 = vpop.permute.xlu0 %3499
    %3501 = vrot.lane.b32.xlu0 %v3482, 64
    %v3502 = vpop.permute.xlu0 %3501
    %3503 = vrot.lane.b32.xlu0 %v3483, 64
    %v3504 = vpop.permute.xlu0 %3503
    %3505 = vrot.lane.b32.xlu0 %v3484, 64
    %v3506 = vpop.permute.xlu0 %3505
    %3507 = vrot.lane.b32.xlu0 %v3485, 64
    %v3508 = vpop.permute.xlu0 %3507
    %3509 = vrot.lane.b32.xlu0 %v3486, 64
    %v3510 = vpop.permute.xlu0 %3509
    %v3511 = vsel %vm1232, %v3496, %v3498
    %v3512 = vsel %vm1232, %v3500, %v3502
    %v3513 = vsel %vm1232, %v3504, %v3506
    %v3514 = vsel %vm1232, %v3508, %v3510
    %v3523 = vmax.f32 %v3479, %v3511
    %v3524 = vmax.f32 %v3480, %v3498
    %v3525 = vmax.f32 %v3481, %v3512
    %v3526 = vmax.f32 %v3482, %v3502
    %v3527 = vmax.f32 %v3483, %v3513
    %v3528 = vmax.f32 %v3484, %v3506
    %v3529 = vmax.f32 %v3485, %v3514
    %v3530 = vmax.f32 %v3486, %v3510
    %v3531 = vmax.f32 %v3523, %v3525
    %v3532 = vmax.f32 %v3524, %v3526
    %vm3533 = vcmp.gt.f32.partialorder %v3531, 0.0
    %vm3534 = vcmp.gt.f32.partialorder %v3532, 0.0
    %v3535 = vmul.f32 %v3531, 0.01
    %v3536 = vmul.f32 %v3532, 0.01
    %v3537 = vsel %vm3533, %v3531, %v3535
    %v3538 = vsel %vm3534, %v3532, %v3536
    %v3539 = vpack.c.bf16 %v3537, %v3537
    %v3540 = vpack.c.bf16 %v3538, %v3538
    %v3541 = vld [vmem:[#allocation8] sm:$0xff]
    %v3542 = vld [vmem:[#allocation8 + $0x8] sm:$0xff]
    %v3543 = vld [vmem:[#allocation8 + $0x10] sm:$0xff]
    %v3544 = vld [vmem:[#allocation8 + $0x18] sm:$0xff]
    %v3545 = vld [vmem:[#allocation8 + $0x20] sm:$0xff]
    %v3546 = vld [vmem:[#allocation8 + $0x28] sm:$0xff]
    %v3547 = vld [vmem:[#allocation8 + $0x30] sm:$0xff]
    %v3548 = vld [vmem:[#allocation8 + $0x38] sm:$0xff]
    %v3549 = vld [vmem:[#allocation8 + $0x40] sm:$0xff]
    %v3550 = vld [vmem:[#allocation8 + $0x48] sm:$0xff]
    %v3551 = vld [vmem:[#allocation8 + $0x50] sm:$0xff]
    %v3552 = vld [vmem:[#allocation8 + $0x58] sm:$0xff]
    %v3553 = vld [vmem:[#allocation8 + $0x60] sm:$0xff]
    %v3554 = vld [vmem:[#allocation8 + $0x68] sm:$0xff]
    %v3555 = vld [vmem:[#allocation8 + $0x70] sm:$0xff]
    %v3556 = vld [vmem:[#allocation8 + $0x78] sm:$0xff]
    %v3557 = vld [vmem:[#allocation8 + $0x80] sm:$0xff]
    %v3558 = vld [vmem:[#allocation8 + $0x88] sm:$0xff]
    %v3559 = vld [vmem:[#allocation8 + $0x90] sm:$0xff]
    %v3560 = vld [vmem:[#allocation8 + $0x98] sm:$0xff]
    %v3561 = vld [vmem:[#allocation8 + $0xa0] sm:$0xff]
    %v3562 = vld [vmem:[#allocation8 + $0xa8] sm:$0xff]
    %v3563 = vld [vmem:[#allocation8 + $0xb0] sm:$0xff]
    %v3564 = vld [vmem:[#allocation8 + $0xb8] sm:$0xff]
    %v3565 = vmax.f32 %v3525, %v3527
    %v3566 = vmax.f32 %v3526, %v3528
    %vm3567 = vcmp.gt.f32.partialorder %v3565, 0.0
    %vm3568 = vcmp.gt.f32.partialorder %v3566, 0.0
    %v3569 = vmul.f32 %v3565, 0.01
    %v3570 = vmul.f32 %v3566, 0.01
    %v3571 = vsel %vm3567, %v3565, %v3569
    %v3572 = vsel %vm3568, %v3566, %v3570
    %v3573 = vpack.c.bf16 %v3571, %v3571
    %v3574 = vpack.c.bf16 %v3572, %v3572
    %v3575 = vld [vmem:[#allocation8 + $0xc0] sm:$0xff]
    %v3576 = vld [vmem:[#allocation8 + $0xc8] sm:$0xff]
    %v3577 = vld [vmem:[#allocation8 + $0xd0] sm:$0xff]
    %v3578 = vld [vmem:[#allocation8 + $0xd8] sm:$0xff]
    %v3579 = vld [vmem:[#allocation8 + $0xe0] sm:$0xff]
    %v3580 = vld [vmem:[#allocation8 + $0xe8] sm:$0xff]
    %v3581 = vld [vmem:[#allocation8 + $0xf0] sm:$0xff]
    %v3582 = vld [vmem:[#allocation8 + $0xf8] sm:$0xff]
    %v3583 = vld [vmem:[#allocation8 + $0x100] sm:$0xff]
    %v3584 = vld [vmem:[#allocation8 + $0x108] sm:$0xff]
    %v3585 = vld [vmem:[#allocation8 + $0x110] sm:$0xff]
    %v3586 = vld [vmem:[#allocation8 + $0x118] sm:$0xff]
    %v3587 = vld [vmem:[#allocation8 + $0x120] sm:$0xff]
    %v3588 = vld [vmem:[#allocation8 + $0x128] sm:$0xff]
    %v3589 = vld [vmem:[#allocation8 + $0x130] sm:$0xff]
    %v3590 = vld [vmem:[#allocation8 + $0x138] sm:$0xff]
    %v3591 = vld [vmem:[#allocation8 + $0x140] sm:$0xff]
    %v3592 = vld [vmem:[#allocation8 + $0x148] sm:$0xff]
    %v3593 = vld [vmem:[#allocation8 + $0x150] sm:$0xff]
    %v3594 = vld [vmem:[#allocation8 + $0x158] sm:$0xff]
    %v3595 = vld [vmem:[#allocation8 + $0x160] sm:$0xff]
    %v3596 = vld [vmem:[#allocation8 + $0x168] sm:$0xff]
    %v3597 = vld [vmem:[#allocation8 + $0x170] sm:$0xff]
    %v3598 = vld [vmem:[#allocation8 + $0x178] sm:$0xff]
    %v3623 = vunpack.c.l.b16 %v3575
    %v3624 = vunpack.c.h.b16 %v3575
    %v3625 = vunpack.c.l.b16 %v3576
    %v3626 = vunpack.c.h.b16 %v3576
    %v3627 = vunpack.c.l.b16 %v3577
    %v3628 = vunpack.c.h.b16 %v3577
    %v3629 = vunpack.c.l.b16 %v3578
    %v3630 = vunpack.c.h.b16 %v3578
    %v3631 = vunpack.c.l.b16 %v3579
    %v3632 = vunpack.c.h.b16 %v3579
    %v3633 = vunpack.c.l.b16 %v3580
    %v3634 = vunpack.c.h.b16 %v3580
    %v3635 = vunpack.c.l.b16 %v3581
    %v3636 = vunpack.c.h.b16 %v3581
    %v3637 = vunpack.c.l.b16 %v3582
    %v3638 = vunpack.c.h.b16 %v3582
    %v3639 = vunpack.c.l.b16 %v3583
    %v3640 = vunpack.c.h.b16 %v3583
    %v3641 = vunpack.c.l.b16 %v3584
    %v3642 = vunpack.c.h.b16 %v3584
    %v3643 = vunpack.c.l.b16 %v3585
    %v3644 = vunpack.c.h.b16 %v3585
    %v3645 = vunpack.c.l.b16 %v3586
    %v3646 = vunpack.c.h.b16 %v3586
    %v3647 = vunpack.c.l.b16 %v3587
    %v3648 = vunpack.c.h.b16 %v3587
    %v3649 = vunpack.c.l.b16 %v3588
    %v3650 = vunpack.c.h.b16 %v3588
    %v3651 = vunpack.c.l.b16 %v3589
    %v3652 = vunpack.c.h.b16 %v3589
    %v3653 = vunpack.c.l.b16 %v3590
    %v3654 = vunpack.c.h.b16 %v3590
    %v3655 = vunpack.c.l.b16 %v3591
    %v3656 = vunpack.c.h.b16 %v3591
    %v3657 = vunpack.c.l.b16 %v3592
    %v3658 = vunpack.c.h.b16 %v3592
    %v3659 = vunpack.c.l.b16 %v3593
    %v3660 = vunpack.c.h.b16 %v3593
    %v3661 = vunpack.c.l.b16 %v3594
    %v3662 = vunpack.c.h.b16 %v3594
    %v3663 = vunpack.c.l.b16 %v3595
    %v3664 = vunpack.c.h.b16 %v3595
    %v3665 = vunpack.c.l.b16 %v3596
    %v3666 = vunpack.c.h.b16 %v3596
    %v3667 = vunpack.c.l.b16 %v3597
    %v3668 = vunpack.c.h.b16 %v3597
    %v3669 = vunpack.c.l.b16 %v3598
    %v3670 = vunpack.c.h.b16 %v3598
    %v3671 = vpack.c.b16 %v3625, %v3623
    %v3672 = vpack.c.b16 %v3626, %v3624
    %v3673 = vpack.c.b16 %v3629, %v3627
    %v3674 = vpack.c.b16 %v3630, %v3628
    %v3675 = vpack.c.b16 %v3633, %v3631
    %v3676 = vpack.c.b16 %v3634, %v3632
    %v3677 = vpack.c.b16 %v3637, %v3635
    %v3678 = vpack.c.b16 %v3638, %v3636
    %v3679 = vpack.c.b16 %v3641, %v3639
    %v3680 = vpack.c.b16 %v3642, %v3640
    %v3681 = vpack.c.b16 %v3645, %v3643
    %v3682 = vpack.c.b16 %v3646, %v3644
    %v3683 = vpack.c.b16 %v3649, %v3647
    %v3684 = vpack.c.b16 %v3650, %v3648
    %v3685 = vpack.c.b16 %v3653, %v3651
    %v3686 = vpack.c.b16 %v3654, %v3652
    %v3687 = vpack.c.b16 %v3657, %v3655
    %v3688 = vpack.c.b16 %v3658, %v3656
    %v3689 = vpack.c.b16 %v3661, %v3659
    %v3690 = vpack.c.b16 %v3662, %v3660
    %v3691 = vpack.c.b16 %v3665, %v3663
    %v3692 = vpack.c.b16 %v3666, %v3664
    %v3693 = vpack.c.b16 %v3669, %v3667
    %v3694 = vpack.c.b16 %v3670, %v3668
    %v3720 = vsel %vm1232, %v3574, 0
    %3722 = vmatprep.subr.bf16.mxu0 %v3672
    %3723 = vmatpush1.bf16.msra.mxu0 %v3671
    %3724 = vmatprep.subr.bf16.mxu0 %v3674
    %3725 = vmatpush1.bf16.msra.mxu0 %v3673
    %3726 = vmatprep.subr.bf16.mxu0 %v3676
    %3727 = vmatpush1.bf16.msra.mxu0 %v3675
    %3728 = vmatprep.subr.bf16.mxu0 %v3678
    %3729 = vmatpush1.bf16.msra.mxu0 %v3677
    %3730 = vmatprep.subr.bf16.mxu0 %v3680
    %3731 = vmatpush1.bf16.msra.mxu0 %v3679
    %3732 = vmatprep.subr.bf16.mxu0 %v3682
    %3733 = vmatpush1.bf16.msra.mxu0 %v3681
    %3734 = vmatprep.subr.bf16.mxu0 %v3684
    %3735 = vmatpush1.bf16.msra.mxu0 %v3683
    %3736 = vmatprep.subr.bf16.mxu0 %v3686
    %3737 = vmatpush1.bf16.msra.mxu0 %v3685
    %3738 = vmatprep.subr.bf16.mxu0 %v3688
    %3739 = vmatpush1.bf16.msra.mxu0 %v3687
    %3740 = vmatprep.subr.bf16.mxu0 %v3690
    %3741 = vmatpush1.bf16.msra.mxu0 %v3689
    %3742 = vmatprep.subr.bf16.mxu0 %v3692
    %3743 = vmatpush1.bf16.msra.mxu0 %v3691
    %3744 = vmatprep.subr.bf16.mxu0 %v3694
    %3745 = vmatpush1.bf16.msra.mxu0 %v3693
    %3746 = vmatprep.subr.bf16.mxu0 0
    %3747 = vmatpush1.bf16.msra.mxu0 0
    %3748 = vmatprep.subr.bf16.mxu0 0
    %3749 = vmatpush1.bf16.msra.mxu0 0
    %3750 = vmatprep.subr.bf16.mxu0 0
    %3751 = vmatpush1.bf16.msra.mxu0 0
    %3752 = vmatprep.subr.bf16.mxu0 0
    %3753 = vmatpush1.bf16.msra.mxu0 0
    %3754 = vmatprep.mubr.bf16.mxu0 %v3720
    %3755 = vmatmul.mubr.bf16.gmra.mrb[0].mxu0 %v3573
    %v3756 = vpop.f32.mrb[0].mxu0
    %v3757 = vadd.f32 0.0, %v3756
    %v3758 = vpop.f32.mrb[0].mxu0
    %v3759 = vadd.f32 0.0, %v3758
    %v3760 = vpop.f32.mrb[0].mxu0
    %v3761 = vpop.f32.mrb[0].mxu0
    %3762 = vdwg.mxu0
    %v3787 = vunpack.c.l.b16 %v3541
    %v3788 = vunpack.c.h.b16 %v3541
    %v3789 = vunpack.c.l.b16 %v3542
    %v3790 = vunpack.c.h.b16 %v3542
    %v3791 = vunpack.c.l.b16 %v3543
    %v3792 = vunpack.c.h.b16 %v3543
    %v3793 = vunpack.c.l.b16 %v3544
    %v3794 = vunpack.c.h.b16 %v3544
    %v3795 = vunpack.c.l.b16 %v3545
    %v3796 = vunpack.c.h.b16 %v3545
    %v3797 = vunpack.c.l.b16 %v3546
    %v3798 = vunpack.c.h.b16 %v3546
    %v3799 = vunpack.c.l.b16 %v3547
    %v3800 = vunpack.c.h.b16 %v3547
    %v3801 = vunpack.c.l.b16 %v3548
    %v3802 = vunpack.c.h.b16 %v3548
    %v3803 = vunpack.c.l.b16 %v3549
    %v3804 = vunpack.c.h.b16 %v3549
    %v3805 = vunpack.c.l.b16 %v3550
    %v3806 = vunpack.c.h.b16 %v3550
    %v3807 = vunpack.c.l.b16 %v3551
    %v3808 = vunpack.c.h.b16 %v3551
    %v3809 = vunpack.c.l.b16 %v3552
    %v3810 = vunpack.c.h.b16 %v3552
    %v3811 = vunpack.c.l.b16 %v3553
    %v3812 = vunpack.c.h.b16 %v3553
    %v3813 = vunpack.c.l.b16 %v3554
    %v3814 = vunpack.c.h.b16 %v3554
    %v3815 = vunpack.c.l.b16 %v3555
    %v3816 = vunpack.c.h.b16 %v3555
    %v3817 = vunpack.c.l.b16 %v3556
    %v3818 = vunpack.c.h.b16 %v3556
    %v3819 = vunpack.c.l.b16 %v3557
    %v3820 = vunpack.c.h.b16 %v3557
    %v3821 = vunpack.c.l.b16 %v3558
    %v3822 = vunpack.c.h.b16 %v3558
    %v3823 = vunpack.c.l.b16 %v3559
    %v3824 = vunpack.c.h.b16 %v3559
    %v3825 = vunpack.c.l.b16 %v3560
    %v3826 = vunpack.c.h.b16 %v3560
    %v3827 = vunpack.c.l.b16 %v3561
    %v3828 = vunpack.c.h.b16 %v3561
    %v3829 = vunpack.c.l.b16 %v3562
    %v3830 = vunpack.c.h.b16 %v3562
    %v3831 = vunpack.c.l.b16 %v3563
    %v3832 = vunpack.c.h.b16 %v3563
    %v3833 = vunpack.c.l.b16 %v3564
    %v3834 = vunpack.c.h.b16 %v3564
    %v3835 = vpack.c.b16 %v3789, %v3787
    %v3836 = vpack.c.b16 %v3790, %v3788
    %v3837 = vpack.c.b16 %v3793, %v3791
    %v3838 = vpack.c.b16 %v3794, %v3792
    %v3839 = vpack.c.b16 %v3797, %v3795
    %v3840 = vpack.c.b16 %v3798, %v3796
    %v3841 = vpack.c.b16 %v3801, %v3799
    %v3842 = vpack.c.b16 %v3802, %v3800
    %v3843 = vpack.c.b16 %v3805, %v3803
    %v3844 = vpack.c.b16 %v3806, %v3804
    %v3845 = vpack.c.b16 %v3809, %v3807
    %v3846 = vpack.c.b16 %v3810, %v3808
    %v3847 = vpack.c.b16 %v3813, %v3811
    %v3848 = vpack.c.b16 %v3814, %v3812
    %v3849 = vpack.c.b16 %v3817, %v3815
    %v3850 = vpack.c.b16 %v3818, %v3816
    %v3851 = vpack.c.b16 %v3821, %v3819
    %v3852 = vpack.c.b16 %v3822, %v3820
    %v3853 = vpack.c.b16 %v3825, %v3823
    %v3854 = vpack.c.b16 %v3826, %v3824
    %v3855 = vpack.c.b16 %v3829, %v3827
    %v3856 = vpack.c.b16 %v3830, %v3828
    %v3857 = vpack.c.b16 %v3833, %v3831
    %v3858 = vpack.c.b16 %v3834, %v3832
    %v3884 = vsel %vm1232, %v3540, 0
    %3886 = vmatprep.subr.bf16.mxu0 %v3836
    %3887 = vmatpush1.bf16.msra.mxu0 %v3835
    %3888 = vmatprep.subr.bf16.mxu0 %v3838
    %3889 = vmatpush1.bf16.msra.mxu0 %v3837
    %3890 = vmatprep.subr.bf16.mxu0 %v3840
    %3891 = vmatpush1.bf16.msra.mxu0 %v3839
    %3892 = vmatprep.subr.bf16.mxu0 %v3842
    %3893 = vmatpush1.bf16.msra.mxu0 %v3841
    %3894 = vmatprep.subr.bf16.mxu0 %v3844
    %3895 = vmatpush1.bf16.msra.mxu0 %v3843
    %3896 = vmatprep.subr.bf16.mxu0 %v3846
    %3897 = vmatpush1.bf16.msra.mxu0 %v3845
    %3898 = vmatprep.subr.bf16.mxu0 %v3848
    %3899 = vmatpush1.bf16.msra.mxu0 %v3847
    %3900 = vmatprep.subr.bf16.mxu0 %v3850
    %3901 = vmatpush1.bf16.msra.mxu0 %v3849
    %3902 = vmatprep.subr.bf16.mxu0 %v3852
    %3903 = vmatpush1.bf16.msra.mxu0 %v3851
    %3904 = vmatprep.subr.bf16.mxu0 %v3854
    %3905 = vmatpush1.bf16.msra.mxu0 %v3853
    %3906 = vmatprep.subr.bf16.mxu0 %v3856
    %3907 = vmatpush1.bf16.msra.mxu0 %v3855
    %3908 = vmatprep.subr.bf16.mxu0 %v3858
    %3909 = vmatpush1.bf16.msra.mxu0 %v3857
    %3910 = vmatprep.subr.bf16.mxu0 0
    %3911 = vmatpush1.bf16.msra.mxu0 0
    %3912 = vmatprep.subr.bf16.mxu0 0
    %3913 = vmatpush1.bf16.msra.mxu0 0
    %3914 = vmatprep.subr.bf16.mxu0 0
    %3915 = vmatpush1.bf16.msra.mxu0 0
    %3916 = vmatprep.subr.bf16.mxu0 0
    %3917 = vmatpush1.bf16.msra.mxu0 0
    %3918 = vmatprep.mubr.bf16.mxu0 %v3884
    %3919 = vmatmul.mubr.bf16.gmra.mrb[0].mxu0 %v3539
    %v3920 = vpop.f32.mrb[0].mxu0
    %v3921 = vadd.f32 %v3757, %v3920
    %v3922 = vpop.f32.mrb[0].mxu0
    %v3923 = vadd.f32 %v3759, %v3922
    %v3924 = vpop.f32.mrb[0].mxu0
    %v3925 = vpop.f32.mrb[0].mxu0
    %3926 = vdwg.mxu0
    %v3927 = vmax.f32 %v3527, %v3529
    %v3928 = vmax.f32 %v3528, %v3530
    %vm3929 = vcmp.gt.f32.partialorder %v3927, 0.0
    %vm3930 = vcmp.gt.f32.partialorder %v3928, 0.0
    %v3931 = vmul.f32 %v3927, 0.01
    %v3932 = vmul.f32 %v3928, 0.01
    %v3933 = vsel %vm3929, %v3927, %v3931
    %v3934 = vsel %vm3930, %v3928, %v3932
    %v3935 = vpack.c.bf16 %v3933, %v3933
    %v3936 = vpack.c.bf16 %v3934, %v3934
    %v3937 = vld [vmem:[#allocation8 + $0x180] sm:$0xff]
    %v3938 = vld [vmem:[#allocation8 + $0x188] sm:$0xff]
    %v3939 = vld [vmem:[#allocation8 + $0x190] sm:$0xff]
    %v3940 = vld [vmem:[#allocation8 + $0x198] sm:$0xff]
    %v3941 = vld [vmem:[#allocation8 + $0x1a0] sm:$0xff]
    %v3942 = vld [vmem:[#allocation8 + $0x1a8] sm:$0xff]
    %v3943 = vld [vmem:[#allocation8 + $0x1b0] sm:$0xff]
    %v3944 = vld [vmem:[#allocation8 + $0x1b8] sm:$0xff]
    %v3945 = vld [vmem:[#allocation8 + $0x1c0] sm:$0xff]
    %v3946 = vld [vmem:[#allocation8 + $0x1c8] sm:$0xff]
    %v3947 = vld [vmem:[#allocation8 + $0x1d0] sm:$0xff]
    %v3948 = vld [vmem:[#allocation8 + $0x1d8] sm:$0xff]
    %v3949 = vld [vmem:[#allocation8 + $0x1e0] sm:$0xff]
    %v3950 = vld [vmem:[#allocation8 + $0x1e8] sm:$0xff]
    %v3951 = vld [vmem:[#allocation8 + $0x1f0] sm:$0xff]
    %v3952 = vld [vmem:[#allocation8 + $0x1f8] sm:$0xff]
    %v3953 = vld [vmem:[#allocation8 + $0x200] sm:$0xff]
    %v3954 = vld [vmem:[#allocation8 + $0x208] sm:$0xff]
    %v3955 = vld [vmem:[#allocation8 + $0x210] sm:$0xff]
    %v3956 = vld [vmem:[#allocation8 + $0x218] sm:$0xff]
    %v3957 = vld [vmem:[#allocation8 + $0x220] sm:$0xff]
    %v3958 = vld [vmem:[#allocation8 + $0x228] sm:$0xff]
    %v3959 = vld [vmem:[#allocation8 + $0x230] sm:$0xff]
    %v3960 = vld [vmem:[#allocation8 + $0x238] sm:$0xff]
    %v3985 = vunpack.c.l.b16 %v3937
    %v3986 = vunpack.c.h.b16 %v3937
    %v3987 = vunpack.c.l.b16 %v3938
    %v3988 = vunpack.c.h.b16 %v3938
    %v3989 = vunpack.c.l.b16 %v3939
    %v3990 = vunpack.c.h.b16 %v3939
    %v3991 = vunpack.c.l.b16 %v3940
    %v3992 = vunpack.c.h.b16 %v3940
    %v3993 = vunpack.c.l.b16 %v3941
    %v3994 = vunpack.c.h.b16 %v3941
    %v3995 = vunpack.c.l.b16 %v3942
    %v3996 = vunpack.c.h.b16 %v3942
    %v3997 = vunpack.c.l.b16 %v3943
    %v3998 = vunpack.c.h.b16 %v3943
    %v3999 = vunpack.c.l.b16 %v3944
    %v4000 = vunpack.c.h.b16 %v3944
    %v4001 = vunpack.c.l.b16 %v3945
    %v4002 = vunpack.c.h.b16 %v3945
    %v4003 = vunpack.c.l.b16 %v3946
    %v4004 = vunpack.c.h.b16 %v3946
    %v4005 = vunpack.c.l.b16 %v3947
    %v4006 = vunpack.c.h.b16 %v3947
    %v4007 = vunpack.c.l.b16 %v3948
    %v4008 = vunpack.c.h.b16 %v3948
    %v4009 = vunpack.c.l.b16 %v3949
    %v4010 = vunpack.c.h.b16 %v3949
    %v4011 = vunpack.c.l.b16 %v3950
    %v4012 = vunpack.c.h.b16 %v3950
    %v4013 = vunpack.c.l.b16 %v3951
    %v4014 = vunpack.c.h.b16 %v3951
    %v4015 = vunpack.c.l.b16 %v3952
    %v4016 = vunpack.c.h.b16 %v3952
    %v4017 = vunpack.c.l.b16 %v3953
    %v4018 = vunpack.c.h.b16 %v3953
    %v4019 = vunpack.c.l.b16 %v3954
    %v4020 = vunpack.c.h.b16 %v3954
    %v4021 = vunpack.c.l.b16 %v3955
    %v4022 = vunpack.c.h.b16 %v3955
    %v4023 = vunpack.c.l.b16 %v3956
    %v4024 = vunpack.c.h.b16 %v3956
    %v4025 = vunpack.c.l.b16 %v3957
    %v4026 = vunpack.c.h.b16 %v3957
    %v4027 = vunpack.c.l.b16 %v3958
    %v4028 = vunpack.c.h.b16 %v3958
    %v4029 = vunpack.c.l.b16 %v3959
    %v4030 = vunpack.c.h.b16 %v3959
    %v4031 = vunpack.c.l.b16 %v3960
    %v4032 = vunpack.c.h.b16 %v3960
    %v4033 = vpack.c.b16 %v3987, %v3985
    %v4034 = vpack.c.b16 %v3988, %v3986
    %v4035 = vpack.c.b16 %v3991, %v3989
    %v4036 = vpack.c.b16 %v3992, %v3990
    %v4037 = vpack.c.b16 %v3995, %v3993
    %v4038 = vpack.c.b16 %v3996, %v3994
    %v4039 = vpack.c.b16 %v3999, %v3997
    %v4040 = vpack.c.b16 %v4000, %v3998
    %v4041 = vpack.c.b16 %v4003, %v4001
    %v4042 = vpack.c.b16 %v4004, %v4002
    %v4043 = vpack.c.b16 %v4007, %v4005
    %v4044 = vpack.c.b16 %v4008, %v4006
    %v4045 = vpack.c.b16 %v4011, %v4009
    %v4046 = vpack.c.b16 %v4012, %v4010
    %v4047 = vpack.c.b16 %v4015, %v4013
    %v4048 = vpack.c.b16 %v4016, %v4014
    %v4049 = vpack.c.b16 %v4019, %v4017
    %v4050 = vpack.c.b16 %v4020, %v4018
    %v4051 = vpack.c.b16 %v4023, %v4021
    %v4052 = vpack.c.b16 %v4024, %v4022
    %v4053 = vpack.c.b16 %v4027, %v4025
    %v4054 = vpack.c.b16 %v4028, %v4026
    %v4055 = vpack.c.b16 %v4031, %v4029
    %v4056 = vpack.c.b16 %v4032, %v4030
    %v4082 = vsel %vm1232, %v3936, 0
    %4084 = vmatprep.subr.bf16.mxu0 %v4034
    %4085 = vmatpush1.bf16.msra.mxu0 %v4033
    %4086 = vmatprep.subr.bf16.mxu0 %v4036
    %4087 = vmatpush1.bf16.msra.mxu0 %v4035
    %4088 = vmatprep.subr.bf16.mxu0 %v4038
    %4089 = vmatpush1.bf16.msra.mxu0 %v4037
    %4090 = vmatprep.subr.bf16.mxu0 %v4040
    %4091 = vmatpush1.bf16.msra.mxu0 %v4039
    %4092 = vmatprep.subr.bf16.mxu0 %v4042
    %4093 = vmatpush1.bf16.msra.mxu0 %v4041
    %4094 = vmatprep.subr.bf16.mxu0 %v4044
    %4095 = vmatpush1.bf16.msra.mxu0 %v4043
    %4096 = vmatprep.subr.bf16.mxu0 %v4046
    %4097 = vmatpush1.bf16.msra.mxu0 %v4045
    %4098 = vmatprep.subr.bf16.mxu0 %v4048
    %4099 = vmatpush1.bf16.msra.mxu0 %v4047
    %4100 = vmatprep.subr.bf16.mxu0 %v4050
    %4101 = vmatpush1.bf16.msra.mxu0 %v4049
    %4102 = vmatprep.subr.bf16.mxu0 %v4052
    %4103 = vmatpush1.bf16.msra.mxu0 %v4051
    %4104 = vmatprep.subr.bf16.mxu0 %v4054
    %4105 = vmatpush1.bf16.msra.mxu0 %v4053
    %4106 = vmatprep.subr.bf16.mxu0 %v4056
    %4107 = vmatpush1.bf16.msra.mxu0 %v4055
    %4108 = vmatprep.subr.bf16.mxu0 0
    %4109 = vmatpush1.bf16.msra.mxu0 0
    %4110 = vmatprep.subr.bf16.mxu0 0
    %4111 = vmatpush1.bf16.msra.mxu0 0
    %4112 = vmatprep.subr.bf16.mxu0 0
    %4113 = vmatpush1.bf16.msra.mxu0 0
    %4114 = vmatprep.subr.bf16.mxu0 0
    %4115 = vmatpush1.bf16.msra.mxu0 0
    %4116 = vmatprep.mubr.bf16.mxu0 %v4082
    %4117 = vmatmul.mubr.bf16.gmra.mrb[0].mxu0 %v3935
    %v4118 = vpop.f32.mrb[0].mxu0
    %v4119 = vadd.f32 0.0, %v4118
    %v4120 = vpop.f32.mrb[0].mxu0
    %v4121 = vadd.f32 0.0, %v4120
    %v4122 = vpop.f32.mrb[0].mxu0
    %v4123 = vpop.f32.mrb[0].mxu0
    %4124 = vdwg.mxu0
    %v4125 = vadd.f32 %v3921, %v4119
    %v4126 = vadd.f32 %v3923, %v4121
    %v4127 = vld [vmem:[%s8] sm:$0x3]
    %v4129 = vlaneseq
    %v4130 = vshrl.u32 %v4129, 7
    %v4131 = vsub.s32 0, %v4130
    %v4132 = vrot.slane %v4127, %v4131
    %v4133 = vlaneseq
    %v4134 = vshrl.u32 %v4133, 7
    %v4135 = vsub.s32 1, %v4134
    %v4136 = vrot.slane %v4127, %v4135
    %v4139 = vadd.f32 %v4125, %v4132
    %v4140 = vadd.f32 %v4126, %v4136
    %vm4141 = vcmp.gt.f32.partialorder %v4139, 0.0
    %vm4142 = vcmp.gt.f32.partialorder %v4140, 0.0
    %v4143 = vmul.f32 %v4139, 0.01
    %v4144 = vmul.f32 %v4140, 0.01
    %v4145 = vsel %vm4141, %v4139, %v4143
    %v4146 = vsel %vm4142, %v4140, %v4144
    %v4147 = vpack.c.bf16 %v4145, %v4145
    %v4148 = vpack.c.bf16 %v4146, %v4146
    %v4149 = vld [vmem:[#allocation9] sm:$0xf]
    %v4150 = vld [vmem:[#allocation9 + $0x4] sm:$0xf]
    %v4151 = vld [vmem:[#allocation9 + $0x8] sm:$0xf]
    %v4152 = vld [vmem:[#allocation9 + $0xc] sm:$0xf]
    %v4153 = vld [vmem:[#allocation9 + $0x10] sm:$0xf]
    %v4154 = vld [vmem:[#allocation9 + $0x14] sm:$0xf]
    %v4155 = vld [vmem:[#allocation9 + $0x18] sm:$0xf]
    %v4156 = vld [vmem:[#allocation9 + $0x1c] sm:$0xf]
    %v4157 = vld [vmem:[#allocation9 + $0x20] sm:$0xf]
    %v4158 = vld [vmem:[#allocation9 + $0x24] sm:$0xf]
    %v4159 = vld [vmem:[#allocation9 + $0x28] sm:$0xf]
    %v4160 = vld [vmem:[#allocation9 + $0x2c] sm:$0xf]
    %v4161 = vld [vmem:[#allocation9 + $0x30] sm:$0xf]
    %v4162 = vld [vmem:[#allocation9 + $0x34] sm:$0xf]
    %v4163 = vld [vmem:[#allocation9 + $0x38] sm:$0xf]
    %v4164 = vld [vmem:[#allocation9 + $0x3c] sm:$0xf]
    %v4165 = vld [vmem:[#allocation9 + $0x40] sm:$0xf]
    %v4166 = vld [vmem:[#allocation9 + $0x44] sm:$0xf]
    %v4167 = vld [vmem:[#allocation9 + $0x48] sm:$0xf]
    %v4168 = vld [vmem:[#allocation9 + $0x4c] sm:$0xf]
    %v4169 = vld [vmem:[#allocation9 + $0x50] sm:$0xf]
    %v4170 = vld [vmem:[#allocation9 + $0x54] sm:$0xf]
    %v4171 = vld [vmem:[#allocation9 + $0x58] sm:$0xf]
    %v4172 = vld [vmem:[#allocation9 + $0x5c] sm:$0xf]
    %v4173 = vld [vmem:[#allocation9 + $0x60] sm:$0xf]
    %v4174 = vld [vmem:[#allocation9 + $0x64] sm:$0xf]
    %v4175 = vld [vmem:[#allocation9 + $0x68] sm:$0xf]
    %v4176 = vld [vmem:[#allocation9 + $0x6c] sm:$0xf]
    %v4177 = vld [vmem:[#allocation9 + $0x70] sm:$0xf]
    %v4178 = vld [vmem:[#allocation9 + $0x74] sm:$0xf]
    %v4179 = vld [vmem:[#allocation9 + $0x78] sm:$0xf]
    %v4180 = vld [vmem:[#allocation9 + $0x7c] sm:$0xf]
    %v4181 = vld [vmem:[%s10] sm:$0x1]
    %v4183 = vlaneseq
    %v4184 = vshrl.u32 %v4183, 7
    %v4185 = vsub.s32 0, %v4184
    %v4186 = vrot.slane %v4181, %v4185
    %v4220 = vunpack.c.l.b16 %v4149
    %v4221 = vunpack.c.l.b16 %v4150
    %v4222 = vunpack.c.l.b16 %v4151
    %v4223 = vunpack.c.l.b16 %v4152
    %v4224 = vunpack.c.l.b16 %v4153
    %v4225 = vunpack.c.l.b16 %v4154
    %v4226 = vunpack.c.l.b16 %v4155
    %v4227 = vunpack.c.l.b16 %v4156
    %v4228 = vunpack.c.l.b16 %v4157
    %v4229 = vunpack.c.l.b16 %v4158
    %v4230 = vunpack.c.l.b16 %v4159
    %v4231 = vunpack.c.l.b16 %v4160
    %v4232 = vunpack.c.l.b16 %v4161
    %v4233 = vunpack.c.l.b16 %v4162
    %v4234 = vunpack.c.l.b16 %v4163
    %v4235 = vunpack.c.l.b16 %v4164
    %v4236 = vunpack.c.l.b16 %v4165
    %v4237 = vunpack.c.l.b16 %v4166
    %v4238 = vunpack.c.l.b16 %v4167
    %v4239 = vunpack.c.l.b16 %v4168
    %v4240 = vunpack.c.l.b16 %v4169
    %v4241 = vunpack.c.l.b16 %v4170
    %v4242 = vunpack.c.l.b16 %v4171
    %v4243 = vunpack.c.l.b16 %v4172
    %v4244 = vunpack.c.l.b16 %v4173
    %v4245 = vunpack.c.l.b16 %v4174
    %v4246 = vunpack.c.l.b16 %v4175
    %v4247 = vunpack.c.l.b16 %v4176
    %v4248 = vunpack.c.l.b16 %v4177
    %v4249 = vunpack.c.l.b16 %v4178
    %v4250 = vunpack.c.l.b16 %v4179
    %v4251 = vunpack.c.l.b16 %v4180
    %v4252 = vpack.c.b16 %v4221, %v4220
    %v4253 = vpack.c.b16 %v4223, %v4222
    %v4254 = vpack.c.b16 %v4225, %v4224
    %v4255 = vpack.c.b16 %v4227, %v4226
    %v4256 = vpack.c.b16 %v4229, %v4228
    %v4257 = vpack.c.b16 %v4231, %v4230
    %v4258 = vpack.c.b16 %v4233, %v4232
    %v4259 = vpack.c.b16 %v4235, %v4234
    %v4260 = vpack.c.b16 %v4237, %v4236
    %v4261 = vpack.c.b16 %v4239, %v4238
    %v4262 = vpack.c.b16 %v4241, %v4240
    %v4263 = vpack.c.b16 %v4243, %v4242
    %v4264 = vpack.c.b16 %v4245, %v4244
    %v4265 = vpack.c.b16 %v4247, %v4246
    %v4266 = vpack.c.b16 %v4249, %v4248
    %v4267 = vpack.c.b16 %v4251, %v4250
    %4284 = vmatprep.subr.bf16.mxu0 0
    %4285 = vmatpush1.bf16.msra.mxu0 %v4252
    %4286 = vmatprep.subr.bf16.mxu0 0
    %4287 = vmatpush1.bf16.msra.mxu0 %v4253
    %4288 = vmatprep.subr.bf16.mxu0 0
    %4289 = vmatpush1.bf16.msra.mxu0 %v4254
    %4290 = vmatprep.subr.bf16.mxu0 0
    %4291 = vmatpush1.bf16.msra.mxu0 %v4255
    %4292 = vmatprep.subr.bf16.mxu0 0
    %4293 = vmatpush1.bf16.msra.mxu0 %v4256
    %4294 = vmatprep.subr.bf16.mxu0 0
    %4295 = vmatpush1.bf16.msra.mxu0 %v4257
    %4296 = vmatprep.subr.bf16.mxu0 0
    %4297 = vmatpush1.bf16.msra.mxu0 %v4258
    %4298 = vmatprep.subr.bf16.mxu0 0
    %4299 = vmatpush1.bf16.msra.mxu0 %v4259
    %4300 = vmatprep.subr.bf16.mxu0 0
    %4301 = vmatpush1.bf16.msra.mxu0 %v4260
    %4302 = vmatprep.subr.bf16.mxu0 0
    %4303 = vmatpush1.bf16.msra.mxu0 %v4261
    %4304 = vmatprep.subr.bf16.mxu0 0
    %4305 = vmatpush1.bf16.msra.mxu0 %v4262
    %4306 = vmatprep.subr.bf16.mxu0 0
    %4307 = vmatpush1.bf16.msra.mxu0 %v4263
    %4308 = vmatprep.subr.bf16.mxu0 0
    %4309 = vmatpush1.bf16.msra.mxu0 %v4264
    %4310 = vmatprep.subr.bf16.mxu0 0
    %4311 = vmatpush1.bf16.msra.mxu0 %v4265
    %4312 = vmatprep.subr.bf16.mxu0 0
    %4313 = vmatpush1.bf16.msra.mxu0 %v4266
    %4314 = vmatprep.subr.bf16.mxu0 0
    %4315 = vmatpush1.bf16.msra.mxu0 %v4267
    %4316 = vmatprep.mubr.bf16.mxu0 %v4148
    %4317 = vmatmul.mubr.bf16.gmra.mrb[0].mxu0 %v4147
    %v4318 = vpop.f32.mrb[0].mxu0
    %v4319 = vadd.f32 %v4186, %v4318
    %v4320 = vpop.f32.mrb[0].mxu0
    %v4321 = vpop.f32.mrb[0].mxu0
    %v4322 = vpop.f32.mrb[0].mxu0
    %4323 = vdwg.mxu0
    %4324 = vmax.xlane.f32.xlu0 %v4319
    %v4325 = vpop.xlane.xlu0 %4324
    %v4326 = vsub.f32 %v4319, %v4325
    %v4327 = vmul.f32 %v4326, 1.442695
    %v4328 = vpow.pop %v4327
    %4329 = vadd.xlane.f32.xlu0 %v4328
    %v4330 = vpop.xlane.xlu0 %4329
    %v4331 = vlog2.pop %v4330
    %v4332 = vmul.f32 %v4331, 0.6931472
    %v4333 = vadd.f32 %v4332, %v4325
    %v4334 = vsub.f32 %v4319, %v4333
    %4335 = vst [vmem:[%s11] sm:$0xff] %v4334
    // Predicated region
    $region62: #{net_forward.1} parent=1 // pred_check
      _
    $region63: #{net_forward.1} parent=1 // pred_check_branch
      %4337 = sbr.rel (0) target = $region65
    $region64: #{net_forward.1} parent=1 // pred_region
      _
    $region65: #{net_forward.1} parent=1 // pred_fallthru
      _
    // Predicated region
    $region66: #{net_forward.1} parent=1 // pred_check
      _
    $region67: #{net_forward.1} parent=1 // pred_check_branch
      %4339 = sbr.rel (0) target = $region69
    $region68: #{net_forward.1} parent=1 // pred_region
      _
    $region69: #{net_forward.1} parent=1 // pred_fallthru
      _
    %4340 = vsyncpa [#allocation5], 1
    %4341 = vsyncpa [#allocation7], 1
    %4342 = vsyncpa [#allocation10], 1

</llo_original>
